<compile_context>
chip_gen: v5e
topology: v5e:2x2
jax: 0.10.0
libtpu: 0.0.40
codegen_flags: <defaults>
</compile_context>

<pallas_src>
import functools

import jax
import jax.numpy as jnp
from jax import lax
from jax.experimental import pallas as pl
from jax.experimental.pallas import tpu as pltpu

NEG_SLOPE = 0.01   # torch.nn.LeakyReLU default
BN_EPS = 1e-5      # torch.nn.BatchNorm default eps


# ----------------------------- fused block kernel -----------------------------

def _residual_block_kernel(x_ref, w1_ref, b1_ref, w2_ref, b2_ref, o_ref,
                           xpad, hpad, *, H, W, cin, cmid, cout):
    # x_ref : (1, H, W, cin)        bf16  one batch element (NHWC)
    # w1_ref: (9, cin, cmid+cout)   bf16  conv1 (BN1 scale folded) ++ 1x1 shortcut at center tap
    # b1_ref: (1, cmid)             f32   conv1_bias*scale1 + beta1
    # w2_ref: (9, cmid, cout)       bf16  conv2 (BN2 scale folded)
    # b2_ref: (1, cout)             f32   conv2_bias*scale2 + beta2 + shortcut_bias
    # o_ref : (1, H, W, cout)       f32
    # xpad  : (H+2, W+2, cin)       bf16  VMEM scratch, zero-padded input halo
    # hpad  : (H+2, W+2, cmid)      bf16  VMEM scratch, zero-padded hidden halo

    # Build the zero-padded input halo entirely in VMEM (no XLA pad glue).
    xpad[...] = jnp.zeros_like(xpad)
    xpad[pl.ds(1, H), pl.ds(1, W), :] = x_ref[0]

    # conv1 (+ merged 1x1 shortcut): 9 shifted matmuls, f32 accumulation.
    xp = xpad[...]
    acc = jnp.zeros((H * W, cmid + cout), jnp.float32)
    t = 0
    for dh in range(3):
        for dw in range(3):
            tap = xp[dh:dh + H, dw:dw + W, :].reshape(H * W, cin)
            acc = acc + jnp.dot(tap, w1_ref[t],
                                preferred_element_type=jnp.float32)
            t += 1

    # Epilogue: BN1 shift + LeakyReLU on the conv1 half; shortcut half passes through.
    h = acc[:, :cmid] + b1_ref[...]
    h = jnp.where(h >= 0, h, NEG_SLOPE * h)
    short = acc[:, cmid:]

    # Zero-padded halo for the hidden activation (bf16 for the second MXU pass).
    hpad[...] = jnp.zeros_like(hpad)
    hpad[pl.ds(1, H), pl.ds(1, W), :] = h.reshape(H, W, cmid).astype(hpad.dtype)

    # conv2: 9 shifted matmuls accumulated on top of the shortcut path.
    hp = hpad[...]
    acc2 = short
    t = 0
    for dh in range(3):
        for dw in range(3):
            tap = hp[dh:dh + H, dw:dw + W, :].reshape(H * W, cmid)
            acc2 = acc2 + jnp.dot(tap, w2_ref[t],
                                  preferred_element_type=jnp.float32)
            t += 1

    out = acc2 + b2_ref[...]
    o_ref[...] = out.reshape(1, H, W, cout).astype(o_ref.dtype)


def residual_block_forward(x_nchw, params):
    """x_nchw: (N, Cin, H, W) float32 -> (N, Cout, H, W) float32."""
    N, cin, H, W = x_nchw.shape
    w1, b1 = params["w1"], params["b1"]
    w2, b2 = params["w2"], params["b2"]
    cmid = b1.shape[1]
    cout = b2.shape[1]

    # NHWC, bf16 activations (f32 accumulation happens inside the kernel).
    x = jnp.transpose(x_nchw, (0, 2, 3, 1)).astype(jnp.bfloat16)

    kernel = functools.partial(_residual_block_kernel,
                               H=H, W=W, cin=cin, cmid=cmid, cout=cout)
    out = pl.pallas_call(
        kernel,
        out_shape=jax.ShapeDtypeStruct((N, H, W, cout), jnp.float32),
        grid=(N,),
        in_specs=[
            pl.BlockSpec((1, H, W, cin), lambda n: (n, 0, 0, 0)),
            pl.BlockSpec((9, cin, cmid + cout), lambda n: (0, 0, 0)),
            pl.BlockSpec((1, cmid), lambda n: (0, 0)),
            pl.BlockSpec((9, cmid, cout), lambda n: (0, 0, 0)),
            pl.BlockSpec((1, cout), lambda n: (0, 0)),
        ],
        out_specs=pl.BlockSpec((1, H, W, cout), lambda n: (n, 0, 0, 0)),
        scratch_shapes=[
            pltpu.VMEM((H + 2, W + 2, cin), jnp.bfloat16),
            pltpu.VMEM((H + 2, W + 2, cmid), jnp.bfloat16),
        ],
        compiler_params=pltpu.CompilerParams(
            dimension_semantics=("parallel",),
            vmem_limit_bytes=32 * 1024 * 1024,   # safe on v5e/v6e/v7x
        ),
    )(x, w1, b1, w2, b2)
    return jnp.transpose(out, (0, 3, 1, 2))


# ----------------------------- parameters -----------------------------

def _bn_affine(key, c):
    kg, kb = jax.random.split(key)
    gamma = jax.random.uniform(kg, (c,), jnp.float32, 0.5, 1.5)
    beta = jax.random.normal(kb, (c,), jnp.float32) * 0.05
    # eval-mode BN: running_mean = 0, running_var = 1
    scale = gamma / jnp.sqrt(1.0 + BN_EPS)
    return scale, beta


def init_params(key, cin, cmid, cout):
    k1, kb1, k2, kb2, ks, kbs, kbn1, kbn2 = jax.random.split(key, 8)
    w1 = jax.random.normal(k1, (3, 3, cin, cmid), jnp.float32) / jnp.sqrt(9.0 * cin)
    b1 = jax.random.normal(kb1, (cmid,), jnp.float32) * 0.05
    w2 = jax.random.normal(k2, (3, 3, cmid, cout), jnp.float32) / jnp.sqrt(9.0 * cmid)
    b2 = jax.random.normal(kb2, (cout,), jnp.float32) * 0.05
    ws = jax.random.normal(ks, (cin, cout), jnp.float32) / jnp.sqrt(1.0 * cin)
    bs = jax.random.normal(kbs, (cout,), jnp.float32) * 0.05
    s1, beta1 = _bn_affine(kbn1, cmid)
    s2, beta2 = _bn_affine(kbn2, cout)

    # Fold BN scales into conv weights; merge the 1x1 shortcut into conv1's
    # output columns at the center tap (zeros at the other 8 taps).
    w1f = w1 * s1[None, None, None, :]
    w2f = w2 * s2[None, None, None, :]
    w1c = jnp.zeros((3, 3, cin, cmid + cout), jnp.float32)
    w1c = w1c.at[:, :, :, :cmid].set(w1f)
    w1c = w1c.at[1, 1, :, cmid:].set(ws)

    return dict(
        w1=w1c.reshape(9, cin, cmid + cout).astype(jnp.bfloat16),
        b1=(b1 * s1 + beta1).reshape(1, cmid),
        w2=w2f.reshape(9, cmid, cout).astype(jnp.bfloat16),
        b2=(b2 * s2 + beta2 + bs).reshape(1, cout),   # shortcut bias folded in
    )


# ----------------------------- pure-JAX reference -----------------------------

def reference_forward(x_nchw, params):
    """Pure-JAX reference mirroring the kernel's bf16 weight/activation casts."""
    x = jnp.transpose(x_nchw, (0, 2, 3, 1)).astype(jnp.bfloat16).astype(jnp.float32)
    w1 = params["w1"].astype(jnp.float32)
    w2 = params["w2"].astype(jnp.float32)
    b1, b2 = params["b1"], params["b2"]
    cmid = b1.shape[1]
    cout = b2.shape[1]

    def conv3x3(inp, w):
        wk = w.reshape(3, 3, inp.shape[-1], w.shape[-1])
        return lax.conv_general_dilated(
            inp, wk, window_strides=(1, 1), padding="SAME",
            dimension_numbers=("NHWC", "HWIO", "NHWC"),
            precision=lax.Precision.HIGHEST)

    y = conv3x3(x, w1)                               # conv1 + merged shortcut
    h = y[..., :cmid] + b1.reshape(1, 1, 1, cmid)
    h = jnp.where(h >= 0, h, NEG_SLOPE * h)
    h = h.astype(jnp.bfloat16).astype(jnp.float32)   # mirror kernel's bf16 hidden
    short = y[..., cmid:]
    out = conv3x3(h, w2) + short + b2.reshape(1, 1, 1, cout)
    return jnp.transpose(out, (0, 3, 1, 2))


# ----------------------------- main -----------------------------

if __name__ == "__main__":
    key = jax.random.PRNGKey(0)
    kx, kp = jax.random.split(key)
    N, CIN, CMID, COUT, H, W = 2, 4, 16, 32, 16, 16

    x = jax.random.normal(kx, (N, CIN, H, W), jnp.float32)
    params = init_params(kp, CIN, CMID, COUT)

    fwd = jax.jit(residual_block_forward)
    out = jax.block_until_ready(fwd(x, params))
    assert out.shape == (N, COUT, H, W), out.shape
    assert bool(jnp.all(jnp.isfinite(out)))

    ref = reference_forward(x, params)
    max_err = float(jnp.max(jnp.abs(out - ref)))
    assert max_err < 2e-2, f"max abs error vs reference: {max_err}"

    print("KERNEL_OK")
</pallas_src>

<mosaic_0001>
module attributes {stable_mosaic.version = 11 : i64} {
  func.func @_residual_block_kernel(%arg0: i32, %arg1: memref<1x16x16x4xbf16, #tpu.memory_space<vmem>>, %arg2: memref<9x4x48xbf16, #tpu.memory_space<vmem>>, %arg3: memref<1x16xf32, #tpu.memory_space<vmem>>, %arg4: memref<9x16x32xbf16, #tpu.memory_space<vmem>>, %arg5: memref<1x32xf32, #tpu.memory_space<vmem>>, %arg6: memref<1x16x16x32xf32, #tpu.memory_space<vmem>>, %arg7: memref<18x18x4xbf16, #tpu.memory_space<vmem>>, %arg8: memref<18x18x16xbf16, #tpu.memory_space<vmem>>) attributes {dimension_semantics = [#tpu.dimension_semantics<parallel>], iteration_bounds = array<i64: 2>, scalar_prefetch = 0 : i64, scratch_operands = 2 : i64, tpu.core_type = #tpu.core_type<tc>, window_params = [{transform_indices = @transform_0, window_bounds = array<i64: 1, 16, 16, 4>}, {pipeline_mode = #tpu.pipeline_mode<synchronous>, transform_indices = @transform_1, window_bounds = array<i64: 9, 4, 48>}, {pipeline_mode = #tpu.pipeline_mode<synchronous>, transform_indices = @transform_2, window_bounds = array<i64: 1, 16>}, {pipeline_mode = #tpu.pipeline_mode<synchronous>, transform_indices = @transform_3, window_bounds = array<i64: 9, 16, 32>}, {pipeline_mode = #tpu.pipeline_mode<synchronous>, transform_indices = @transform_4, window_bounds = array<i64: 1, 32>}, {transform_indices = @transform_5, window_bounds = array<i64: 1, 16, 16, 32>}]} {
    %cst = arith.constant 0.000000e+00 : bf16
    %0 = vector.broadcast %cst : bf16 to vector<18x18x4xbf16>
    %c0 = arith.constant 0 : index
    %c0_0 = arith.constant 0 : index
    %c0_1 = arith.constant 0 : index
    %1 = vector.load %arg7[%c0, %c0_0, %c0_1] : memref<18x18x4xbf16, #tpu.memory_space<vmem>>, vector<18x18x4xbf16>
    tpu.vector_store %arg7[%c0, %c0_0, %c0_1], %0 {strides = array<i32>} : memref<18x18x4xbf16, #tpu.memory_space<vmem>>, vector<18x18x4xbf16>,
    %c0_2 = arith.constant 0 : index
    %c0_3 = arith.constant 0 : index
    %c0_4 = arith.constant 0 : index
    %c0_5 = arith.constant 0 : index
    %2 = vector.load %arg1[%c0_2, %c0_3, %c0_4, %c0_5] : memref<1x16x16x4xbf16, #tpu.memory_space<vmem>>, vector<1x16x16x4xbf16>
    %3 = vector.shape_cast %2 : vector<1x16x16x4xbf16> to vector<16x16x4xbf16>
    %c1 = arith.constant 1 : index
    %c1_6 = arith.constant 1 : index
    %c0_7 = arith.constant 0 : index
    %4 = vector.load %arg7[%c1, %c1_6, %c0_7] : memref<18x18x4xbf16, #tpu.memory_space<vmem>>, vector<16x16x4xbf16>
    tpu.vector_store %arg7[%c1, %c1_6, %c0_7], %3 {strides = array<i32>} : memref<18x18x4xbf16, #tpu.memory_space<vmem>>, vector<16x16x4xbf16>,
    %c0_8 = arith.constant 0 : index
    %c0_9 = arith.constant 0 : index
    %c0_10 = arith.constant 0 : index
    %5 = vector.load %arg7[%c0_8, %c0_9, %c0_10] : memref<18x18x4xbf16, #tpu.memory_space<vmem>>, vector<18x18x4xbf16>
    %cst_11 = arith.constant 0.000000e+00 : f32
    %6 = vector.broadcast %cst_11 : f32 to vector<256x48xf32>
    %7 = vector.extract_strided_slice %5 {offsets = [0, 0, 0], sizes = [16, 16, 4], strides = [1, 1, 1]} : vector<18x18x4xbf16> to vector<16x16x4xbf16>
    %8 = vector.shape_cast %7 : vector<16x16x4xbf16> to vector<256x4xbf16>
    %c0_12 = arith.constant 0 : index
    %c0_13 = arith.constant 0 : index
    %c0_14 = arith.constant 0 : index
    %9 = vector.load %arg2[%c0_12, %c0_13, %c0_14] : memref<9x4x48xbf16, #tpu.memory_space<vmem>>, vector<1x4x48xbf16>
    %10 = vector.shape_cast %9 : vector<1x4x48xbf16> to vector<4x48xbf16>
    %cst_15 = arith.constant dense<0.000000e+00> : vector<256x48xf32>
    %11 = tpu.matmul %8, %10, %cst_15 {dimension_numbers = #tpu.dot_dimension_numbers<[1], [0], [0], [1], [0, 0, 1, 1], [], []>} : vector<256x4xbf16>, vector<4x48xbf16>, vector<256x48xf32> -> vector<256x48xf32>
    %12 = arith.addf %6, %11 : vector<256x48xf32>
    %13 = vector.extract_strided_slice %5 {offsets = [0, 1, 0], sizes = [16, 16, 4], strides = [1, 1, 1]} : vector<18x18x4xbf16> to vector<16x16x4xbf16>
    %14 = vector.shape_cast %13 : vector<16x16x4xbf16> to vector<256x4xbf16>
    %c1_16 = arith.constant 1 : index
    %c0_17 = arith.constant 0 : index
    %c0_18 = arith.constant 0 : index
    %15 = vector.load %arg2[%c1_16, %c0_17, %c0_18] : memref<9x4x48xbf16, #tpu.memory_space<vmem>>, vector<1x4x48xbf16>
    %16 = vector.shape_cast %15 : vector<1x4x48xbf16> to vector<4x48xbf16>
    %cst_19 = arith.constant dense<0.000000e+00> : vector<256x48xf32>
    %17 = tpu.matmul %14, %16, %cst_19 {dimension_numbers = #tpu.dot_dimension_numbers<[1], [0], [0], [1], [0, 0, 1, 1], [], []>} : vector<256x4xbf16>, vector<4x48xbf16>, vector<256x48xf32> -> vector<256x48xf32>
    %18 = arith.addf %12, %17 : vector<256x48xf32>
    %19 = vector.extract_strided_slice %5 {offsets = [0, 2, 0], sizes = [16, 16, 4], strides = [1, 1, 1]} : vector<18x18x4xbf16> to vector<16x16x4xbf16>
    %20 = vector.shape_cast %19 : vector<16x16x4xbf16> to vector<256x4xbf16>
    %c2 = arith.constant 2 : index
    %c0_20 = arith.constant 0 : index
    %c0_21 = arith.constant 0 : index
    %21 = vector.load %arg2[%c2, %c0_20, %c0_21] : memref<9x4x48xbf16, #tpu.memory_space<vmem>>, vector<1x4x48xbf16>
    %22 = vector.shape_cast %21 : vector<1x4x48xbf16> to vector<4x48xbf16>
    %cst_22 = arith.constant dense<0.000000e+00> : vector<256x48xf32>
    %23 = tpu.matmul %20, %22, %cst_22 {dimension_numbers = #tpu.dot_dimension_numbers<[1], [0], [0], [1], [0, 0, 1, 1], [], []>} : vector<256x4xbf16>, vector<4x48xbf16>, vector<256x48xf32> -> vector<256x48xf32>
    %24 = arith.addf %18, %23 : vector<256x48xf32>
    %25 = vector.extract_strided_slice %5 {offsets = [1, 0, 0], sizes = [16, 16, 4], strides = [1, 1, 1]} : vector<18x18x4xbf16> to vector<16x16x4xbf16>
    %26 = vector.shape_cast %25 : vector<16x16x4xbf16> to vector<256x4xbf16>
    %c3 = arith.constant 3 : index
    %c0_23 = arith.constant 0 : index
    %c0_24 = arith.constant 0 : index
    %27 = vector.load %arg2[%c3, %c0_23, %c0_24] : memref<9x4x48xbf16, #tpu.memory_space<vmem>>, vector<1x4x48xbf16>
    %28 = vector.shape_cast %27 : vector<1x4x48xbf16> to vector<4x48xbf16>
    %cst_25 = arith.constant dense<0.000000e+00> : vector<256x48xf32>
    %29 = tpu.matmul %26, %28, %cst_25 {dimension_numbers = #tpu.dot_dimension_numbers<[1], [0], [0], [1], [0, 0, 1, 1], [], []>} : vector<256x4xbf16>, vector<4x48xbf16>, vector<256x48xf32> -> vector<256x48xf32>
    %30 = arith.addf %24, %29 : vector<256x48xf32>
    %31 = vector.extract_strided_slice %5 {offsets = [1, 1, 0], sizes = [16, 16, 4], strides = [1, 1, 1]} : vector<18x18x4xbf16> to vector<16x16x4xbf16>
    %32 = vector.shape_cast %31 : vector<16x16x4xbf16> to vector<256x4xbf16>
    %c4 = arith.constant 4 : index
    %c0_26 = arith.constant 0 : index
    %c0_27 = arith.constant 0 : index
    %33 = vector.load %arg2[%c4, %c0_26, %c0_27] : memref<9x4x48xbf16, #tpu.memory_space<vmem>>, vector<1x4x48xbf16>
    %34 = vector.shape_cast %33 : vector<1x4x48xbf16> to vector<4x48xbf16>
    %cst_28 = arith.constant dense<0.000000e+00> : vector<256x48xf32>
    %35 = tpu.matmul %32, %34, %cst_28 {dimension_numbers = #tpu.dot_dimension_numbers<[1], [0], [0], [1], [0, 0, 1, 1], [], []>} : vector<256x4xbf16>, vector<4x48xbf16>, vector<256x48xf32> -> vector<256x48xf32>
    %36 = arith.addf %30, %35 : vector<256x48xf32>
    %37 = vector.extract_strided_slice %5 {offsets = [1, 2, 0], sizes = [16, 16, 4], strides = [1, 1, 1]} : vector<18x18x4xbf16> to vector<16x16x4xbf16>
    %38 = vector.shape_cast %37 : vector<16x16x4xbf16> to vector<256x4xbf16>
    %c5 = arith.constant 5 : index
    %c0_29 = arith.constant 0 : index
    %c0_30 = arith.constant 0 : index
    %39 = vector.load %arg2[%c5, %c0_29, %c0_30] : memref<9x4x48xbf16, #tpu.memory_space<vmem>>, vector<1x4x48xbf16>
    %40 = vector.shape_cast %39 : vector<1x4x48xbf16> to vector<4x48xbf16>
    %cst_31 = arith.constant dense<0.000000e+00> : vector<256x48xf32>
    %41 = tpu.matmul %38, %40, %cst_31 {dimension_numbers = #tpu.dot_dimension_numbers<[1], [0], [0], [1], [0, 0, 1, 1], [], []>} : vector<256x4xbf16>, vector<4x48xbf16>, vector<256x48xf32> -> vector<256x48xf32>
    %42 = arith.addf %36, %41 : vector<256x48xf32>
    %43 = vector.extract_strided_slice %5 {offsets = [2, 0, 0], sizes = [16, 16, 4], strides = [1, 1, 1]} : vector<18x18x4xbf16> to vector<16x16x4xbf16>
    %44 = vector.shape_cast %43 : vector<16x16x4xbf16> to vector<256x4xbf16>
    %c6 = arith.constant 6 : index
    %c0_32 = arith.constant 0 : index
    %c0_33 = arith.constant 0 : index
    %45 = vector.load %arg2[%c6, %c0_32, %c0_33] : memref<9x4x48xbf16, #tpu.memory_space<vmem>>, vector<1x4x48xbf16>
    %46 = vector.shape_cast %45 : vector<1x4x48xbf16> to vector<4x48xbf16>
    %cst_34 = arith.constant dense<0.000000e+00> : vector<256x48xf32>
    %47 = tpu.matmul %44, %46, %cst_34 {dimension_numbers = #tpu.dot_dimension_numbers<[1], [0], [0], [1], [0, 0, 1, 1], [], []>} : vector<256x4xbf16>, vector<4x48xbf16>, vector<256x48xf32> -> vector<256x48xf32>
    %48 = arith.addf %42, %47 : vector<256x48xf32>
    %49 = vector.extract_strided_slice %5 {offsets = [2, 1, 0], sizes = [16, 16, 4], strides = [1, 1, 1]} : vector<18x18x4xbf16> to vector<16x16x4xbf16>
    %50 = vector.shape_cast %49 : vector<16x16x4xbf16> to vector<256x4xbf16>
    %c7 = arith.constant 7 : index
    %c0_35 = arith.constant 0 : index
    %c0_36 = arith.constant 0 : index
    %51 = vector.load %arg2[%c7, %c0_35, %c0_36] : memref<9x4x48xbf16, #tpu.memory_space<vmem>>, vector<1x4x48xbf16>
    %52 = vector.shape_cast %51 : vector<1x4x48xbf16> to vector<4x48xbf16>
    %cst_37 = arith.constant dense<0.000000e+00> : vector<256x48xf32>
    %53 = tpu.matmul %50, %52, %cst_37 {dimension_numbers = #tpu.dot_dimension_numbers<[1], [0], [0], [1], [0, 0, 1, 1], [], []>} : vector<256x4xbf16>, vector<4x48xbf16>, vector<256x48xf32> -> vector<256x48xf32>
    %54 = arith.addf %48, %53 : vector<256x48xf32>
    %55 = vector.extract_strided_slice %5 {offsets = [2, 2, 0], sizes = [16, 16, 4], strides = [1, 1, 1]} : vector<18x18x4xbf16> to vector<16x16x4xbf16>
    %56 = vector.shape_cast %55 : vector<16x16x4xbf16> to vector<256x4xbf16>
    %c8 = arith.constant 8 : index
    %c0_38 = arith.constant 0 : index
    %c0_39 = arith.constant 0 : index
    %57 = vector.load %arg2[%c8, %c0_38, %c0_39] : memref<9x4x48xbf16, #tpu.memory_space<vmem>>, vector<1x4x48xbf16>
    %58 = vector.shape_cast %57 : vector<1x4x48xbf16> to vector<4x48xbf16>
    %cst_40 = arith.constant dense<0.000000e+00> : vector<256x48xf32>
    %59 = tpu.matmul %56, %58, %cst_40 {dimension_numbers = #tpu.dot_dimension_numbers<[1], [0], [0], [1], [0, 0, 1, 1], [], []>} : vector<256x4xbf16>, vector<4x48xbf16>, vector<256x48xf32> -> vector<256x48xf32>
    %60 = arith.addf %54, %59 : vector<256x48xf32>
    %61 = vector.extract_strided_slice %60 {offsets = [0, 0], sizes = [256, 16], strides = [1, 1]} : vector<256x48xf32> to vector<256x16xf32>
    %c0_41 = arith.constant 0 : index
    %c0_42 = arith.constant 0 : index
    %62 = vector.load %arg3[%c0_41, %c0_42] : memref<1x16xf32, #tpu.memory_space<vmem>>, vector<1x16xf32>
    %63 = vector.broadcast %62 : vector<1x16xf32> to vector<256x16xf32>
    %64 = arith.addf %61, %63 : vector<256x16xf32>
    %cst_43 = arith.constant 0.000000e+00 : f32
    %65 = vector.broadcast %cst_43 : f32 to vector<256x16xf32>
    %66 = arith.cmpf oge, %64, %65 : vector<256x16xf32>
    %cst_44 = arith.constant 0.00999999977 : f32
    %67 = vector.broadcast %cst_44 : f32 to vector<256x16xf32>
    %68 = arith.mulf %67, %64 : vector<256x16xf32>
    %69 = arith.select %66, %64, %68 : vector<256x16xi1>, vector<256x16xf32>
    %70 = vector.extract_strided_slice %60 {offsets = [0, 16], sizes = [256, 32], strides = [1, 1]} : vector<256x48xf32> to vector<256x32xf32>
    %cst_45 = arith.constant 0.000000e+00 : bf16
    %71 = vector.broadcast %cst_45 : bf16 to vector<18x18x16xbf16>
    %c0_46 = arith.constant 0 : index
    %c0_47 = arith.constant 0 : index
    %c0_48 = arith.constant 0 : index
    %72 = vector.load %arg8[%c0_46, %c0_47, %c0_48] : memref<18x18x16xbf16, #tpu.memory_space<vmem>>, vector<18x18x16xbf16>
    tpu.vector_store %arg8[%c0_46, %c0_47, %c0_48], %71 {strides = array<i32>} : memref<18x18x16xbf16, #tpu.memory_space<vmem>>, vector<18x18x16xbf16>,
    %73 = vector.shape_cast %69 : vector<256x16xf32> to vector<16x16x16xf32>
    %74 = arith.truncf %73 : vector<16x16x16xf32> to vector<16x16x16xbf16>
    %c1_49 = arith.constant 1 : index
    %c1_50 = arith.constant 1 : index
    %c0_51 = arith.constant 0 : index
    %75 = vector.load %arg8[%c1_49, %c1_50, %c0_51] : memref<18x18x16xbf16, #tpu.memory_space<vmem>>, vector<16x16x16xbf16>
    tpu.vector_store %arg8[%c1_49, %c1_50, %c0_51], %74 {strides = array<i32>} : memref<18x18x16xbf16, #tpu.memory_space<vmem>>, vector<16x16x16xbf16>,
    %c0_52 = arith.constant 0 : index
    %c0_53 = arith.constant 0 : index
    %c0_54 = arith.constant 0 : index
    %76 = vector.load %arg8[%c0_52, %c0_53, %c0_54] : memref<18x18x16xbf16, #tpu.memory_space<vmem>>, vector<18x18x16xbf16>
    %77 = vector.extract_strided_slice %76 {offsets = [0, 0, 0], sizes = [16, 16, 16], strides = [1, 1, 1]} : vector<18x18x16xbf16> to vector<16x16x16xbf16>
    %78 = vector.shape_cast %77 : vector<16x16x16xbf16> to vector<256x16xbf16>
    %c0_55 = arith.constant 0 : index
    %c0_56 = arith.constant 0 : index
    %c0_57 = arith.constant 0 : index
    %79 = vector.load %arg4[%c0_55, %c0_56, %c0_57] : memref<9x16x32xbf16, #tpu.memory_space<vmem>>, vector<1x16x32xbf16>
    %80 = vector.shape_cast %79 : vector<1x16x32xbf16> to vector<16x32xbf16>
    %cst_58 = arith.constant dense<0.000000e+00> : vector<256x32xf32>
    %81 = tpu.matmul %78, %80, %cst_58 {dimension_numbers = #tpu.dot_dimension_numbers<[1], [0], [0], [1], [0, 0, 1, 1], [], []>} : vector<256x16xbf16>, vector<16x32xbf16>, vector<256x32xf32> -> vector<256x32xf32>
    %82 = arith.addf %70, %81 : vector<256x32xf32>
    %83 = vector.extract_strided_slice %76 {offsets = [0, 1, 0], sizes = [16, 16, 16], strides = [1, 1, 1]} : vector<18x18x16xbf16> to vector<16x16x16xbf16>
    %84 = vector.shape_cast %83 : vector<16x16x16xbf16> to vector<256x16xbf16>
    %c1_59 = arith.constant 1 : index
    %c0_60 = arith.constant 0 : index
    %c0_61 = arith.constant 0 : index
    %85 = vector.load %arg4[%c1_59, %c0_60, %c0_61] : memref<9x16x32xbf16, #tpu.memory_space<vmem>>, vector<1x16x32xbf16>
    %86 = vector.shape_cast %85 : vector<1x16x32xbf16> to vector<16x32xbf16>
    %cst_62 = arith.constant dense<0.000000e+00> : vector<256x32xf32>
    %87 = tpu.matmul %84, %86, %cst_62 {dimension_numbers = #tpu.dot_dimension_numbers<[1], [0], [0], [1], [0, 0, 1, 1], [], []>} : vector<256x16xbf16>, vector<16x32xbf16>, vector<256x32xf32> -> vector<256x32xf32>
    %88 = arith.addf %82, %87 : vector<256x32xf32>
    %89 = vector.extract_strided_slice %76 {offsets = [0, 2, 0], sizes = [16, 16, 16], strides = [1, 1, 1]} : vector<18x18x16xbf16> to vector<16x16x16xbf16>
    %90 = vector.shape_cast %89 : vector<16x16x16xbf16> to vector<256x16xbf16>
    %c2_63 = arith.constant 2 : index
    %c0_64 = arith.constant 0 : index
    %c0_65 = arith.constant 0 : index
    %91 = vector.load %arg4[%c2_63, %c0_64, %c0_65] : memref<9x16x32xbf16, #tpu.memory_space<vmem>>, vector<1x16x32xbf16>
    %92 = vector.shape_cast %91 : vector<1x16x32xbf16> to vector<16x32xbf16>
    %cst_66 = arith.constant dense<0.000000e+00> : vector<256x32xf32>
    %93 = tpu.matmul %90, %92, %cst_66 {dimension_numbers = #tpu.dot_dimension_numbers<[1], [0], [0], [1], [0, 0, 1, 1], [], []>} : vector<256x16xbf16>, vector<16x32xbf16>, vector<256x32xf32> -> vector<256x32xf32>
    %94 = arith.addf %88, %93 : vector<256x32xf32>
    %95 = vector.extract_strided_slice %76 {offsets = [1, 0, 0], sizes = [16, 16, 16], strides = [1, 1, 1]} : vector<18x18x16xbf16> to vector<16x16x16xbf16>
    %96 = vector.shape_cast %95 : vector<16x16x16xbf16> to vector<256x16xbf16>
    %c3_67 = arith.constant 3 : index
    %c0_68 = arith.constant 0 : index
    %c0_69 = arith.constant 0 : index
    %97 = vector.load %arg4[%c3_67, %c0_68, %c0_69] : memref<9x16x32xbf16, #tpu.memory_space<vmem>>, vector<1x16x32xbf16>
    %98 = vector.shape_cast %97 : vector<1x16x32xbf16> to vector<16x32xbf16>
    %cst_70 = arith.constant dense<0.000000e+00> : vector<256x32xf32>
    %99 = tpu.matmul %96, %98, %cst_70 {dimension_numbers = #tpu.dot_dimension_numbers<[1], [0], [0], [1], [0, 0, 1, 1], [], []>} : vector<256x16xbf16>, vector<16x32xbf16>, vector<256x32xf32> -> vector<256x32xf32>
    %100 = arith.addf %94, %99 : vector<256x32xf32>
    %101 = vector.extract_strided_slice %76 {offsets = [1, 1, 0], sizes = [16, 16, 16], strides = [1, 1, 1]} : vector<18x18x16xbf16> to vector<16x16x16xbf16>
    %102 = vector.shape_cast %101 : vector<16x16x16xbf16> to vector<256x16xbf16>
    %c4_71 = arith.constant 4 : index
    %c0_72 = arith.constant 0 : index
    %c0_73 = arith.constant 0 : index
    %103 = vector.load %arg4[%c4_71, %c0_72, %c0_73] : memref<9x16x32xbf16, #tpu.memory_space<vmem>>, vector<1x16x32xbf16>
    %104 = vector.shape_cast %103 : vector<1x16x32xbf16> to vector<16x32xbf16>
    %cst_74 = arith.constant dense<0.000000e+00> : vector<256x32xf32>
    %105 = tpu.matmul %102, %104, %cst_74 {dimension_numbers = #tpu.dot_dimension_numbers<[1], [0], [0], [1], [0, 0, 1, 1], [], []>} : vector<256x16xbf16>, vector<16x32xbf16>, vector<256x32xf32> -> vector<256x32xf32>
    %106 = arith.addf %100, %105 : vector<256x32xf32>
    %107 = vector.extract_strided_slice %76 {offsets = [1, 2, 0], sizes = [16, 16, 16], strides = [1, 1, 1]} : vector<18x18x16xbf16> to vector<16x16x16xbf16>
    %108 = vector.shape_cast %107 : vector<16x16x16xbf16> to vector<256x16xbf16>
    %c5_75 = arith.constant 5 : index
    %c0_76 = arith.constant 0 : index
    %c0_77 = arith.constant 0 : index
    %109 = vector.load %arg4[%c5_75, %c0_76, %c0_77] : memref<9x16x32xbf16, #tpu.memory_space<vmem>>, vector<1x16x32xbf16>
    %110 = vector.shape_cast %109 : vector<1x16x32xbf16> to vector<16x32xbf16>
    %cst_78 = arith.constant dense<0.000000e+00> : vector<256x32xf32>
    %111 = tpu.matmul %108, %110, %cst_78 {dimension_numbers = #tpu.dot_dimension_numbers<[1], [0], [0], [1], [0, 0, 1, 1], [], []>} : vector<256x16xbf16>, vector<16x32xbf16>, vector<256x32xf32> -> vector<256x32xf32>
    %112 = arith.addf %106, %111 : vector<256x32xf32>
    %113 = vector.extract_strided_slice %76 {offsets = [2, 0, 0], sizes = [16, 16, 16], strides = [1, 1, 1]} : vector<18x18x16xbf16> to vector<16x16x16xbf16>
    %114 = vector.shape_cast %113 : vector<16x16x16xbf16> to vector<256x16xbf16>
    %c6_79 = arith.constant 6 : index
    %c0_80 = arith.constant 0 : index
    %c0_81 = arith.constant 0 : index
    %115 = vector.load %arg4[%c6_79, %c0_80, %c0_81] : memref<9x16x32xbf16, #tpu.memory_space<vmem>>, vector<1x16x32xbf16>
    %116 = vector.shape_cast %115 : vector<1x16x32xbf16> to vector<16x32xbf16>
    %cst_82 = arith.constant dense<0.000000e+00> : vector<256x32xf32>
    %117 = tpu.matmul %114, %116, %cst_82 {dimension_numbers = #tpu.dot_dimension_numbers<[1], [0], [0], [1], [0, 0, 1, 1], [], []>} : vector<256x16xbf16>, vector<16x32xbf16>, vector<256x32xf32> -> vector<256x32xf32>
    %118 = arith.addf %112, %117 : vector<256x32xf32>
    %119 = vector.extract_strided_slice %76 {offsets = [2, 1, 0], sizes = [16, 16, 16], strides = [1, 1, 1]} : vector<18x18x16xbf16> to vector<16x16x16xbf16>
    %120 = vector.shape_cast %119 : vector<16x16x16xbf16> to vector<256x16xbf16>
    %c7_83 = arith.constant 7 : index
    %c0_84 = arith.constant 0 : index
    %c0_85 = arith.constant 0 : index
    %121 = vector.load %arg4[%c7_83, %c0_84, %c0_85] : memref<9x16x32xbf16, #tpu.memory_space<vmem>>, vector<1x16x32xbf16>
    %122 = vector.shape_cast %121 : vector<1x16x32xbf16> to vector<16x32xbf16>
    %cst_86 = arith.constant dense<0.000000e+00> : vector<256x32xf32>
    %123 = tpu.matmul %120, %122, %cst_86 {dimension_numbers = #tpu.dot_dimension_numbers<[1], [0], [0], [1], [0, 0, 1, 1], [], []>} : vector<256x16xbf16>, vector<16x32xbf16>, vector<256x32xf32> -> vector<256x32xf32>
    %124 = arith.addf %118, %123 : vector<256x32xf32>
    %125 = vector.extract_strided_slice %76 {offsets = [2, 2, 0], sizes = [16, 16, 16], strides = [1, 1, 1]} : vector<18x18x16xbf16> to vector<16x16x16xbf16>
    %126 = vector.shape_cast %125 : vector<16x16x16xbf16> to vector<256x16xbf16>
    %c8_87 = arith.constant 8 : index
    %c0_88 = arith.constant 0 : index
    %c0_89 = arith.constant 0 : index
    %127 = vector.load %arg4[%c8_87, %c0_88, %c0_89] : memref<9x16x32xbf16, #tpu.memory_space<vmem>>, vector<1x16x32xbf16>
    %128 = vector.shape_cast %127 : vector<1x16x32xbf16> to vector<16x32xbf16>
    %cst_90 = arith.constant dense<0.000000e+00> : vector<256x32xf32>
    %129 = tpu.matmul %126, %128, %cst_90 {dimension_numbers = #tpu.dot_dimension_numbers<[1], [0], [0], [1], [0, 0, 1, 1], [], []>} : vector<256x16xbf16>, vector<16x32xbf16>, vector<256x32xf32> -> vector<256x32xf32>
    %130 = arith.addf %124, %129 : vector<256x32xf32>
    %c0_91 = arith.constant 0 : index
    %c0_92 = arith.constant 0 : index
    %131 = vector.load %arg5[%c0_91, %c0_92] : memref<1x32xf32, #tpu.memory_space<vmem>>, vector<1x32xf32>
    %132 = vector.broadcast %131 : vector<1x32xf32> to vector<256x32xf32>
    %133 = arith.addf %130, %132 : vector<256x32xf32>
    %134 = vector.shape_cast %133 : vector<256x32xf32> to vector<1x16x16x32xf32>
    %c0_93 = arith.constant 0 : index
    %c0_94 = arith.constant 0 : index
    %c0_95 = arith.constant 0 : index
    %c0_96 = arith.constant 0 : index
    %135 = vector.load %arg6[%c0_93, %c0_94, %c0_95, %c0_96] : memref<1x16x16x32xf32, #tpu.memory_space<vmem>>, vector<1x16x16x32xf32>
    tpu.vector_store %arg6[%c0_93, %c0_94, %c0_95, %c0_96], %134 {strides = array<i32>} : memref<1x16x16x32xf32, #tpu.memory_space<vmem>>, vector<1x16x16x32xf32>,
    return
  }
  func.func @transform_0(%arg0: i32) -> (i32, i32, i32, i32) {
    %c0_i32 = arith.constant 0 : i32
    %c0_i32_0 = arith.constant 0 : i32
    %c0_i32_1 = arith.constant 0 : i32
    %c0_i32_2 = arith.constant 0 : i32
    return %arg0, %c0_i32, %c0_i32_0, %c0_i32_1 : i32, i32, i32, i32
  }
  func.func @transform_1(%arg0: i32) -> (i32, i32, i32) {
    %c0_i32 = arith.constant 0 : i32
    %c0_i32_0 = arith.constant 0 : i32
    %c0_i32_1 = arith.constant 0 : i32
    %c0_i32_2 = arith.constant 0 : i32
    return %c0_i32, %c0_i32_0, %c0_i32_1 : i32, i32, i32
  }
  func.func @transform_2(%arg0: i32) -> (i32, i32) {
    %c0_i32 = arith.constant 0 : i32
    %c0_i32_0 = arith.constant 0 : i32
    %c0_i32_1 = arith.constant 0 : i32
    return %c0_i32, %c0_i32_0 : i32, i32
  }
  func.func @transform_3(%arg0: i32) -> (i32, i32, i32) {
    %c0_i32 = arith.constant 0 : i32
    %c0_i32_0 = arith.constant 0 : i32
    %c0_i32_1 = arith.constant 0 : i32
    %c0_i32_2 = arith.constant 0 : i32
    return %c0_i32, %c0_i32_0, %c0_i32_1 : i32, i32, i32
  }
  func.func @transform_4(%arg0: i32) -> (i32, i32) {
    %c0_i32 = arith.constant 0 : i32
    %c0_i32_0 = arith.constant 0 : i32
    %c0_i32_1 = arith.constant 0 : i32
    return %c0_i32, %c0_i32_0 : i32, i32
  }
  func.func @transform_5(%arg0: i32) -> (i32, i32, i32, i32) {
    %c0_i32 = arith.constant 0 : i32
    %c0_i32_0 = arith.constant 0 : i32
    %c0_i32_1 = arith.constant 0 : i32
    %c0_i32_2 = arith.constant 0 : i32
    return %arg0, %c0_i32, %c0_i32_0, %c0_i32_1 : i32, i32, i32, i32
  }
}

</mosaic_0001>

<llo_original>
// kernel: residual_block_forward.1
$region0: #{residual_block_forward.1}
  #allocation0 [shape = 'u32[]', space=smem, size = 0x4, offset = 0x4, fixed_abs, tag = 'smem constant byte address 0x4 - core index']
  #allocation1 [shape = 'u32[72,128]{1,0:T(1,128)}', space=vmem, size = 0x9000, scoped, tag = 'internal scratch']
  #allocation2 [shape = 'bf16[18,18,4]{2,1,0:T(8,128)(2,1)}', space=vmem, size = 0x1b000, scoped, tag = 'scratch operand']
  #allocation3 [shape = 'bf16[18,18,16]{2,1,0:T(8,128)(2,1)}', space=vmem, size = 0x1b000, scoped, tag = 'scratch operand']
  %s0 = inlined_call_operand.vmem [shape: bf16[2,16,16,4], index: 0, kind: input, shape index: {}]
  %s1 = inlined_call_operand.vmem [shape: bf16[9,4,48], index: 1, kind: input, shape index: {}]
  %s2 = inlined_call_operand.vmem [shape: f32[1,16], index: 2, kind: input, shape index: {}]
  %s3 = inlined_call_operand.vmem [shape: bf16[9,16,32], index: 3, kind: input, shape index: {}]
  %s4 = inlined_call_operand.vmem [shape: f32[1,32], index: 4, kind: input, shape index: {}]
  %s5 = inlined_call_operand.hbm [shape: f32[2,16,16,32], index: 5, kind: output, shape index: {}]
  %s6 = sld [smem:[#allocation0]]
  $region53: #{residual_block_forward.1} parent=0
    _
  %s8 = ssub.s32 1, %s6
  %s9 = scalar_select 0, %s8, %s6
  $region1: #{residual_block_forward.1} parent=0
    #allocation4 [shape = 'u8[262144]{0}', space=vmem, size = 0x40000, scoped, tag = 'output window, operand 0']
    #allocation5 [shape = 's32[2]{0}', space=sflag, size = 0x8, scoped, tag = 'scoped memory for residual_block_forward.1']
    %10 = vsyncpa [#allocation5], 0
    %s11 = scalar_lea.sflag [#allocation5], 1
    %12 = vsyncpa %s11, 0
    loop: start=0, step=1, limit=4
    $region2: #{residual_block_forward.1} parent=1 // loop_pre_header
      _
    $region3: #{residual_block_forward.1} parent=1 // loop_header
      %s14 = sphi 0, %s18
      %p15 = scmp.ge.s32.totalorder %s14, 4
      %s24 = sphi 0, %s26
      %s27 = sphi 0, %s24
      %s28 = sphi 0, %s27
      %s44 = sphi 0, %s28
      %s48 = sphi 0, %s48
      %s50 = sphi 0, %s48
      %s51 = sphi 0, %s50
      %s65 = sphi 0, %s51
      %s69 = sphi 0, %s69
      %s71 = sphi 0, %s69
      %s72 = sphi 0, %s71
      %s86 = sphi 0, %s72
      %s90 = sphi 0, %s90
      %s92 = sphi 0, %s90
      %s93 = sphi 0, %s92
      %s107 = sphi 0, %s93
      %s111 = sphi 0, %s111
      %s113 = sphi 0, %s111
      %s114 = sphi 0, %s113
      %s128 = sphi 0, %s114
      %s134 = sphi 0, %s136
      %s137 = sphi 0, %s134
      %s138 = sphi 0, %s137
      %s154 = sphi 0, %s138
    $region4: #{residual_block_forward.1} parent=1 // loop_header_branch
      %17 = sbr.rel (%p15) target = $region8
    $region5: #{residual_block_forward.1} parent=1 // loop_body
      %s19 = ssub.s32 %s14, 1
      %s20 = ssub.s32 %s14, 2
      %s21 = sadd.s32 %s14, 1
      %s22 = ssub.s32 %s14, %s21
      %p23 = scmp.eq.s32.totalorder %s22, 0
      %s25 = sadd.s32 %s24, 1
      %s26 = scalar_select %p23, %s24, %s25
      %p29 = pneg %p23
      %p30 = scmp.eq.s32.totalorder %s14, 1
      %p31 = por %p29, %p30
      %p32 = scmp.ne.s32.totalorder %s24, %s27
      %p33 = scmp.eq.s32.totalorder %s14, 0
      %p34 = por %p32, %p33
      %p35 = scmp.ne.s32.totalorder %s24, %s27
      %p36 = scmp.eq.s32.totalorder %s19, 1
      %p37 = por %p35, %p36
      %p38 = scmp.ne.s32.totalorder %s27, %s28
      %p39 = scmp.eq.s32.totalorder %s19, 0
      %p40 = por %p38, %p39
      %p41 = scmp.ne.s32.totalorder %s27, %s28
      %p42 = scmp.eq.s32.totalorder %s20, 1
      %p43 = por %p41, %p42
      %p45 = scmp.ne.s32.totalorder %s28, %s44
      %p46 = scmp.eq.s32.totalorder %s20, 0
      %p47 = por %p45, %p46
      %s49 = sadd.s32 %s48, 1
      %p52 = scmp.eq.s32.totalorder %s14, 1
      %p53 = scmp.ne.s32.totalorder %s48, %s50
      %p54 = scmp.eq.s32.totalorder %s14, 0
      %p55 = por %p53, %p54
      %p56 = scmp.ne.s32.totalorder %s48, %s50
      %p57 = scmp.eq.s32.totalorder %s19, 1
      %p58 = por %p56, %p57
      %p59 = scmp.ne.s32.totalorder %s50, %s51
      %p60 = scmp.eq.s32.totalorder %s19, 0
      %p61 = por %p59, %p60
      %p62 = scmp.ne.s32.totalorder %s50, %s51
      %p63 = scmp.eq.s32.totalorder %s20, 1
      %p64 = por %p62, %p63
      %p66 = scmp.ne.s32.totalorder %s51, %s65
      %p67 = scmp.eq.s32.totalorder %s20, 0
      %p68 = por %p66, %p67
      %s70 = sadd.s32 %s69, 1
      %p73 = scmp.eq.s32.totalorder %s14, 1
      %p74 = scmp.ne.s32.totalorder %s69, %s71
      %p75 = scmp.eq.s32.totalorder %s14, 0
      %p76 = por %p74, %p75
      %p77 = scmp.ne.s32.totalorder %s69, %s71
      %p78 = scmp.eq.s32.totalorder %s19, 1
      %p79 = por %p77, %p78
      %p80 = scmp.ne.s32.totalorder %s71, %s72
      %p81 = scmp.eq.s32.totalorder %s19, 0
      %p82 = por %p80, %p81
      %p83 = scmp.ne.s32.totalorder %s71, %s72
      %p84 = scmp.eq.s32.totalorder %s20, 1
      %p85 = por %p83, %p84
      %p87 = scmp.ne.s32.totalorder %s72, %s86
      %p88 = scmp.eq.s32.totalorder %s20, 0
      %p89 = por %p87, %p88
      %s91 = sadd.s32 %s90, 1
      %p94 = scmp.eq.s32.totalorder %s14, 1
      %p95 = scmp.ne.s32.totalorder %s90, %s92
      %p96 = scmp.eq.s32.totalorder %s14, 0
      %p97 = por %p95, %p96
      %p98 = scmp.ne.s32.totalorder %s90, %s92
      %p99 = scmp.eq.s32.totalorder %s19, 1
      %p100 = por %p98, %p99
      %p101 = scmp.ne.s32.totalorder %s92, %s93
      %p102 = scmp.eq.s32.totalorder %s19, 0
      %p103 = por %p101, %p102
      %p104 = scmp.ne.s32.totalorder %s92, %s93
      %p105 = scmp.eq.s32.totalorder %s20, 1
      %p106 = por %p104, %p105
      %p108 = scmp.ne.s32.totalorder %s93, %s107
      %p109 = scmp.eq.s32.totalorder %s20, 0
      %p110 = por %p108, %p109
      %s112 = sadd.s32 %s111, 1
      %p115 = scmp.eq.s32.totalorder %s14, 1
      %p116 = scmp.ne.s32.totalorder %s111, %s113
      %p117 = scmp.eq.s32.totalorder %s14, 0
      %p118 = por %p116, %p117
      %p119 = scmp.ne.s32.totalorder %s111, %s113
      %p120 = scmp.eq.s32.totalorder %s19, 1
      %p121 = por %p119, %p120
      %p122 = scmp.ne.s32.totalorder %s113, %s114
      %p123 = scmp.eq.s32.totalorder %s19, 0
      %p124 = por %p122, %p123
      %p125 = scmp.ne.s32.totalorder %s113, %s114
      %p126 = scmp.eq.s32.totalorder %s20, 1
      %p127 = por %p125, %p126
      %p129 = scmp.ne.s32.totalorder %s114, %s128
      %p130 = scmp.eq.s32.totalorder %s20, 0
      %p131 = por %p129, %p130
      %s132 = ssub.s32 %s14, %s21
      %p133 = scmp.eq.s32.totalorder %s132, 0
      %s135 = sadd.s32 %s134, 1
      %s136 = scalar_select %p133, %s134, %s135
      %p139 = pneg %p133
      %p140 = scmp.eq.s32.totalorder %s14, 1
      %p141 = por %p139, %p140
      %p142 = scmp.ne.s32.totalorder %s134, %s137
      %p143 = scmp.eq.s32.totalorder %s14, 0
      %p144 = por %p142, %p143
      %p145 = scmp.ne.s32.totalorder %s134, %s137
      %p146 = scmp.eq.s32.totalorder %s19, 1
      %p147 = por %p145, %p146
      %p148 = scmp.ne.s32.totalorder %s137, %s138
      %p149 = scmp.eq.s32.totalorder %s19, 0
      %p150 = por %p148, %p149
      %p151 = scmp.ne.s32.totalorder %s137, %s138
      %p152 = scmp.eq.s32.totalorder %s20, 1
      %p153 = por %p151, %p152
      %p155 = scmp.ne.s32.totalorder %s138, %s154
      %p156 = scmp.eq.s32.totalorder %s20, 0
      %p157 = por %p155, %p156
      %p158 = scmp.le.s32.totalorder 1, %s14
      %p159 = scmp.lt.s32.totalorder %s14, 3
      %p160 = pnand %p158, %p159
      %p161 = pneg %p160
      // Predicated region
      $region9: #{residual_block_forward.1} parent=5 // pred_check
        _
      $region10: #{residual_block_forward.1} parent=5 // pred_check_branch
        %163 = sbr.rel (%p160) target = $region12
      $region11: #{residual_block_forward.1} parent=5 // pred_region
        %s164 = ssub.s32 %s14, 1
        // Predicated region
        $region13: #{residual_block_forward.1} parent=11 // pred_check
          %p165 = pneg %p61
        $region14: #{residual_block_forward.1} parent=11 // pred_check_branch
          %167 = sbr.rel (%p165) target = $region16
        $region15: #{residual_block_forward.1} parent=11 // pred_region
          _
        $region16: #{residual_block_forward.1} parent=11 // pred_fallthru
          _
        // Predicated region
        $region17: #{residual_block_forward.1} parent=11 // pred_check
          %p168 = pneg %p82
        $region18: #{residual_block_forward.1} parent=11 // pred_check_branch
          %170 = sbr.rel (%p168) target = $region20
        $region19: #{residual_block_forward.1} parent=11 // pred_region
          _
        $region20: #{residual_block_forward.1} parent=11 // pred_fallthru
          _
        // Predicated region
        $region21: #{residual_block_forward.1} parent=11 // pred_check
          %p171 = pneg %p103
        $region22: #{residual_block_forward.1} parent=11 // pred_check_branch
          %173 = sbr.rel (%p171) target = $region24
        $region23: #{residual_block_forward.1} parent=11 // pred_region
          _
        $region24: #{residual_block_forward.1} parent=11 // pred_fallthru
          _
        // Predicated region
        $region25: #{residual_block_forward.1} parent=11 // pred_check
          %p174 = pneg %p124
        $region26: #{residual_block_forward.1} parent=11 // pred_check_branch
          %176 = sbr.rel (%p174) target = $region28
        $region27: #{residual_block_forward.1} parent=11 // pred_region
          _
        $region28: #{residual_block_forward.1} parent=11 // pred_fallthru
          _
      $region12: #{residual_block_forward.1} parent=5 // pred_fallthru
        _
      %p177 = scmp.lt.s32.totalorder %s14, 2
      // Predicated region
      $region29: #{residual_block_forward.1} parent=5 // pred_check
        %p178 = pneg %p177
      $region30: #{residual_block_forward.1} parent=5 // pred_check_branch
        %180 = sbr.rel (%p178) target = $region32
      $region31: #{residual_block_forward.1} parent=5 // pred_region
        // Predicated region
        $region33: #{residual_block_forward.1} parent=31 // pred_check
          %p181 = pneg %p34
        $region34: #{residual_block_forward.1} parent=31 // pred_check_branch
          %183 = sbr.rel (%p181) target = $region36
        $region35: #{residual_block_forward.1} parent=31 // pred_region
          %p184 = scmp.lt.s32.totalorder %s14, 1
          %s185 = scalar_select %p184, %s14, 1
          %s186 = smul.addr %s185, 32
          %s187 = smul.addr %s186, 4
          %s188 = scalar_lea.vmem %s0, %s187
        $region36: #{residual_block_forward.1} parent=31 // pred_fallthru
          _
      $region32: #{residual_block_forward.1} parent=5 // pred_fallthru
        _
      %p189 = scmp.le.s32.totalorder 1, %s14
      %p190 = scmp.lt.s32.totalorder %s14, 3
      %p191 = pnand %p189, %p190
      %p192 = pneg %p191
      // Predicated region
      $region37: #{residual_block_forward.1} parent=5 // pred_check
        _
      $region38: #{residual_block_forward.1} parent=5 // pred_check_branch
        %194 = sbr.rel (%p191) target = $region40
      $region39: #{residual_block_forward.1} parent=5 // pred_region
        %s195 = ssub.s32 %s14, 1
        %p196 = scmp.lt.s32.totalorder %s19, 1
        %s197 = scalar_select %p196, %s19, 1
        %s198 = smul.addr %s197, 32
        %s199 = smul.addr %s198, 4
        %s200 = scalar_lea.vmem %s0, %s199
        %p201 = pneg %p40
        %p202 = pneg %p37
        %p203 = pneg %p61
        %p204 = pneg %p58
        %p205 = pneg %p82
        %p206 = pneg %p79
        %p207 = pneg %p103
        %p208 = pneg %p100
        %p209 = pneg %p124
        %p210 = pneg %p121
        %p211 = pneg %p150
        %p212 = pneg %p147
        %s213 = sand.u32 %s137, 1
        %s214 = scalar_lea.sflag [#allocation5], %s213
        %s215 = sand.u32 %s137, 1
        %s216 = smul.addr %s215, 256
        %s217 = scalar_lea.vmem [#allocation4], %s216
        %p218 = scmp.lt.s32.totalorder %s19, 1
        %s219 = scalar_select %p218, %s19, 1
        %s220 = smul.addr %s219, 32
        %s221 = smul.addr %s220, 4
        %s222 = scalar_lea.vmem %s0, %s221
        %vm224 = vcmask 27648
        %225 = vst.msk [vmem:[#allocation2] sm:$0xf] %vm224, 0
        %226 = vst.msk [vmem:[#allocation2 + $0x4] sm:$0xf] %vm224, 0
        %vm227 = vcmask 24576
        %228 = vst.msk [vmem:[#allocation2 + $0x8] sm:$0x1] %vm227, 0
        %229 = vst.msk [vmem:[#allocation2 + $0xc] sm:$0xf] %vm224, 0
        %230 = vst.msk [vmem:[#allocation2 + $0x10] sm:$0xf] %vm224, 0
        %231 = vst.msk [vmem:[#allocation2 + $0x14] sm:$0x1] %vm227, 0
        %232 = vst.msk [vmem:[#allocation2 + $0x18] sm:$0xf] %vm224, 0
        %233 = vst.msk [vmem:[#allocation2 + $0x1c] sm:$0xf] %vm224, 0
        %234 = vst.msk [vmem:[#allocation2 + $0x20] sm:$0x1] %vm227, 0
        %235 = vst.msk [vmem:[#allocation2 + $0x24] sm:$0xf] %vm224, 0
        %236 = vst.msk [vmem:[#allocation2 + $0x28] sm:$0xf] %vm224, 0
        %237 = vst.msk [vmem:[#allocation2 + $0x2c] sm:$0x1] %vm227, 0
        %238 = vst.msk [vmem:[#allocation2 + $0x30] sm:$0xf] %vm224, 0
        %239 = vst.msk [vmem:[#allocation2 + $0x34] sm:$0xf] %vm224, 0
        %240 = vst.msk [vmem:[#allocation2 + $0x38] sm:$0x1] %vm227, 0
        %241 = vst.msk [vmem:[#allocation2 + $0x3c] sm:$0xf] %vm224, 0
        %242 = vst.msk [vmem:[#allocation2 + $0x40] sm:$0xf] %vm224, 0
        %243 = vst.msk [vmem:[#allocation2 + $0x44] sm:$0x1] %vm227, 0
        %244 = vst.msk [vmem:[#allocation2 + $0x48] sm:$0xf] %vm224, 0
        %245 = vst.msk [vmem:[#allocation2 + $0x4c] sm:$0xf] %vm224, 0
        %246 = vst.msk [vmem:[#allocation2 + $0x50] sm:$0x1] %vm227, 0
        %247 = vst.msk [vmem:[#allocation2 + $0x54] sm:$0xf] %vm224, 0
        %248 = vst.msk [vmem:[#allocation2 + $0x58] sm:$0xf] %vm224, 0
        %249 = vst.msk [vmem:[#allocation2 + $0x5c] sm:$0x1] %vm227, 0
        %250 = vst.msk [vmem:[#allocation2 + $0x60] sm:$0xf] %vm224, 0
        %251 = vst.msk [vmem:[#allocation2 + $0x64] sm:$0xf] %vm224, 0
        %252 = vst.msk [vmem:[#allocation2 + $0x68] sm:$0x1] %vm227, 0
        %253 = vst.msk [vmem:[#allocation2 + $0x6c] sm:$0xf] %vm224, 0
        %254 = vst.msk [vmem:[#allocation2 + $0x70] sm:$0xf] %vm224, 0
        %255 = vst.msk [vmem:[#allocation2 + $0x74] sm:$0x1] %vm227, 0
        %256 = vst.msk [vmem:[#allocation2 + $0x78] sm:$0xf] %vm224, 0
        %257 = vst.msk [vmem:[#allocation2 + $0x7c] sm:$0xf] %vm224, 0
        %258 = vst.msk [vmem:[#allocation2 + $0x80] sm:$0x1] %vm227, 0
        %259 = vst.msk [vmem:[#allocation2 + $0x84] sm:$0xf] %vm224, 0
        %260 = vst.msk [vmem:[#allocation2 + $0x88] sm:$0xf] %vm224, 0
        %261 = vst.msk [vmem:[#allocation2 + $0x8c] sm:$0x1] %vm227, 0
        %262 = vst.msk [vmem:[#allocation2 + $0x90] sm:$0xf] %vm224, 0
        %263 = vst.msk [vmem:[#allocation2 + $0x94] sm:$0xf] %vm224, 0
        %264 = vst.msk [vmem:[#allocation2 + $0x98] sm:$0x1] %vm227, 0
        %265 = vst.msk [vmem:[#allocation2 + $0x9c] sm:$0xf] %vm224, 0
        %266 = vst.msk [vmem:[#allocation2 + $0xa0] sm:$0xf] %vm224, 0
        %267 = vst.msk [vmem:[#allocation2 + $0xa4] sm:$0x1] %vm227, 0
        %268 = vst.msk [vmem:[#allocation2 + $0xa8] sm:$0xf] %vm224, 0
        %269 = vst.msk [vmem:[#allocation2 + $0xac] sm:$0xf] %vm224, 0
        %270 = vst.msk [vmem:[#allocation2 + $0xb0] sm:$0x1] %vm227, 0
        %271 = vst.msk [vmem:[#allocation2 + $0xb4] sm:$0xf] %vm224, 0
        %272 = vst.msk [vmem:[#allocation2 + $0xb8] sm:$0xf] %vm224, 0
        %273 = vst.msk [vmem:[#allocation2 + $0xbc] sm:$0x1] %vm227, 0
        %274 = vst.msk [vmem:[#allocation2 + $0xc0] sm:$0xf] %vm224, 0
        %275 = vst.msk [vmem:[#allocation2 + $0xc4] sm:$0xf] %vm224, 0
        %276 = vst.msk [vmem:[#allocation2 + $0xc8] sm:$0x1] %vm227, 0
        %277 = vst.msk [vmem:[#allocation2 + $0xcc] sm:$0xf] %vm224, 0
        %278 = vst.msk [vmem:[#allocation2 + $0xd0] sm:$0xf] %vm224, 0
        %279 = vst.msk [vmem:[#allocation2 + $0xd4] sm:$0x1] %vm227, 0
        %v280 = vld [vmem:[%s222] sm:$0xf]
        %v281 = vld [vmem:[%s222 + $0x4] sm:$0xf]
        %v282 = vld [vmem:[%s222 + $0x8] sm:$0xf]
        %v283 = vld [vmem:[%s222 + $0xc] sm:$0xf]
        %v284 = vld [vmem:[%s222 + $0x10] sm:$0xf]
        %v285 = vld [vmem:[%s222 + $0x14] sm:$0xf]
        %v286 = vld [vmem:[%s222 + $0x18] sm:$0xf]
        %v287 = vld [vmem:[%s222 + $0x1c] sm:$0xf]
        %v288 = vld [vmem:[%s222 + $0x20] sm:$0xf]
        %v289 = vld [vmem:[%s222 + $0x24] sm:$0xf]
        %v290 = vld [vmem:[%s222 + $0x28] sm:$0xf]
        %v291 = vld [vmem:[%s222 + $0x2c] sm:$0xf]
        %v292 = vld [vmem:[%s222 + $0x30] sm:$0xf]
        %v293 = vld [vmem:[%s222 + $0x34] sm:$0xf]
        %v294 = vld [vmem:[%s222 + $0x38] sm:$0xf]
        %v295 = vld [vmem:[%s222 + $0x3c] sm:$0xf]
        %v296 = vld [vmem:[%s222 + $0x40] sm:$0xf]
        %v297 = vld [vmem:[%s222 + $0x44] sm:$0xf]
        %v298 = vld [vmem:[%s222 + $0x48] sm:$0xf]
        %v299 = vld [vmem:[%s222 + $0x4c] sm:$0xf]
        %v300 = vld [vmem:[%s222 + $0x50] sm:$0xf]
        %v301 = vld [vmem:[%s222 + $0x54] sm:$0xf]
        %v302 = vld [vmem:[%s222 + $0x58] sm:$0xf]
        %v303 = vld [vmem:[%s222 + $0x5c] sm:$0xf]
        %v304 = vld [vmem:[%s222 + $0x60] sm:$0xf]
        %v305 = vld [vmem:[%s222 + $0x64] sm:$0xf]
        %v306 = vld [vmem:[%s222 + $0x68] sm:$0xf]
        %v307 = vld [vmem:[%s222 + $0x6c] sm:$0xf]
        %v308 = vld [vmem:[%s222 + $0x70] sm:$0xf]
        %v309 = vld [vmem:[%s222 + $0x74] sm:$0xf]
        %v310 = vld [vmem:[%s222 + $0x78] sm:$0xf]
        %v311 = vld [vmem:[%s222 + $0x7c] sm:$0xf]
        %vm312 = vsmask.f32 256
        %vm313 = vsmask.f32 4368
        %vm314 = vmor %vm312, %vm313
        %v316 = vshrl.u32 %v280, 16
        %v318 = vrot.slane %v316, 7
        %v319 = vshll.u32 %v280, 16
        %v321 = vor.u32 %v318, %v319
        %v322 = vrot.slane %v318, 4
        %v324 = vshrl.u32 %v281, 16
        %v326 = vrot.slane %v324, 7
        %v327 = vshll.u32 %v281, 16
        %v329 = vor.u32 %v326, %v327
        %v330 = vsel %vm314, %v322, %v329
        %v331 = vrot.slane %v326, 4
        %v333 = vshrl.u32 %v282, 16
        %v335 = vrot.slane %v333, 7
        %v336 = vshll.u32 %v282, 16
        %v338 = vor.u32 %v335, %v336
        %v339 = vrot.slane %v335, 4
        %v341 = vshrl.u32 %v283, 16
        %v343 = vrot.slane %v341, 7
        %v344 = vshll.u32 %v283, 16
        %v346 = vor.u32 %v343, %v344
        %v347 = vsel %vm314, %v339, %v346
        %v348 = vrot.slane %v343, 4
        %v350 = vshrl.u32 %v284, 16
        %v352 = vrot.slane %v350, 7
        %v353 = vshll.u32 %v284, 16
        %v355 = vor.u32 %v352, %v353
        %v356 = vrot.slane %v352, 4
        %v358 = vshrl.u32 %v285, 16
        %v360 = vrot.slane %v358, 7
        %v361 = vshll.u32 %v285, 16
        %v363 = vor.u32 %v360, %v361
        %v364 = vsel %vm314, %v356, %v363
        %v365 = vrot.slane %v360, 4
        %v367 = vshrl.u32 %v286, 16
        %v369 = vrot.slane %v367, 7
        %v370 = vshll.u32 %v286, 16
        %v372 = vor.u32 %v369, %v370
        %v373 = vrot.slane %v369, 4
        %v375 = vshrl.u32 %v287, 16
        %v377 = vrot.slane %v375, 7
        %v378 = vshll.u32 %v287, 16
        %v380 = vor.u32 %v377, %v378
        %v381 = vsel %vm314, %v373, %v380
        %v382 = vrot.slane %v377, 4
        %v384 = vshrl.u32 %v288, 16
        %v386 = vrot.slane %v384, 7
        %v387 = vshll.u32 %v288, 16
        %v389 = vor.u32 %v386, %v387
        %v390 = vrot.slane %v386, 4
        %v392 = vshrl.u32 %v289, 16
        %v394 = vrot.slane %v392, 7
        %v395 = vshll.u32 %v289, 16
        %v397 = vor.u32 %v394, %v395
        %v398 = vsel %vm314, %v390, %v397
        %v399 = vrot.slane %v394, 4
        %v401 = vshrl.u32 %v290, 16
        %v403 = vrot.slane %v401, 7
        %v404 = vshll.u32 %v290, 16
        %v406 = vor.u32 %v403, %v404
        %v407 = vrot.slane %v403, 4
        %v409 = vshrl.u32 %v291, 16
        %v411 = vrot.slane %v409, 7
        %v412 = vshll.u32 %v291, 16
        %v414 = vor.u32 %v411, %v412
        %v415 = vsel %vm314, %v407, %v414
        %v416 = vrot.slane %v411, 4
        %v418 = vshrl.u32 %v292, 16
        %v420 = vrot.slane %v418, 7
        %v421 = vshll.u32 %v292, 16
        %v423 = vor.u32 %v420, %v421
        %v424 = vrot.slane %v420, 4
        %v426 = vshrl.u32 %v293, 16
        %v428 = vrot.slane %v426, 7
        %v429 = vshll.u32 %v293, 16
        %v431 = vor.u32 %v428, %v429
        %v432 = vsel %vm314, %v424, %v431
        %v433 = vrot.slane %v428, 4
        %v435 = vshrl.u32 %v294, 16
        %v437 = vrot.slane %v435, 7
        %v438 = vshll.u32 %v294, 16
        %v440 = vor.u32 %v437, %v438
        %v441 = vrot.slane %v437, 4
        %v443 = vshrl.u32 %v295, 16
        %v445 = vrot.slane %v443, 7
        %v446 = vshll.u32 %v295, 16
        %v448 = vor.u32 %v445, %v446
        %v449 = vsel %vm314, %v441, %v448
        %v450 = vrot.slane %v445, 4
        %v452 = vshrl.u32 %v296, 16
        %v454 = vrot.slane %v452, 7
        %v455 = vshll.u32 %v296, 16
        %v457 = vor.u32 %v454, %v455
        %v458 = vrot.slane %v454, 4
        %v460 = vshrl.u32 %v297, 16
        %v462 = vrot.slane %v460, 7
        %v463 = vshll.u32 %v297, 16
        %v465 = vor.u32 %v462, %v463
        %v466 = vsel %vm314, %v458, %v465
        %v467 = vrot.slane %v462, 4
        %v469 = vshrl.u32 %v298, 16
        %v471 = vrot.slane %v469, 7
        %v472 = vshll.u32 %v298, 16
        %v474 = vor.u32 %v471, %v472
        %v475 = vrot.slane %v471, 4
        %v477 = vshrl.u32 %v299, 16
        %v479 = vrot.slane %v477, 7
        %v480 = vshll.u32 %v299, 16
        %v482 = vor.u32 %v479, %v480
        %v483 = vsel %vm314, %v475, %v482
        %v484 = vrot.slane %v479, 4
        %v486 = vshrl.u32 %v300, 16
        %v488 = vrot.slane %v486, 7
        %v489 = vshll.u32 %v300, 16
        %v491 = vor.u32 %v488, %v489
        %v492 = vrot.slane %v488, 4
        %v494 = vshrl.u32 %v301, 16
        %v496 = vrot.slane %v494, 7
        %v497 = vshll.u32 %v301, 16
        %v499 = vor.u32 %v496, %v497
        %v500 = vsel %vm314, %v492, %v499
        %v501 = vrot.slane %v496, 4
        %v503 = vshrl.u32 %v302, 16
        %v505 = vrot.slane %v503, 7
        %v506 = vshll.u32 %v302, 16
        %v508 = vor.u32 %v505, %v506
        %v509 = vrot.slane %v505, 4
        %v511 = vshrl.u32 %v303, 16
        %v513 = vrot.slane %v511, 7
        %v514 = vshll.u32 %v303, 16
        %v516 = vor.u32 %v513, %v514
        %v517 = vsel %vm314, %v509, %v516
        %v518 = vrot.slane %v513, 4
        %v520 = vshrl.u32 %v304, 16
        %v522 = vrot.slane %v520, 7
        %v523 = vshll.u32 %v304, 16
        %v525 = vor.u32 %v522, %v523
        %v526 = vrot.slane %v522, 4
        %v528 = vshrl.u32 %v305, 16
        %v530 = vrot.slane %v528, 7
        %v531 = vshll.u32 %v305, 16
        %v533 = vor.u32 %v530, %v531
        %v534 = vsel %vm314, %v526, %v533
        %v535 = vrot.slane %v530, 4
        %v537 = vshrl.u32 %v306, 16
        %v539 = vrot.slane %v537, 7
        %v540 = vshll.u32 %v306, 16
        %v542 = vor.u32 %v539, %v540
        %v543 = vrot.slane %v539, 4
        %v545 = vshrl.u32 %v307, 16
        %v547 = vrot.slane %v545, 7
        %v548 = vshll.u32 %v307, 16
        %v550 = vor.u32 %v547, %v548
        %v551 = vsel %vm314, %v543, %v550
        %v552 = vrot.slane %v547, 4
        %v554 = vshrl.u32 %v308, 16
        %v556 = vrot.slane %v554, 7
        %v557 = vshll.u32 %v308, 16
        %v559 = vor.u32 %v556, %v557
        %v560 = vrot.slane %v556, 4
        %v562 = vshrl.u32 %v309, 16
        %v564 = vrot.slane %v562, 7
        %v565 = vshll.u32 %v309, 16
        %v567 = vor.u32 %v564, %v565
        %v568 = vsel %vm314, %v560, %v567
        %v569 = vrot.slane %v564, 4
        %v571 = vshrl.u32 %v310, 16
        %v573 = vrot.slane %v571, 7
        %v574 = vshll.u32 %v310, 16
        %v576 = vor.u32 %v573, %v574
        %v577 = vrot.slane %v573, 4
        %v579 = vshrl.u32 %v311, 16
        %v581 = vrot.slane %v579, 7
        %v582 = vshll.u32 %v311, 16
        %v584 = vor.u32 %v581, %v582
        %v585 = vsel %vm314, %v577, %v584
        %v586 = vrot.slane %v581, 4
        %s635 = scalar_lea.vmem [#allocation2], 12
        %vm636 = vcmask 27648
        %vm637 = vsmask.f32 7938
        %vm638 = vmand %vm636, %vm637
        %v639 = vld [vmem:[%s635] sm:$0xf]
        %v640 = vsel %vm638, %v321, %v639
        %641 = vst [vmem:[%s635] sm:$0xf] %v640
        %642 = vst.msk [vmem:[%s635 + $0x4] sm:$0xf] %vm224, %v330
        %vm643 = vcmask 24576
        %vm644 = vmand %vm643, %vm312
        %v645 = vld [vmem:[%s635 + $0x8] sm:$0x1]
        %v646 = vsel %vm644, %v331, %v645
        %647 = vst [vmem:[%s635 + $0x8] sm:$0x1] %v646
        %v648 = vld [vmem:[%s635 + $0xc] sm:$0xf]
        %v649 = vsel %vm638, %v338, %v648
        %650 = vst [vmem:[%s635 + $0xc] sm:$0xf] %v649
        %651 = vst.msk [vmem:[%s635 + $0x10] sm:$0xf] %vm224, %v347
        %v652 = vld [vmem:[%s635 + $0x14] sm:$0x1]
        %v653 = vsel %vm644, %v348, %v652
        %654 = vst [vmem:[%s635 + $0x14] sm:$0x1] %v653
        %v655 = vld [vmem:[%s635 + $0x18] sm:$0xf]
        %v656 = vsel %vm638, %v355, %v655
        %657 = vst [vmem:[%s635 + $0x18] sm:$0xf] %v656
        %658 = vst.msk [vmem:[%s635 + $0x1c] sm:$0xf] %vm224, %v364
        %v659 = vld [vmem:[%s635 + $0x20] sm:$0x1]
        %v660 = vsel %vm644, %v365, %v659
        %661 = vst [vmem:[%s635 + $0x20] sm:$0x1] %v660
        %v662 = vld [vmem:[%s635 + $0x24] sm:$0xf]
        %v663 = vsel %vm638, %v372, %v662
        %664 = vst [vmem:[%s635 + $0x24] sm:$0xf] %v663
        %665 = vst.msk [vmem:[%s635 + $0x28] sm:$0xf] %vm224, %v381
        %v666 = vld [vmem:[%s635 + $0x2c] sm:$0x1]
        %v667 = vsel %vm644, %v382, %v666
        %668 = vst [vmem:[%s635 + $0x2c] sm:$0x1] %v667
        %v669 = vld [vmem:[%s635 + $0x30] sm:$0xf]
        %v670 = vsel %vm638, %v389, %v669
        %671 = vst [vmem:[%s635 + $0x30] sm:$0xf] %v670
        %672 = vst.msk [vmem:[%s635 + $0x34] sm:$0xf] %vm224, %v398
        %v673 = vld [vmem:[%s635 + $0x38] sm:$0x1]
        %v674 = vsel %vm644, %v399, %v673
        %675 = vst [vmem:[%s635 + $0x38] sm:$0x1] %v674
        %v676 = vld [vmem:[%s635 + $0x3c] sm:$0xf]
        %v677 = vsel %vm638, %v406, %v676
        %678 = vst [vmem:[%s635 + $0x3c] sm:$0xf] %v677
        %679 = vst.msk [vmem:[%s635 + $0x40] sm:$0xf] %vm224, %v415
        %v680 = vld [vmem:[%s635 + $0x44] sm:$0x1]
        %v681 = vsel %vm644, %v416, %v680
        %682 = vst [vmem:[%s635 + $0x44] sm:$0x1] %v681
        %v683 = vld [vmem:[%s635 + $0x48] sm:$0xf]
        %v684 = vsel %vm638, %v423, %v683
        %685 = vst [vmem:[%s635 + $0x48] sm:$0xf] %v684
        %686 = vst.msk [vmem:[%s635 + $0x4c] sm:$0xf] %vm224, %v432
        %v687 = vld [vmem:[%s635 + $0x50] sm:$0x1]
        %v688 = vsel %vm644, %v433, %v687
        %689 = vst [vmem:[%s635 + $0x50] sm:$0x1] %v688
        %v690 = vld [vmem:[%s635 + $0x54] sm:$0xf]
        %v691 = vsel %vm638, %v440, %v690
        %692 = vst [vmem:[%s635 + $0x54] sm:$0xf] %v691
        %693 = vst.msk [vmem:[%s635 + $0x58] sm:$0xf] %vm224, %v449
        %v694 = vld [vmem:[%s635 + $0x5c] sm:$0x1]
        %v695 = vsel %vm644, %v450, %v694
        %696 = vst [vmem:[%s635 + $0x5c] sm:$0x1] %v695
        %v697 = vld [vmem:[%s635 + $0x60] sm:$0xf]
        %v698 = vsel %vm638, %v457, %v697
        %699 = vst [vmem:[%s635 + $0x60] sm:$0xf] %v698
        %700 = vst.msk [vmem:[%s635 + $0x64] sm:$0xf] %vm224, %v466
        %v701 = vld [vmem:[%s635 + $0x68] sm:$0x1]
        %v702 = vsel %vm644, %v467, %v701
        %703 = vst [vmem:[%s635 + $0x68] sm:$0x1] %v702
        %v704 = vld [vmem:[%s635 + $0x6c] sm:$0xf]
        %v705 = vsel %vm638, %v474, %v704
        %706 = vst [vmem:[%s635 + $0x6c] sm:$0xf] %v705
        %707 = vst.msk [vmem:[%s635 + $0x70] sm:$0xf] %vm224, %v483
        %v708 = vld [vmem:[%s635 + $0x74] sm:$0x1]
        %v709 = vsel %vm644, %v484, %v708
        %710 = vst [vmem:[%s635 + $0x74] sm:$0x1] %v709
        %v711 = vld [vmem:[%s635 + $0x78] sm:$0xf]
        %v712 = vsel %vm638, %v491, %v711
        %713 = vst [vmem:[%s635 + $0x78] sm:$0xf] %v712
        %714 = vst.msk [vmem:[%s635 + $0x7c] sm:$0xf] %vm224, %v500
        %v715 = vld [vmem:[%s635 + $0x80] sm:$0x1]
        %v716 = vsel %vm644, %v501, %v715
        %717 = vst [vmem:[%s635 + $0x80] sm:$0x1] %v716
        %v718 = vld [vmem:[%s635 + $0x84] sm:$0xf]
        %v719 = vsel %vm638, %v508, %v718
        %720 = vst [vmem:[%s635 + $0x84] sm:$0xf] %v719
        %721 = vst.msk [vmem:[%s635 + $0x88] sm:$0xf] %vm224, %v517
        %v722 = vld [vmem:[%s635 + $0x8c] sm:$0x1]
        %v723 = vsel %vm644, %v518, %v722
        %724 = vst [vmem:[%s635 + $0x8c] sm:$0x1] %v723
        %v725 = vld [vmem:[%s635 + $0x90] sm:$0xf]
        %v726 = vsel %vm638, %v525, %v725
        %727 = vst [vmem:[%s635 + $0x90] sm:$0xf] %v726
        %728 = vst.msk [vmem:[%s635 + $0x94] sm:$0xf] %vm224, %v534
        %v729 = vld [vmem:[%s635 + $0x98] sm:$0x1]
        %v730 = vsel %vm644, %v535, %v729
        %731 = vst [vmem:[%s635 + $0x98] sm:$0x1] %v730
        %v732 = vld [vmem:[%s635 + $0x9c] sm:$0xf]
        %v733 = vsel %vm638, %v542, %v732
        %734 = vst [vmem:[%s635 + $0x9c] sm:$0xf] %v733
        %735 = vst.msk [vmem:[%s635 + $0xa0] sm:$0xf] %vm224, %v551
        %v736 = vld [vmem:[%s635 + $0xa4] sm:$0x1]
        %v737 = vsel %vm644, %v552, %v736
        %738 = vst [vmem:[%s635 + $0xa4] sm:$0x1] %v737
        %v739 = vld [vmem:[%s635 + $0xa8] sm:$0xf]
        %v740 = vsel %vm638, %v559, %v739
        %741 = vst [vmem:[%s635 + $0xa8] sm:$0xf] %v740
        %742 = vst.msk [vmem:[%s635 + $0xac] sm:$0xf] %vm224, %v568
        %v743 = vld [vmem:[%s635 + $0xb0] sm:$0x1]
        %v744 = vsel %vm644, %v569, %v743
        %745 = vst [vmem:[%s635 + $0xb0] sm:$0x1] %v744
        %v746 = vld [vmem:[%s635 + $0xb4] sm:$0xf]
        %v747 = vsel %vm638, %v576, %v746
        %748 = vst [vmem:[%s635 + $0xb4] sm:$0xf] %v747
        %749 = vst.msk [vmem:[%s635 + $0xb8] sm:$0xf] %vm224, %v585
        %v750 = vld [vmem:[%s635 + $0xbc] sm:$0x1]
        %v751 = vsel %vm644, %v586, %v750
        %752 = vst [vmem:[%s635 + $0xbc] sm:$0x1] %v751
        %v753 = vld [vmem:[#allocation2] sm:$0xf]
        %v754 = vld [vmem:[#allocation2 + $0x4] sm:$0xf]
        %v755 = vld [vmem:[#allocation2 + $0x8] sm:$0x1]
        %v756 = vld [vmem:[#allocation2 + $0xc] sm:$0xf]
        %v757 = vld [vmem:[#allocation2 + $0x10] sm:$0xf]
        %v758 = vld [vmem:[#allocation2 + $0x14] sm:$0x1]
        %v759 = vld [vmem:[#allocation2 + $0x18] sm:$0xf]
        %v760 = vld [vmem:[#allocation2 + $0x1c] sm:$0xf]
        %v761 = vld [vmem:[#allocation2 + $0x20] sm:$0x1]
        %v762 = vld [vmem:[#allocation2 + $0x24] sm:$0xf]
        %v763 = vld [vmem:[#allocation2 + $0x28] sm:$0xf]
        %v764 = vld [vmem:[#allocation2 + $0x2c] sm:$0x1]
        %v765 = vld [vmem:[#allocation2 + $0x30] sm:$0xf]
        %v766 = vld [vmem:[#allocation2 + $0x34] sm:$0xf]
        %v767 = vld [vmem:[#allocation2 + $0x38] sm:$0x1]
        %v768 = vld [vmem:[#allocation2 + $0x3c] sm:$0xf]
        %v769 = vld [vmem:[#allocation2 + $0x40] sm:$0xf]
        %v770 = vld [vmem:[#allocation2 + $0x44] sm:$0x1]
        %v771 = vld [vmem:[#allocation2 + $0x48] sm:$0xf]
        %v772 = vld [vmem:[#allocation2 + $0x4c] sm:$0xf]
        %v773 = vld [vmem:[#allocation2 + $0x50] sm:$0x1]
        %v774 = vld [vmem:[#allocation2 + $0x54] sm:$0xf]
        %v775 = vld [vmem:[#allocation2 + $0x58] sm:$0xf]
        %v776 = vld [vmem:[#allocation2 + $0x5c] sm:$0x1]
        %v777 = vld [vmem:[#allocation2 + $0x60] sm:$0xf]
        %v778 = vld [vmem:[#allocation2 + $0x64] sm:$0xf]
        %v779 = vld [vmem:[#allocation2 + $0x68] sm:$0x1]
        %v780 = vld [vmem:[#allocation2 + $0x6c] sm:$0xf]
        %v781 = vld [vmem:[#allocation2 + $0x70] sm:$0xf]
        %v782 = vld [vmem:[#allocation2 + $0x74] sm:$0x1]
        %v783 = vld [vmem:[#allocation2 + $0x78] sm:$0xf]
        %v784 = vld [vmem:[#allocation2 + $0x7c] sm:$0xf]
        %v785 = vld [vmem:[#allocation2 + $0x80] sm:$0x1]
        %v786 = vld [vmem:[#allocation2 + $0x84] sm:$0xf]
        %v787 = vld [vmem:[#allocation2 + $0x88] sm:$0xf]
        %v788 = vld [vmem:[#allocation2 + $0x8c] sm:$0x1]
        %v789 = vld [vmem:[#allocation2 + $0x90] sm:$0xf]
        %v790 = vld [vmem:[#allocation2 + $0x94] sm:$0xf]
        %v791 = vld [vmem:[#allocation2 + $0x98] sm:$0x1]
        %v792 = vld [vmem:[#allocation2 + $0x9c] sm:$0xf]
        %v793 = vld [vmem:[#allocation2 + $0xa0] sm:$0xf]
        %v794 = vld [vmem:[#allocation2 + $0xa4] sm:$0x1]
        %v795 = vld [vmem:[#allocation2 + $0xa8] sm:$0xf]
        %v796 = vld [vmem:[#allocation2 + $0xac] sm:$0xf]
        %v797 = vld [vmem:[#allocation2 + $0xb0] sm:$0x1]
        %v798 = vld [vmem:[#allocation2 + $0xb4] sm:$0xf]
        %v799 = vld [vmem:[#allocation2 + $0xb8] sm:$0xf]
        %v800 = vld [vmem:[#allocation2 + $0xbc] sm:$0x1]
        %v801 = vld [vmem:[#allocation2 + $0xc0] sm:$0xf]
        %v802 = vld [vmem:[#allocation2 + $0xc4] sm:$0xf]
        %v803 = vld [vmem:[#allocation2 + $0xc8] sm:$0x1]
        %v804 = vld [vmem:[#allocation2 + $0xcc] sm:$0xf]
        %v805 = vld [vmem:[#allocation2 + $0xd0] sm:$0xf]
        %v806 = vld [vmem:[#allocation2 + $0xd4] sm:$0x1]
        %v807 = vld [vmem:[%s1] sm:$0x3]
        %vm808 = vsmask.f32 3328
        %vm809 = vsmask.f32 7440
        %vm810 = vmor %vm808, %vm809
        %v812 = vshrl.u32 %v753, 16
        %v814 = vrot.slane %v812, 4
        %v815 = vshll.u32 %v753, 16
        %v817 = vrot.slane %v815, 5
        %v818 = vor.u32 %v814, %v817
        %v819 = vrot.slane %v818, 4
        %v821 = vshll.u32 %v754, 16
        %v823 = vrot.slane %v821, 5
        %v824 = vsel %vm810, %v819, %v823
        %v825 = vshrl.u32 %v754, 16
        %v827 = vrot.slane %v825, 4
        %v828 = vor.u32 %v827, %v823
        %v829 = vrot.slane %v828, 4
        %v831 = vshll.u32 %v755, 16
        %v833 = vrot.slane %v831, 5
        %v834 = vsel %vm810, %v829, %v833
        %v836 = vshrl.u32 %v756, 16
        %v838 = vrot.slane %v836, 4
        %v839 = vshll.u32 %v756, 16
        %v841 = vrot.slane %v839, 5
        %v842 = vor.u32 %v838, %v841
        %v843 = vrot.slane %v842, 4
        %v845 = vshll.u32 %v757, 16
        %v847 = vrot.slane %v845, 5
        %v848 = vsel %vm810, %v843, %v847
        %v849 = vshrl.u32 %v757, 16
        %v851 = vrot.slane %v849, 4
        %v852 = vor.u32 %v851, %v847
        %v853 = vrot.slane %v852, 4
        %v855 = vshll.u32 %v758, 16
        %v857 = vrot.slane %v855, 5
        %v858 = vsel %vm810, %v853, %v857
        %v860 = vshrl.u32 %v759, 16
        %v862 = vrot.slane %v860, 4
        %v863 = vshll.u32 %v759, 16
        %v865 = vrot.slane %v863, 5
        %v866 = vor.u32 %v862, %v865
        %v867 = vrot.slane %v866, 4
        %v869 = vshll.u32 %v760, 16
        %v871 = vrot.slane %v869, 5
        %v872 = vsel %vm810, %v867, %v871
        %v873 = vshrl.u32 %v760, 16
        %v875 = vrot.slane %v873, 4
        %v876 = vor.u32 %v875, %v871
        %v877 = vrot.slane %v876, 4
        %v879 = vshll.u32 %v761, 16
        %v881 = vrot.slane %v879, 5
        %v882 = vsel %vm810, %v877, %v881
        %v884 = vshrl.u32 %v762, 16
        %v886 = vrot.slane %v884, 4
        %v887 = vshll.u32 %v762, 16
        %v889 = vrot.slane %v887, 5
        %v890 = vor.u32 %v886, %v889
        %v891 = vrot.slane %v890, 4
        %v893 = vshll.u32 %v763, 16
        %v895 = vrot.slane %v893, 5
        %v896 = vsel %vm810, %v891, %v895
        %v897 = vshrl.u32 %v763, 16
        %v899 = vrot.slane %v897, 4
        %v900 = vor.u32 %v899, %v895
        %v901 = vrot.slane %v900, 4
        %v903 = vshll.u32 %v764, 16
        %v905 = vrot.slane %v903, 5
        %v906 = vsel %vm810, %v901, %v905
        %v908 = vshrl.u32 %v765, 16
        %v910 = vrot.slane %v908, 4
        %v911 = vshll.u32 %v765, 16
        %v913 = vrot.slane %v911, 5
        %v914 = vor.u32 %v910, %v913
        %v915 = vrot.slane %v914, 4
        %v917 = vshll.u32 %v766, 16
        %v919 = vrot.slane %v917, 5
        %v920 = vsel %vm810, %v915, %v919
        %v921 = vshrl.u32 %v766, 16
        %v923 = vrot.slane %v921, 4
        %v924 = vor.u32 %v923, %v919
        %v925 = vrot.slane %v924, 4
        %v927 = vshll.u32 %v767, 16
        %v929 = vrot.slane %v927, 5
        %v930 = vsel %vm810, %v925, %v929
        %v932 = vshrl.u32 %v768, 16
        %v934 = vrot.slane %v932, 4
        %v935 = vshll.u32 %v768, 16
        %v937 = vrot.slane %v935, 5
        %v938 = vor.u32 %v934, %v937
        %v939 = vrot.slane %v938, 4
        %v941 = vshll.u32 %v769, 16
        %v943 = vrot.slane %v941, 5
        %v944 = vsel %vm810, %v939, %v943
        %v945 = vshrl.u32 %v769, 16
        %v947 = vrot.slane %v945, 4
        %v948 = vor.u32 %v947, %v943
        %v949 = vrot.slane %v948, 4
        %v951 = vshll.u32 %v770, 16
        %v953 = vrot.slane %v951, 5
        %v954 = vsel %vm810, %v949, %v953
        %v956 = vshrl.u32 %v771, 16
        %v958 = vrot.slane %v956, 4
        %v959 = vshll.u32 %v771, 16
        %v961 = vrot.slane %v959, 5
        %v962 = vor.u32 %v958, %v961
        %v963 = vrot.slane %v962, 4
        %v965 = vshll.u32 %v772, 16
        %v967 = vrot.slane %v965, 5
        %v968 = vsel %vm810, %v963, %v967
        %v969 = vshrl.u32 %v772, 16
        %v971 = vrot.slane %v969, 4
        %v972 = vor.u32 %v971, %v967
        %v973 = vrot.slane %v972, 4
        %v975 = vshll.u32 %v773, 16
        %v977 = vrot.slane %v975, 5
        %v978 = vsel %vm810, %v973, %v977
        %v980 = vshrl.u32 %v774, 16
        %v982 = vrot.slane %v980, 4
        %v983 = vshll.u32 %v774, 16
        %v985 = vrot.slane %v983, 5
        %v986 = vor.u32 %v982, %v985
        %v987 = vrot.slane %v986, 4
        %v989 = vshll.u32 %v775, 16
        %v991 = vrot.slane %v989, 5
        %v992 = vsel %vm810, %v987, %v991
        %v993 = vshrl.u32 %v775, 16
        %v995 = vrot.slane %v993, 4
        %v996 = vor.u32 %v995, %v991
        %v997 = vrot.slane %v996, 4
        %v999 = vshll.u32 %v776, 16
        %v1001 = vrot.slane %v999, 5
        %v1002 = vsel %vm810, %v997, %v1001
        %v1004 = vshrl.u32 %v777, 16
        %v1006 = vrot.slane %v1004, 4
        %v1007 = vshll.u32 %v777, 16
        %v1009 = vrot.slane %v1007, 5
        %v1010 = vor.u32 %v1006, %v1009
        %v1011 = vrot.slane %v1010, 4
        %v1013 = vshll.u32 %v778, 16
        %v1015 = vrot.slane %v1013, 5
        %v1016 = vsel %vm810, %v1011, %v1015
        %v1017 = vshrl.u32 %v778, 16
        %v1019 = vrot.slane %v1017, 4
        %v1020 = vor.u32 %v1019, %v1015
        %v1021 = vrot.slane %v1020, 4
        %v1023 = vshll.u32 %v779, 16
        %v1025 = vrot.slane %v1023, 5
        %v1026 = vsel %vm810, %v1021, %v1025
        %v1028 = vshrl.u32 %v780, 16
        %v1030 = vrot.slane %v1028, 4
        %v1031 = vshll.u32 %v780, 16
        %v1033 = vrot.slane %v1031, 5
        %v1034 = vor.u32 %v1030, %v1033
        %v1035 = vrot.slane %v1034, 4
        %v1037 = vshll.u32 %v781, 16
        %v1039 = vrot.slane %v1037, 5
        %v1040 = vsel %vm810, %v1035, %v1039
        %v1041 = vshrl.u32 %v781, 16
        %v1043 = vrot.slane %v1041, 4
        %v1044 = vor.u32 %v1043, %v1039
        %v1045 = vrot.slane %v1044, 4
        %v1047 = vshll.u32 %v782, 16
        %v1049 = vrot.slane %v1047, 5
        %v1050 = vsel %vm810, %v1045, %v1049
        %v1052 = vshrl.u32 %v783, 16
        %v1054 = vrot.slane %v1052, 4
        %v1055 = vshll.u32 %v783, 16
        %v1057 = vrot.slane %v1055, 5
        %v1058 = vor.u32 %v1054, %v1057
        %v1059 = vrot.slane %v1058, 4
        %v1061 = vshll.u32 %v784, 16
        %v1063 = vrot.slane %v1061, 5
        %v1064 = vsel %vm810, %v1059, %v1063
        %v1065 = vshrl.u32 %v784, 16
        %v1067 = vrot.slane %v1065, 4
        %v1068 = vor.u32 %v1067, %v1063
        %v1069 = vrot.slane %v1068, 4
        %v1071 = vshll.u32 %v785, 16
        %v1073 = vrot.slane %v1071, 5
        %v1074 = vsel %vm810, %v1069, %v1073
        %v1076 = vshrl.u32 %v786, 16
        %v1078 = vrot.slane %v1076, 4
        %v1079 = vshll.u32 %v786, 16
        %v1081 = vrot.slane %v1079, 5
        %v1082 = vor.u32 %v1078, %v1081
        %v1083 = vrot.slane %v1082, 4
        %v1085 = vshll.u32 %v787, 16
        %v1087 = vrot.slane %v1085, 5
        %v1088 = vsel %vm810, %v1083, %v1087
        %v1089 = vshrl.u32 %v787, 16
        %v1091 = vrot.slane %v1089, 4
        %v1092 = vor.u32 %v1091, %v1087
        %v1093 = vrot.slane %v1092, 4
        %v1095 = vshll.u32 %v788, 16
        %v1097 = vrot.slane %v1095, 5
        %v1098 = vsel %vm810, %v1093, %v1097
        %v1100 = vshrl.u32 %v789, 16
        %v1102 = vrot.slane %v1100, 4
        %v1103 = vshll.u32 %v789, 16
        %v1105 = vrot.slane %v1103, 5
        %v1106 = vor.u32 %v1102, %v1105
        %v1107 = vrot.slane %v1106, 4
        %v1109 = vshll.u32 %v790, 16
        %v1111 = vrot.slane %v1109, 5
        %v1112 = vsel %vm810, %v1107, %v1111
        %v1113 = vshrl.u32 %v790, 16
        %v1115 = vrot.slane %v1113, 4
        %v1116 = vor.u32 %v1115, %v1111
        %v1117 = vrot.slane %v1116, 4
        %v1119 = vshll.u32 %v791, 16
        %v1121 = vrot.slane %v1119, 5
        %v1122 = vsel %vm810, %v1117, %v1121
        %v1124 = vshrl.u32 %v792, 16
        %v1126 = vrot.slane %v1124, 4
        %v1127 = vshll.u32 %v792, 16
        %v1129 = vrot.slane %v1127, 5
        %v1130 = vor.u32 %v1126, %v1129
        %v1131 = vrot.slane %v1130, 4
        %v1133 = vshll.u32 %v793, 16
        %v1135 = vrot.slane %v1133, 5
        %v1136 = vsel %vm810, %v1131, %v1135
        %v1137 = vshrl.u32 %v793, 16
        %v1139 = vrot.slane %v1137, 4
        %v1140 = vor.u32 %v1139, %v1135
        %v1141 = vrot.slane %v1140, 4
        %v1143 = vshll.u32 %v794, 16
        %v1145 = vrot.slane %v1143, 5
        %v1146 = vsel %vm810, %v1141, %v1145
        %v1148 = vshrl.u32 %v795, 16
        %v1150 = vrot.slane %v1148, 4
        %v1151 = vshll.u32 %v795, 16
        %v1153 = vrot.slane %v1151, 5
        %v1154 = vor.u32 %v1150, %v1153
        %v1155 = vrot.slane %v1154, 4
        %v1157 = vshll.u32 %v796, 16
        %v1159 = vrot.slane %v1157, 5
        %v1160 = vsel %vm810, %v1155, %v1159
        %v1161 = vshrl.u32 %v796, 16
        %v1163 = vrot.slane %v1161, 4
        %v1164 = vor.u32 %v1163, %v1159
        %v1165 = vrot.slane %v1164, 4
        %v1167 = vshll.u32 %v797, 16
        %v1169 = vrot.slane %v1167, 5
        %v1170 = vsel %vm810, %v1165, %v1169
        %v1172 = vshrl.u32 %v798, 16
        %v1174 = vrot.slane %v1172, 4
        %v1175 = vshll.u32 %v798, 16
        %v1177 = vrot.slane %v1175, 5
        %v1178 = vor.u32 %v1174, %v1177
        %v1179 = vrot.slane %v1178, 4
        %v1181 = vshll.u32 %v799, 16
        %v1183 = vrot.slane %v1181, 5
        %v1184 = vsel %vm810, %v1179, %v1183
        %v1185 = vshrl.u32 %v799, 16
        %v1187 = vrot.slane %v1185, 4
        %v1188 = vor.u32 %v1187, %v1183
        %v1189 = vrot.slane %v1188, 4
        %v1191 = vshll.u32 %v800, 16
        %v1193 = vrot.slane %v1191, 5
        %v1194 = vsel %vm810, %v1189, %v1193
        %s1195 = scalar_lea.vmem %s1, 2
        %v1196 = vld [vmem:[%s1195] sm:$0x3]
        %v1197 = vunpack.c.l.b16 %v824
        %v1198 = vunpack.c.l.b16 %v834
        %v1199 = vunpack.c.l.b16 %v848
        %v1200 = vunpack.c.l.b16 %v858
        %v1201 = vunpack.c.l.b16 %v872
        %v1202 = vunpack.c.l.b16 %v882
        %v1203 = vunpack.c.l.b16 %v896
        %v1204 = vunpack.c.l.b16 %v906
        %v1205 = vunpack.c.l.b16 %v920
        %v1206 = vunpack.c.l.b16 %v930
        %v1207 = vunpack.c.l.b16 %v944
        %v1208 = vunpack.c.l.b16 %v954
        %v1209 = vunpack.c.l.b16 %v968
        %v1210 = vunpack.c.l.b16 %v978
        %v1211 = vunpack.c.l.b16 %v992
        %v1212 = vunpack.c.l.b16 %v1002
        %v1213 = vunpack.c.l.b16 %v1016
        %v1214 = vunpack.c.l.b16 %v1026
        %v1215 = vunpack.c.l.b16 %v1040
        %v1216 = vunpack.c.l.b16 %v1050
        %v1217 = vunpack.c.l.b16 %v1064
        %v1218 = vunpack.c.l.b16 %v1074
        %v1219 = vunpack.c.l.b16 %v1088
        %v1220 = vunpack.c.l.b16 %v1098
        %v1221 = vunpack.c.l.b16 %v1112
        %v1222 = vunpack.c.l.b16 %v1122
        %v1223 = vunpack.c.l.b16 %v1136
        %v1224 = vunpack.c.l.b16 %v1146
        %v1225 = vunpack.c.l.b16 %v1160
        %v1226 = vunpack.c.l.b16 %v1170
        %v1227 = vunpack.c.l.b16 %v1184
        %v1228 = vunpack.c.l.b16 %v1194
        %v1229 = vpack.c.b16 %v1198, %v1197
        %v1230 = vpack.c.b16 %v1200, %v1199
        %v1231 = vpack.c.b16 %v1202, %v1201
        %v1232 = vpack.c.b16 %v1204, %v1203
        %v1233 = vpack.c.b16 %v1206, %v1205
        %v1234 = vpack.c.b16 %v1208, %v1207
        %v1235 = vpack.c.b16 %v1210, %v1209
        %v1236 = vpack.c.b16 %v1212, %v1211
        %v1237 = vpack.c.b16 %v1214, %v1213
        %v1238 = vpack.c.b16 %v1216, %v1215
        %v1239 = vpack.c.b16 %v1218, %v1217
        %v1240 = vpack.c.b16 %v1220, %v1219
        %v1241 = vpack.c.b16 %v1222, %v1221
        %v1242 = vpack.c.b16 %v1224, %v1223
        %v1243 = vpack.c.b16 %v1226, %v1225
        %v1244 = vpack.c.b16 %v1228, %v1227
        %vm1245 = vcmask 31744
        %v1247 = vsel %vm1245, %v1229, 0
        %v1250 = vsel %vm1245, %v1230, 0
        %v1253 = vsel %vm1245, %v1231, 0
        %v1256 = vsel %vm1245, %v1232, 0
        %v1259 = vsel %vm1245, %v1233, 0
        %v1262 = vsel %vm1245, %v1234, 0
        %v1265 = vsel %vm1245, %v1235, 0
        %v1268 = vsel %vm1245, %v1236, 0
        %v1271 = vsel %vm1245, %v1237, 0
        %v1274 = vsel %vm1245, %v1238, 0
        %v1277 = vsel %vm1245, %v1239, 0
        %v1280 = vsel %vm1245, %v1240, 0
        %v1283 = vsel %vm1245, %v1241, 0
        %v1286 = vsel %vm1245, %v1242, 0
        %v1289 = vsel %vm1245, %v1243, 0
        %v1292 = vsel %vm1245, %v1244, 0
        %vm1294 = vcmask 1041408
        %v1296 = vsel %vm1294, %v1196, 0
        %1298 = vmatpush.bf16.msra.mxu0 0
        %1299 = vmatpush.bf16.msra.mxu0 0
        %1300 = vmatpush.bf16.msra.mxu0 0
        %1301 = vmatpush.bf16.msra.mxu0 0
        %1302 = vmatpush.bf16.msra.mxu0 0
        %1303 = vmatpush.bf16.msra.mxu0 0
        %1304 = vmatpush.bf16.msra.mxu0 0
        %1305 = vmatpush.bf16.msra.mxu0 %v1296
        %1306 = vmatmul.bf16.gmra.mxu0 %v1247
        %v1307 = vpop.f32.mrf.mxu0
        %v1308 = vadd.f32 0.0, %v1307
        %v1309 = vpop.f32.mrf.mxu0
        %v1310 = vadd.f32 0.0, %v1309
        %1311 = vmatmul.bf16.gmra.mxu0 %v1250
        %v1312 = vpop.f32.mrf.mxu0
        %v1313 = vadd.f32 0.0, %v1312
        %v1314 = vpop.f32.mrf.mxu0
        %v1315 = vadd.f32 0.0, %v1314
        %1316 = vmatmul.bf16.gmra.mxu0 %v1253
        %v1317 = vpop.f32.mrf.mxu0
        %v1318 = vadd.f32 0.0, %v1317
        %v1319 = vpop.f32.mrf.mxu0
        %v1320 = vadd.f32 0.0, %v1319
        %1321 = vmatmul.bf16.gmra.mxu0 %v1256
        %v1322 = vpop.f32.mrf.mxu0
        %v1323 = vadd.f32 0.0, %v1322
        %v1324 = vpop.f32.mrf.mxu0
        %v1325 = vadd.f32 0.0, %v1324
        %1326 = vmatmul.bf16.gmra.mxu0 %v1259
        %v1327 = vpop.f32.mrf.mxu0
        %v1328 = vadd.f32 0.0, %v1327
        %v1329 = vpop.f32.mrf.mxu0
        %v1330 = vadd.f32 0.0, %v1329
        %1331 = vmatmul.bf16.gmra.mxu0 %v1262
        %v1332 = vpop.f32.mrf.mxu0
        %v1333 = vadd.f32 0.0, %v1332
        %v1334 = vpop.f32.mrf.mxu0
        %v1335 = vadd.f32 0.0, %v1334
        %1336 = vmatmul.bf16.gmra.mxu0 %v1265
        %v1337 = vpop.f32.mrf.mxu0
        %v1338 = vadd.f32 0.0, %v1337
        %v1339 = vpop.f32.mrf.mxu0
        %v1340 = vadd.f32 0.0, %v1339
        %1341 = vmatmul.bf16.gmra.mxu0 %v1268
        %v1342 = vpop.f32.mrf.mxu0
        %v1343 = vadd.f32 0.0, %v1342
        %v1344 = vpop.f32.mrf.mxu0
        %v1345 = vadd.f32 0.0, %v1344
        %1346 = vmatmul.bf16.gmra.mxu0 %v1271
        %v1347 = vpop.f32.mrf.mxu0
        %v1348 = vadd.f32 0.0, %v1347
        %v1349 = vpop.f32.mrf.mxu0
        %v1350 = vadd.f32 0.0, %v1349
        %1351 = vmatmul.bf16.gmra.mxu0 %v1274
        %v1352 = vpop.f32.mrf.mxu0
        %v1353 = vadd.f32 0.0, %v1352
        %v1354 = vpop.f32.mrf.mxu0
        %v1355 = vadd.f32 0.0, %v1354
        %1356 = vmatmul.bf16.gmra.mxu0 %v1277
        %v1357 = vpop.f32.mrf.mxu0
        %v1358 = vadd.f32 0.0, %v1357
        %v1359 = vpop.f32.mrf.mxu0
        %v1360 = vadd.f32 0.0, %v1359
        %1361 = vmatmul.bf16.gmra.mxu0 %v1280
        %v1362 = vpop.f32.mrf.mxu0
        %v1363 = vadd.f32 0.0, %v1362
        %v1364 = vpop.f32.mrf.mxu0
        %v1365 = vadd.f32 0.0, %v1364
        %1366 = vmatmul.bf16.gmra.mxu0 %v1283
        %v1367 = vpop.f32.mrf.mxu0
        %v1368 = vadd.f32 0.0, %v1367
        %v1369 = vpop.f32.mrf.mxu0
        %v1370 = vadd.f32 0.0, %v1369
        %1371 = vmatmul.bf16.gmra.mxu0 %v1286
        %v1372 = vpop.f32.mrf.mxu0
        %v1373 = vadd.f32 0.0, %v1372
        %v1374 = vpop.f32.mrf.mxu0
        %v1375 = vadd.f32 0.0, %v1374
        %1376 = vmatmul.bf16.gmra.mxu0 %v1289
        %v1377 = vpop.f32.mrf.mxu0
        %v1378 = vadd.f32 0.0, %v1377
        %v1379 = vpop.f32.mrf.mxu0
        %v1380 = vadd.f32 0.0, %v1379
        %1381 = vmatmul.bf16.gmra.mxu0 %v1292
        %v1382 = vpop.f32.mrf.mxu0
        %v1383 = vadd.f32 0.0, %v1382
        %v1384 = vpop.f32.mrf.mxu0
        %v1385 = vadd.f32 0.0, %v1384
        %1386 = vdwg.mxu0
        %v1419 = vunpack.c.l.b16 %v753
        %v1420 = vunpack.c.l.b16 %v754
        %v1421 = vunpack.c.l.b16 %v756
        %v1422 = vunpack.c.l.b16 %v757
        %v1423 = vunpack.c.l.b16 %v759
        %v1424 = vunpack.c.l.b16 %v760
        %v1425 = vunpack.c.l.b16 %v762
        %v1426 = vunpack.c.l.b16 %v763
        %v1427 = vunpack.c.l.b16 %v765
        %v1428 = vunpack.c.l.b16 %v766
        %v1429 = vunpack.c.l.b16 %v768
        %v1430 = vunpack.c.l.b16 %v769
        %v1431 = vunpack.c.l.b16 %v771
        %v1432 = vunpack.c.l.b16 %v772
        %v1433 = vunpack.c.l.b16 %v774
        %v1434 = vunpack.c.l.b16 %v775
        %v1435 = vunpack.c.l.b16 %v777
        %v1436 = vunpack.c.l.b16 %v778
        %v1437 = vunpack.c.l.b16 %v780
        %v1438 = vunpack.c.l.b16 %v781
        %v1439 = vunpack.c.l.b16 %v783
        %v1440 = vunpack.c.l.b16 %v784
        %v1441 = vunpack.c.l.b16 %v786
        %v1442 = vunpack.c.l.b16 %v787
        %v1443 = vunpack.c.l.b16 %v789
        %v1444 = vunpack.c.l.b16 %v790
        %v1445 = vunpack.c.l.b16 %v792
        %v1446 = vunpack.c.l.b16 %v793
        %v1447 = vunpack.c.l.b16 %v795
        %v1448 = vunpack.c.l.b16 %v796
        %v1449 = vunpack.c.l.b16 %v798
        %v1450 = vunpack.c.l.b16 %v799
        %v1451 = vpack.c.b16 %v1420, %v1419
        %v1452 = vpack.c.b16 %v1422, %v1421
        %v1453 = vpack.c.b16 %v1424, %v1423
        %v1454 = vpack.c.b16 %v1426, %v1425
        %v1455 = vpack.c.b16 %v1428, %v1427
        %v1456 = vpack.c.b16 %v1430, %v1429
        %v1457 = vpack.c.b16 %v1432, %v1431
        %v1458 = vpack.c.b16 %v1434, %v1433
        %v1459 = vpack.c.b16 %v1436, %v1435
        %v1460 = vpack.c.b16 %v1438, %v1437
        %v1461 = vpack.c.b16 %v1440, %v1439
        %v1462 = vpack.c.b16 %v1442, %v1441
        %v1463 = vpack.c.b16 %v1444, %v1443
        %v1464 = vpack.c.b16 %v1446, %v1445
        %v1465 = vpack.c.b16 %v1448, %v1447
        %v1466 = vpack.c.b16 %v1450, %v1449
        %v1468 = vsel %vm1245, %v1451, 0
        %v1471 = vsel %vm1245, %v1452, 0
        %v1474 = vsel %vm1245, %v1453, 0
        %v1477 = vsel %vm1245, %v1454, 0
        %v1480 = vsel %vm1245, %v1455, 0
        %v1483 = vsel %vm1245, %v1456, 0
        %v1486 = vsel %vm1245, %v1457, 0
        %v1489 = vsel %vm1245, %v1458, 0
        %v1492 = vsel %vm1245, %v1459, 0
        %v1495 = vsel %vm1245, %v1460, 0
        %v1498 = vsel %vm1245, %v1461, 0
        %v1501 = vsel %vm1245, %v1462, 0
        %v1504 = vsel %vm1245, %v1463, 0
        %v1507 = vsel %vm1245, %v1464, 0
        %v1510 = vsel %vm1245, %v1465, 0
        %v1513 = vsel %vm1245, %v1466, 0
        %v1516 = vsel %vm1294, %v807, 0
        %1518 = vmatpush.bf16.msra.mxu0 0
        %1519 = vmatpush.bf16.msra.mxu0 0
        %1520 = vmatpush.bf16.msra.mxu0 0
        %1521 = vmatpush.bf16.msra.mxu0 0
        %1522 = vmatpush.bf16.msra.mxu0 0
        %1523 = vmatpush.bf16.msra.mxu0 0
        %1524 = vmatpush.bf16.msra.mxu0 0
        %1525 = vmatpush.bf16.msra.mxu0 %v1516
        %1526 = vmatmul.bf16.gmra.mxu0 %v1468
        %v1527 = vpop.f32.mrf.mxu0
        %v1528 = vadd.f32 %v1308, %v1527
        %v1529 = vpop.f32.mrf.mxu0
        %v1530 = vadd.f32 %v1310, %v1529
        %1531 = vmatmul.bf16.gmra.mxu0 %v1471
        %v1532 = vpop.f32.mrf.mxu0
        %v1533 = vadd.f32 %v1313, %v1532
        %v1534 = vpop.f32.mrf.mxu0
        %v1535 = vadd.f32 %v1315, %v1534
        %1536 = vmatmul.bf16.gmra.mxu0 %v1474
        %v1537 = vpop.f32.mrf.mxu0
        %v1538 = vadd.f32 %v1318, %v1537
        %v1539 = vpop.f32.mrf.mxu0
        %v1540 = vadd.f32 %v1320, %v1539
        %1541 = vmatmul.bf16.gmra.mxu0 %v1477
        %v1542 = vpop.f32.mrf.mxu0
        %v1543 = vadd.f32 %v1323, %v1542
        %v1544 = vpop.f32.mrf.mxu0
        %v1545 = vadd.f32 %v1325, %v1544
        %1546 = vmatmul.bf16.gmra.mxu0 %v1480
        %v1547 = vpop.f32.mrf.mxu0
        %v1548 = vadd.f32 %v1328, %v1547
        %v1549 = vpop.f32.mrf.mxu0
        %v1550 = vadd.f32 %v1330, %v1549
        %1551 = vmatmul.bf16.gmra.mxu0 %v1483
        %v1552 = vpop.f32.mrf.mxu0
        %v1553 = vadd.f32 %v1333, %v1552
        %v1554 = vpop.f32.mrf.mxu0
        %v1555 = vadd.f32 %v1335, %v1554
        %1556 = vmatmul.bf16.gmra.mxu0 %v1486
        %v1557 = vpop.f32.mrf.mxu0
        %v1558 = vadd.f32 %v1338, %v1557
        %v1559 = vpop.f32.mrf.mxu0
        %v1560 = vadd.f32 %v1340, %v1559
        %1561 = vmatmul.bf16.gmra.mxu0 %v1489
        %v1562 = vpop.f32.mrf.mxu0
        %v1563 = vadd.f32 %v1343, %v1562
        %v1564 = vpop.f32.mrf.mxu0
        %v1565 = vadd.f32 %v1345, %v1564
        %1566 = vmatmul.bf16.gmra.mxu0 %v1492
        %v1567 = vpop.f32.mrf.mxu0
        %v1568 = vadd.f32 %v1348, %v1567
        %v1569 = vpop.f32.mrf.mxu0
        %v1570 = vadd.f32 %v1350, %v1569
        %1571 = vmatmul.bf16.gmra.mxu0 %v1495
        %v1572 = vpop.f32.mrf.mxu0
        %v1573 = vadd.f32 %v1353, %v1572
        %v1574 = vpop.f32.mrf.mxu0
        %v1575 = vadd.f32 %v1355, %v1574
        %1576 = vmatmul.bf16.gmra.mxu0 %v1498
        %v1577 = vpop.f32.mrf.mxu0
        %v1578 = vadd.f32 %v1358, %v1577
        %v1579 = vpop.f32.mrf.mxu0
        %v1580 = vadd.f32 %v1360, %v1579
        %1581 = vmatmul.bf16.gmra.mxu0 %v1501
        %v1582 = vpop.f32.mrf.mxu0
        %v1583 = vadd.f32 %v1363, %v1582
        %v1584 = vpop.f32.mrf.mxu0
        %v1585 = vadd.f32 %v1365, %v1584
        %1586 = vmatmul.bf16.gmra.mxu0 %v1504
        %v1587 = vpop.f32.mrf.mxu0
        %v1588 = vadd.f32 %v1368, %v1587
        %v1589 = vpop.f32.mrf.mxu0
        %v1590 = vadd.f32 %v1370, %v1589
        %1591 = vmatmul.bf16.gmra.mxu0 %v1507
        %v1592 = vpop.f32.mrf.mxu0
        %v1593 = vadd.f32 %v1373, %v1592
        %v1594 = vpop.f32.mrf.mxu0
        %v1595 = vadd.f32 %v1375, %v1594
        %1596 = vmatmul.bf16.gmra.mxu0 %v1510
        %v1597 = vpop.f32.mrf.mxu0
        %v1598 = vadd.f32 %v1378, %v1597
        %v1599 = vpop.f32.mrf.mxu0
        %v1600 = vadd.f32 %v1380, %v1599
        %1601 = vmatmul.bf16.gmra.mxu0 %v1513
        %v1602 = vpop.f32.mrf.mxu0
        %v1603 = vadd.f32 %v1383, %v1602
        %v1604 = vpop.f32.mrf.mxu0
        %v1605 = vadd.f32 %v1385, %v1604
        %1606 = vdwg.mxu0
        %vm1623 = vcmask 1042432
        %vm1624 = vcmask 1046532
        %vm1625 = vmor %vm1623, %vm1624
        %v1626 = vrot.slane %v753, 5
        %v1627 = vrot.slane %v1626, 4
        %v1628 = vrot.slane %v754, 5
        %v1629 = vsel %vm1625, %v1627, %v1628
        %v1630 = vrot.slane %v1628, 4
        %v1631 = vrot.slane %v755, 5
        %v1632 = vsel %vm1625, %v1630, %v1631
        %v1633 = vrot.slane %v756, 5
        %v1634 = vrot.slane %v1633, 4
        %v1635 = vrot.slane %v757, 5
        %v1636 = vsel %vm1625, %v1634, %v1635
        %v1637 = vrot.slane %v1635, 4
        %v1638 = vrot.slane %v758, 5
        %v1639 = vsel %vm1625, %v1637, %v1638
        %v1640 = vrot.slane %v759, 5
        %v1641 = vrot.slane %v1640, 4
        %v1642 = vrot.slane %v760, 5
        %v1643 = vsel %vm1625, %v1641, %v1642
        %v1644 = vrot.slane %v1642, 4
        %v1645 = vrot.slane %v761, 5
        %v1646 = vsel %vm1625, %v1644, %v1645
        %v1647 = vrot.slane %v762, 5
        %v1648 = vrot.slane %v1647, 4
        %v1649 = vrot.slane %v763, 5
        %v1650 = vsel %vm1625, %v1648, %v1649
        %v1651 = vrot.slane %v1649, 4
        %v1652 = vrot.slane %v764, 5
        %v1653 = vsel %vm1625, %v1651, %v1652
        %v1654 = vrot.slane %v765, 5
        %v1655 = vrot.slane %v1654, 4
        %v1656 = vrot.slane %v766, 5
        %v1657 = vsel %vm1625, %v1655, %v1656
        %v1658 = vrot.slane %v1656, 4
        %v1659 = vrot.slane %v767, 5
        %v1660 = vsel %vm1625, %v1658, %v1659
        %v1661 = vrot.slane %v768, 5
        %v1662 = vrot.slane %v1661, 4
        %v1663 = vrot.slane %v769, 5
        %v1664 = vsel %vm1625, %v1662, %v1663
        %v1665 = vrot.slane %v1663, 4
        %v1666 = vrot.slane %v770, 5
        %v1667 = vsel %vm1625, %v1665, %v1666
        %v1668 = vrot.slane %v771, 5
        %v1669 = vrot.slane %v1668, 4
        %v1670 = vrot.slane %v772, 5
        %v1671 = vsel %vm1625, %v1669, %v1670
        %v1672 = vrot.slane %v1670, 4
        %v1673 = vrot.slane %v773, 5
        %v1674 = vsel %vm1625, %v1672, %v1673
        %v1675 = vrot.slane %v774, 5
        %v1676 = vrot.slane %v1675, 4
        %v1677 = vrot.slane %v775, 5
        %v1678 = vsel %vm1625, %v1676, %v1677
        %v1679 = vrot.slane %v1677, 4
        %v1680 = vrot.slane %v776, 5
        %v1681 = vsel %vm1625, %v1679, %v1680
        %v1682 = vrot.slane %v777, 5
        %v1683 = vrot.slane %v1682, 4
        %v1684 = vrot.slane %v778, 5
        %v1685 = vsel %vm1625, %v1683, %v1684
        %v1686 = vrot.slane %v1684, 4
        %v1687 = vrot.slane %v779, 5
        %v1688 = vsel %vm1625, %v1686, %v1687
        %v1689 = vrot.slane %v780, 5
        %v1690 = vrot.slane %v1689, 4
        %v1691 = vrot.slane %v781, 5
        %v1692 = vsel %vm1625, %v1690, %v1691
        %v1693 = vrot.slane %v1691, 4
        %v1694 = vrot.slane %v782, 5
        %v1695 = vsel %vm1625, %v1693, %v1694
        %v1696 = vrot.slane %v783, 5
        %v1697 = vrot.slane %v1696, 4
        %v1698 = vrot.slane %v784, 5
        %v1699 = vsel %vm1625, %v1697, %v1698
        %v1700 = vrot.slane %v1698, 4
        %v1701 = vrot.slane %v785, 5
        %v1702 = vsel %vm1625, %v1700, %v1701
        %v1703 = vrot.slane %v786, 5
        %v1704 = vrot.slane %v1703, 4
        %v1705 = vrot.slane %v787, 5
        %v1706 = vsel %vm1625, %v1704, %v1705
        %v1707 = vrot.slane %v1705, 4
        %v1708 = vrot.slane %v788, 5
        %v1709 = vsel %vm1625, %v1707, %v1708
        %v1710 = vrot.slane %v789, 5
        %v1711 = vrot.slane %v1710, 4
        %v1712 = vrot.slane %v790, 5
        %v1713 = vsel %vm1625, %v1711, %v1712
        %v1714 = vrot.slane %v1712, 4
        %v1715 = vrot.slane %v791, 5
        %v1716 = vsel %vm1625, %v1714, %v1715
        %v1717 = vrot.slane %v792, 5
        %v1718 = vrot.slane %v1717, 4
        %v1719 = vrot.slane %v793, 5
        %v1720 = vsel %vm1625, %v1718, %v1719
        %v1721 = vrot.slane %v1719, 4
        %v1722 = vrot.slane %v794, 5
        %v1723 = vsel %vm1625, %v1721, %v1722
        %v1724 = vrot.slane %v795, 5
        %v1725 = vrot.slane %v1724, 4
        %v1726 = vrot.slane %v796, 5
        %v1727 = vsel %vm1625, %v1725, %v1726
        %v1728 = vrot.slane %v1726, 4
        %v1729 = vrot.slane %v797, 5
        %v1730 = vsel %vm1625, %v1728, %v1729
        %v1731 = vrot.slane %v798, 5
        %v1732 = vrot.slane %v1731, 4
        %v1733 = vrot.slane %v799, 5
        %v1734 = vsel %vm1625, %v1732, %v1733
        %v1735 = vrot.slane %v1733, 4
        %v1736 = vrot.slane %v800, 5
        %v1737 = vsel %vm1625, %v1735, %v1736
        %s1738 = scalar_lea.vmem %s1, 4
        %v1739 = vld [vmem:[%s1738] sm:$0x3]
        %v1740 = vunpack.c.l.b16 %v1629
        %v1741 = vunpack.c.l.b16 %v1632
        %v1742 = vunpack.c.l.b16 %v1636
        %v1743 = vunpack.c.l.b16 %v1639
        %v1744 = vunpack.c.l.b16 %v1643
        %v1745 = vunpack.c.l.b16 %v1646
        %v1746 = vunpack.c.l.b16 %v1650
        %v1747 = vunpack.c.l.b16 %v1653
        %v1748 = vunpack.c.l.b16 %v1657
        %v1749 = vunpack.c.l.b16 %v1660
        %v1750 = vunpack.c.l.b16 %v1664
        %v1751 = vunpack.c.l.b16 %v1667
        %v1752 = vunpack.c.l.b16 %v1671
        %v1753 = vunpack.c.l.b16 %v1674
        %v1754 = vunpack.c.l.b16 %v1678
        %v1755 = vunpack.c.l.b16 %v1681
        %v1756 = vunpack.c.l.b16 %v1685
        %v1757 = vunpack.c.l.b16 %v1688
        %v1758 = vunpack.c.l.b16 %v1692
        %v1759 = vunpack.c.l.b16 %v1695
        %v1760 = vunpack.c.l.b16 %v1699
        %v1761 = vunpack.c.l.b16 %v1702
        %v1762 = vunpack.c.l.b16 %v1706
        %v1763 = vunpack.c.l.b16 %v1709
        %v1764 = vunpack.c.l.b16 %v1713
        %v1765 = vunpack.c.l.b16 %v1716
        %v1766 = vunpack.c.l.b16 %v1720
        %v1767 = vunpack.c.l.b16 %v1723
        %v1768 = vunpack.c.l.b16 %v1727
        %v1769 = vunpack.c.l.b16 %v1730
        %v1770 = vunpack.c.l.b16 %v1734
        %v1771 = vunpack.c.l.b16 %v1737
        %v1772 = vpack.c.b16 %v1741, %v1740
        %v1773 = vpack.c.b16 %v1743, %v1742
        %v1774 = vpack.c.b16 %v1745, %v1744
        %v1775 = vpack.c.b16 %v1747, %v1746
        %v1776 = vpack.c.b16 %v1749, %v1748
        %v1777 = vpack.c.b16 %v1751, %v1750
        %v1778 = vpack.c.b16 %v1753, %v1752
        %v1779 = vpack.c.b16 %v1755, %v1754
        %v1780 = vpack.c.b16 %v1757, %v1756
        %v1781 = vpack.c.b16 %v1759, %v1758
        %v1782 = vpack.c.b16 %v1761, %v1760
        %v1783 = vpack.c.b16 %v1763, %v1762
        %v1784 = vpack.c.b16 %v1765, %v1764
        %v1785 = vpack.c.b16 %v1767, %v1766
        %v1786 = vpack.c.b16 %v1769, %v1768
        %v1787 = vpack.c.b16 %v1771, %v1770
        %v1789 = vsel %vm1245, %v1772, 0
        %v1792 = vsel %vm1245, %v1773, 0
        %v1795 = vsel %vm1245, %v1774, 0
        %v1798 = vsel %vm1245, %v1775, 0
        %v1801 = vsel %vm1245, %v1776, 0
        %v1804 = vsel %vm1245, %v1777, 0
        %v1807 = vsel %vm1245, %v1778, 0
        %v1810 = vsel %vm1245, %v1779, 0
        %v1813 = vsel %vm1245, %v1780, 0
        %v1816 = vsel %vm1245, %v1781, 0
        %v1819 = vsel %vm1245, %v1782, 0
        %v1822 = vsel %vm1245, %v1783, 0
        %v1825 = vsel %vm1245, %v1784, 0
        %v1828 = vsel %vm1245, %v1785, 0
        %v1831 = vsel %vm1245, %v1786, 0
        %v1834 = vsel %vm1245, %v1787, 0
        %v1837 = vsel %vm1294, %v1739, 0
        %1839 = vmatpush.bf16.msra.mxu0 0
        %1840 = vmatpush.bf16.msra.mxu0 0
        %1841 = vmatpush.bf16.msra.mxu0 0
        %1842 = vmatpush.bf16.msra.mxu0 0
        %1843 = vmatpush.bf16.msra.mxu0 0
        %1844 = vmatpush.bf16.msra.mxu0 0
        %1845 = vmatpush.bf16.msra.mxu0 0
        %1846 = vmatpush.bf16.msra.mxu0 %v1837
        %1847 = vmatmul.bf16.gmra.mxu0 %v1789
        %v1848 = vpop.f32.mrf.mxu0
        %v1849 = vadd.f32 0.0, %v1848
        %v1850 = vpop.f32.mrf.mxu0
        %v1851 = vadd.f32 0.0, %v1850
        %1852 = vmatmul.bf16.gmra.mxu0 %v1792
        %v1853 = vpop.f32.mrf.mxu0
        %v1854 = vadd.f32 0.0, %v1853
        %v1855 = vpop.f32.mrf.mxu0
        %v1856 = vadd.f32 0.0, %v1855
        %1857 = vmatmul.bf16.gmra.mxu0 %v1795
        %v1858 = vpop.f32.mrf.mxu0
        %v1859 = vadd.f32 0.0, %v1858
        %v1860 = vpop.f32.mrf.mxu0
        %v1861 = vadd.f32 0.0, %v1860
        %1862 = vmatmul.bf16.gmra.mxu0 %v1798
        %v1863 = vpop.f32.mrf.mxu0
        %v1864 = vadd.f32 0.0, %v1863
        %v1865 = vpop.f32.mrf.mxu0
        %v1866 = vadd.f32 0.0, %v1865
        %1867 = vmatmul.bf16.gmra.mxu0 %v1801
        %v1868 = vpop.f32.mrf.mxu0
        %v1869 = vadd.f32 0.0, %v1868
        %v1870 = vpop.f32.mrf.mxu0
        %v1871 = vadd.f32 0.0, %v1870
        %1872 = vmatmul.bf16.gmra.mxu0 %v1804
        %v1873 = vpop.f32.mrf.mxu0
        %v1874 = vadd.f32 0.0, %v1873
        %v1875 = vpop.f32.mrf.mxu0
        %v1876 = vadd.f32 0.0, %v1875
        %1877 = vmatmul.bf16.gmra.mxu0 %v1807
        %v1878 = vpop.f32.mrf.mxu0
        %v1879 = vadd.f32 0.0, %v1878
        %v1880 = vpop.f32.mrf.mxu0
        %v1881 = vadd.f32 0.0, %v1880
        %1882 = vmatmul.bf16.gmra.mxu0 %v1810
        %v1883 = vpop.f32.mrf.mxu0
        %v1884 = vadd.f32 0.0, %v1883
        %v1885 = vpop.f32.mrf.mxu0
        %v1886 = vadd.f32 0.0, %v1885
        %1887 = vmatmul.bf16.gmra.mxu0 %v1813
        %v1888 = vpop.f32.mrf.mxu0
        %v1889 = vadd.f32 0.0, %v1888
        %v1890 = vpop.f32.mrf.mxu0
        %v1891 = vadd.f32 0.0, %v1890
        %1892 = vmatmul.bf16.gmra.mxu0 %v1816
        %v1893 = vpop.f32.mrf.mxu0
        %v1894 = vadd.f32 0.0, %v1893
        %v1895 = vpop.f32.mrf.mxu0
        %v1896 = vadd.f32 0.0, %v1895
        %1897 = vmatmul.bf16.gmra.mxu0 %v1819
        %v1898 = vpop.f32.mrf.mxu0
        %v1899 = vadd.f32 0.0, %v1898
        %v1900 = vpop.f32.mrf.mxu0
        %v1901 = vadd.f32 0.0, %v1900
        %1902 = vmatmul.bf16.gmra.mxu0 %v1822
        %v1903 = vpop.f32.mrf.mxu0
        %v1904 = vadd.f32 0.0, %v1903
        %v1905 = vpop.f32.mrf.mxu0
        %v1906 = vadd.f32 0.0, %v1905
        %1907 = vmatmul.bf16.gmra.mxu0 %v1825
        %v1908 = vpop.f32.mrf.mxu0
        %v1909 = vadd.f32 0.0, %v1908
        %v1910 = vpop.f32.mrf.mxu0
        %v1911 = vadd.f32 0.0, %v1910
        %1912 = vmatmul.bf16.gmra.mxu0 %v1828
        %v1913 = vpop.f32.mrf.mxu0
        %v1914 = vadd.f32 0.0, %v1913
        %v1915 = vpop.f32.mrf.mxu0
        %v1916 = vadd.f32 0.0, %v1915
        %1917 = vmatmul.bf16.gmra.mxu0 %v1831
        %v1918 = vpop.f32.mrf.mxu0
        %v1919 = vadd.f32 0.0, %v1918
        %v1920 = vpop.f32.mrf.mxu0
        %v1921 = vadd.f32 0.0, %v1920
        %1922 = vmatmul.bf16.gmra.mxu0 %v1834
        %v1923 = vpop.f32.mrf.mxu0
        %v1924 = vadd.f32 0.0, %v1923
        %v1925 = vpop.f32.mrf.mxu0
        %v1926 = vadd.f32 0.0, %v1925
        %1927 = vdwg.mxu0
        %v1928 = vadd.f32 %v1528, %v1849
        %v1929 = vadd.f32 %v1530, %v1851
        %v1930 = vadd.f32 %v1533, %v1854
        %v1931 = vadd.f32 %v1535, %v1856
        %v1932 = vadd.f32 %v1538, %v1859
        %v1933 = vadd.f32 %v1540, %v1861
        %v1934 = vadd.f32 %v1543, %v1864
        %v1935 = vadd.f32 %v1545, %v1866
        %v1936 = vadd.f32 %v1548, %v1869
        %v1937 = vadd.f32 %v1550, %v1871
        %v1938 = vadd.f32 %v1553, %v1874
        %v1939 = vadd.f32 %v1555, %v1876
        %v1940 = vadd.f32 %v1558, %v1879
        %v1941 = vadd.f32 %v1560, %v1881
        %v1942 = vadd.f32 %v1563, %v1884
        %v1943 = vadd.f32 %v1565, %v1886
        %v1944 = vadd.f32 %v1568, %v1889
        %v1945 = vadd.f32 %v1570, %v1891
        %v1946 = vadd.f32 %v1573, %v1894
        %v1947 = vadd.f32 %v1575, %v1896
        %v1948 = vadd.f32 %v1578, %v1899
        %v1949 = vadd.f32 %v1580, %v1901
        %v1950 = vadd.f32 %v1583, %v1904
        %v1951 = vadd.f32 %v1585, %v1906
        %v1952 = vadd.f32 %v1588, %v1909
        %v1953 = vadd.f32 %v1590, %v1911
        %v1954 = vadd.f32 %v1593, %v1914
        %v1955 = vadd.f32 %v1595, %v1916
        %v1956 = vadd.f32 %v1598, %v1919
        %v1957 = vadd.f32 %v1600, %v1921
        %v1958 = vadd.f32 %v1603, %v1924
        %v1959 = vadd.f32 %v1605, %v1926
        %s1960 = scalar_lea.vmem %s1, 6
        %v1961 = vld [vmem:[%s1960] sm:$0x3]
        %v1964 = vunpack.c.l.b16 %v801
        %v1965 = vunpack.c.l.b16 %v802
        %v1966 = vpack.c.b16 %v1965, %v1964
        %v1968 = vsel %vm1245, %v1966, 0
        %v1971 = vsel %vm1294, %v1961, 0
        %1973 = vmatpush.bf16.msra.mxu0 0
        %1974 = vmatpush.bf16.msra.mxu0 0
        %1975 = vmatpush.bf16.msra.mxu0 0
        %1976 = vmatpush.bf16.msra.mxu0 0
        %1977 = vmatpush.bf16.msra.mxu0 0
        %1978 = vmatpush.bf16.msra.mxu0 0
        %1979 = vmatpush.bf16.msra.mxu0 0
        %1980 = vmatpush.bf16.msra.mxu0 %v1971
        %1981 = vmatmul.bf16.gmra.mxu0 %v1471
        %v1982 = vpop.f32.mrf.mxu0
        %v1983 = vadd.f32 0.0, %v1982
        %v1984 = vpop.f32.mrf.mxu0
        %v1985 = vadd.f32 0.0, %v1984
        %1986 = vmatmul.bf16.gmra.mxu0 %v1474
        %v1987 = vpop.f32.mrf.mxu0
        %v1988 = vadd.f32 0.0, %v1987
        %v1989 = vpop.f32.mrf.mxu0
        %v1990 = vadd.f32 0.0, %v1989
        %1991 = vmatmul.bf16.gmra.mxu0 %v1477
        %v1992 = vpop.f32.mrf.mxu0
        %v1993 = vadd.f32 0.0, %v1992
        %v1994 = vpop.f32.mrf.mxu0
        %v1995 = vadd.f32 0.0, %v1994
        %1996 = vmatmul.bf16.gmra.mxu0 %v1480
        %v1997 = vpop.f32.mrf.mxu0
        %v1998 = vadd.f32 0.0, %v1997
        %v1999 = vpop.f32.mrf.mxu0
        %v2000 = vadd.f32 0.0, %v1999
        %2001 = vmatmul.bf16.gmra.mxu0 %v1483
        %v2002 = vpop.f32.mrf.mxu0
        %v2003 = vadd.f32 0.0, %v2002
        %v2004 = vpop.f32.mrf.mxu0
        %v2005 = vadd.f32 0.0, %v2004
        %2006 = vmatmul.bf16.gmra.mxu0 %v1486
        %v2007 = vpop.f32.mrf.mxu0
        %v2008 = vadd.f32 0.0, %v2007
        %v2009 = vpop.f32.mrf.mxu0
        %v2010 = vadd.f32 0.0, %v2009
        %2011 = vmatmul.bf16.gmra.mxu0 %v1489
        %v2012 = vpop.f32.mrf.mxu0
        %v2013 = vadd.f32 0.0, %v2012
        %v2014 = vpop.f32.mrf.mxu0
        %v2015 = vadd.f32 0.0, %v2014
        %2016 = vmatmul.bf16.gmra.mxu0 %v1492
        %v2017 = vpop.f32.mrf.mxu0
        %v2018 = vadd.f32 0.0, %v2017
        %v2019 = vpop.f32.mrf.mxu0
        %v2020 = vadd.f32 0.0, %v2019
        %2021 = vmatmul.bf16.gmra.mxu0 %v1495
        %v2022 = vpop.f32.mrf.mxu0
        %v2023 = vadd.f32 0.0, %v2022
        %v2024 = vpop.f32.mrf.mxu0
        %v2025 = vadd.f32 0.0, %v2024
        %2026 = vmatmul.bf16.gmra.mxu0 %v1498
        %v2027 = vpop.f32.mrf.mxu0
        %v2028 = vadd.f32 0.0, %v2027
        %v2029 = vpop.f32.mrf.mxu0
        %v2030 = vadd.f32 0.0, %v2029
        %2031 = vmatmul.bf16.gmra.mxu0 %v1501
        %v2032 = vpop.f32.mrf.mxu0
        %v2033 = vadd.f32 0.0, %v2032
        %v2034 = vpop.f32.mrf.mxu0
        %v2035 = vadd.f32 0.0, %v2034
        %2036 = vmatmul.bf16.gmra.mxu0 %v1504
        %v2037 = vpop.f32.mrf.mxu0
        %v2038 = vadd.f32 0.0, %v2037
        %v2039 = vpop.f32.mrf.mxu0
        %v2040 = vadd.f32 0.0, %v2039
        %2041 = vmatmul.bf16.gmra.mxu0 %v1507
        %v2042 = vpop.f32.mrf.mxu0
        %v2043 = vadd.f32 0.0, %v2042
        %v2044 = vpop.f32.mrf.mxu0
        %v2045 = vadd.f32 0.0, %v2044
        %2046 = vmatmul.bf16.gmra.mxu0 %v1510
        %v2047 = vpop.f32.mrf.mxu0
        %v2048 = vadd.f32 0.0, %v2047
        %v2049 = vpop.f32.mrf.mxu0
        %v2050 = vadd.f32 0.0, %v2049
        %2051 = vmatmul.bf16.gmra.mxu0 %v1513
        %v2052 = vpop.f32.mrf.mxu0
        %v2053 = vadd.f32 0.0, %v2052
        %v2054 = vpop.f32.mrf.mxu0
        %v2055 = vadd.f32 0.0, %v2054
        %2056 = vmatmul.bf16.gmra.mxu0 %v1968
        %v2057 = vpop.f32.mrf.mxu0
        %v2058 = vadd.f32 0.0, %v2057
        %v2059 = vpop.f32.mrf.mxu0
        %v2060 = vadd.f32 0.0, %v2059
        %2061 = vdwg.mxu0
        %v2062 = vadd.f32 %v1928, %v1983
        %v2063 = vadd.f32 %v1929, %v1985
        %v2064 = vadd.f32 %v1930, %v1988
        %v2065 = vadd.f32 %v1931, %v1990
        %v2066 = vadd.f32 %v1932, %v1993
        %v2067 = vadd.f32 %v1933, %v1995
        %v2068 = vadd.f32 %v1934, %v1998
        %v2069 = vadd.f32 %v1935, %v2000
        %v2070 = vadd.f32 %v1936, %v2003
        %v2071 = vadd.f32 %v1937, %v2005
        %v2072 = vadd.f32 %v1938, %v2008
        %v2073 = vadd.f32 %v1939, %v2010
        %v2074 = vadd.f32 %v1940, %v2013
        %v2075 = vadd.f32 %v1941, %v2015
        %v2076 = vadd.f32 %v1942, %v2018
        %v2077 = vadd.f32 %v1943, %v2020
        %v2078 = vadd.f32 %v1944, %v2023
        %v2079 = vadd.f32 %v1945, %v2025
        %v2080 = vadd.f32 %v1946, %v2028
        %v2081 = vadd.f32 %v1947, %v2030
        %v2082 = vadd.f32 %v1948, %v2033
        %v2083 = vadd.f32 %v1949, %v2035
        %v2084 = vadd.f32 %v1950, %v2038
        %v2085 = vadd.f32 %v1951, %v2040
        %v2086 = vadd.f32 %v1952, %v2043
        %v2087 = vadd.f32 %v1953, %v2045
        %v2088 = vadd.f32 %v1954, %v2048
        %v2089 = vadd.f32 %v1955, %v2050
        %v2090 = vadd.f32 %v1956, %v2053
        %v2091 = vadd.f32 %v1957, %v2055
        %v2092 = vadd.f32 %v1958, %v2058
        %v2093 = vadd.f32 %v1959, %v2060
        %v2095 = vshrl.u32 %v801, 16
        %v2097 = vrot.slane %v2095, 4
        %v2098 = vshll.u32 %v801, 16
        %v2100 = vrot.slane %v2098, 5
        %v2101 = vor.u32 %v2097, %v2100
        %v2102 = vrot.slane %v2101, 4
        %v2104 = vshll.u32 %v802, 16
        %v2106 = vrot.slane %v2104, 5
        %v2107 = vsel %vm810, %v2102, %v2106
        %v2108 = vshrl.u32 %v802, 16
        %v2110 = vrot.slane %v2108, 4
        %v2111 = vor.u32 %v2110, %v2106
        %v2112 = vrot.slane %v2111, 4
        %v2114 = vshll.u32 %v803, 16
        %v2116 = vrot.slane %v2114, 5
        %v2117 = vsel %vm810, %v2112, %v2116
        %s2118 = scalar_lea.vmem %s1, 8
        %v2119 = vld [vmem:[%s2118] sm:$0x3]
        %v2120 = vunpack.c.l.b16 %v2107
        %v2121 = vunpack.c.l.b16 %v2117
        %v2122 = vpack.c.b16 %v2121, %v2120
        %v2124 = vsel %vm1245, %v2122, 0
        %v2127 = vsel %vm1294, %v2119, 0
        %2129 = vmatpush.bf16.msra.mxu0 0
        %2130 = vmatpush.bf16.msra.mxu0 0
        %2131 = vmatpush.bf16.msra.mxu0 0
        %2132 = vmatpush.bf16.msra.mxu0 0
        %2133 = vmatpush.bf16.msra.mxu0 0
        %2134 = vmatpush.bf16.msra.mxu0 0
        %2135 = vmatpush.bf16.msra.mxu0 0
        %2136 = vmatpush.bf16.msra.mxu0 %v2127
        %2137 = vmatmul.bf16.gmra.mxu0 %v1250
        %v2138 = vpop.f32.mrf.mxu0
        %v2139 = vadd.f32 0.0, %v2138
        %v2140 = vpop.f32.mrf.mxu0
        %v2141 = vadd.f32 0.0, %v2140
        %2142 = vmatmul.bf16.gmra.mxu0 %v1253
        %v2143 = vpop.f32.mrf.mxu0
        %v2144 = vadd.f32 0.0, %v2143
        %v2145 = vpop.f32.mrf.mxu0
        %v2146 = vadd.f32 0.0, %v2145
        %2147 = vmatmul.bf16.gmra.mxu0 %v1256
        %v2148 = vpop.f32.mrf.mxu0
        %v2149 = vadd.f32 0.0, %v2148
        %v2150 = vpop.f32.mrf.mxu0
        %v2151 = vadd.f32 0.0, %v2150
        %2152 = vmatmul.bf16.gmra.mxu0 %v1259
        %v2153 = vpop.f32.mrf.mxu0
        %v2154 = vadd.f32 0.0, %v2153
        %v2155 = vpop.f32.mrf.mxu0
        %v2156 = vadd.f32 0.0, %v2155
        %2157 = vmatmul.bf16.gmra.mxu0 %v1262
        %v2158 = vpop.f32.mrf.mxu0
        %v2159 = vadd.f32 0.0, %v2158
        %v2160 = vpop.f32.mrf.mxu0
        %v2161 = vadd.f32 0.0, %v2160
        %2162 = vmatmul.bf16.gmra.mxu0 %v1265
        %v2163 = vpop.f32.mrf.mxu0
        %v2164 = vadd.f32 0.0, %v2163
        %v2165 = vpop.f32.mrf.mxu0
        %v2166 = vadd.f32 0.0, %v2165
        %2167 = vmatmul.bf16.gmra.mxu0 %v1268
        %v2168 = vpop.f32.mrf.mxu0
        %v2169 = vadd.f32 0.0, %v2168
        %v2170 = vpop.f32.mrf.mxu0
        %v2171 = vadd.f32 0.0, %v2170
        %2172 = vmatmul.bf16.gmra.mxu0 %v1271
        %v2173 = vpop.f32.mrf.mxu0
        %v2174 = vadd.f32 0.0, %v2173
        %v2175 = vpop.f32.mrf.mxu0
        %v2176 = vadd.f32 0.0, %v2175
        %2177 = vmatmul.bf16.gmra.mxu0 %v1274
        %v2178 = vpop.f32.mrf.mxu0
        %v2179 = vadd.f32 0.0, %v2178
        %v2180 = vpop.f32.mrf.mxu0
        %v2181 = vadd.f32 0.0, %v2180
        %2182 = vmatmul.bf16.gmra.mxu0 %v1277
        %v2183 = vpop.f32.mrf.mxu0
        %v2184 = vadd.f32 0.0, %v2183
        %v2185 = vpop.f32.mrf.mxu0
        %v2186 = vadd.f32 0.0, %v2185
        %2187 = vmatmul.bf16.gmra.mxu0 %v1280
        %v2188 = vpop.f32.mrf.mxu0
        %v2189 = vadd.f32 0.0, %v2188
        %v2190 = vpop.f32.mrf.mxu0
        %v2191 = vadd.f32 0.0, %v2190
        %2192 = vmatmul.bf16.gmra.mxu0 %v1283
        %v2193 = vpop.f32.mrf.mxu0
        %v2194 = vadd.f32 0.0, %v2193
        %v2195 = vpop.f32.mrf.mxu0
        %v2196 = vadd.f32 0.0, %v2195
        %2197 = vmatmul.bf16.gmra.mxu0 %v1286
        %v2198 = vpop.f32.mrf.mxu0
        %v2199 = vadd.f32 0.0, %v2198
        %v2200 = vpop.f32.mrf.mxu0
        %v2201 = vadd.f32 0.0, %v2200
        %2202 = vmatmul.bf16.gmra.mxu0 %v1289
        %v2203 = vpop.f32.mrf.mxu0
        %v2204 = vadd.f32 0.0, %v2203
        %v2205 = vpop.f32.mrf.mxu0
        %v2206 = vadd.f32 0.0, %v2205
        %2207 = vmatmul.bf16.gmra.mxu0 %v1292
        %v2208 = vpop.f32.mrf.mxu0
        %v2209 = vadd.f32 0.0, %v2208
        %v2210 = vpop.f32.mrf.mxu0
        %v2211 = vadd.f32 0.0, %v2210
        %2212 = vmatmul.bf16.gmra.mxu0 %v2124
        %v2213 = vpop.f32.mrf.mxu0
        %v2214 = vadd.f32 0.0, %v2213
        %v2215 = vpop.f32.mrf.mxu0
        %v2216 = vadd.f32 0.0, %v2215
        %2217 = vdwg.mxu0
        %v2218 = vadd.f32 %v2062, %v2139
        %v2219 = vadd.f32 %v2063, %v2141
        %v2220 = vadd.f32 %v2064, %v2144
        %v2221 = vadd.f32 %v2065, %v2146
        %v2222 = vadd.f32 %v2066, %v2149
        %v2223 = vadd.f32 %v2067, %v2151
        %v2224 = vadd.f32 %v2068, %v2154
        %v2225 = vadd.f32 %v2069, %v2156
        %v2226 = vadd.f32 %v2070, %v2159
        %v2227 = vadd.f32 %v2071, %v2161
        %v2228 = vadd.f32 %v2072, %v2164
        %v2229 = vadd.f32 %v2073, %v2166
        %v2230 = vadd.f32 %v2074, %v2169
        %v2231 = vadd.f32 %v2075, %v2171
        %v2232 = vadd.f32 %v2076, %v2174
        %v2233 = vadd.f32 %v2077, %v2176
        %v2234 = vadd.f32 %v2078, %v2179
        %v2235 = vadd.f32 %v2079, %v2181
        %v2236 = vadd.f32 %v2080, %v2184
        %v2237 = vadd.f32 %v2081, %v2186
        %v2238 = vadd.f32 %v2082, %v2189
        %v2239 = vadd.f32 %v2083, %v2191
        %v2240 = vadd.f32 %v2084, %v2194
        %v2241 = vadd.f32 %v2085, %v2196
        %v2242 = vadd.f32 %v2086, %v2199
        %v2243 = vadd.f32 %v2087, %v2201
        %v2244 = vadd.f32 %v2088, %v2204
        %v2245 = vadd.f32 %v2089, %v2206
        %v2246 = vadd.f32 %v2090, %v2209
        %v2247 = vadd.f32 %v2091, %v2211
        %v2248 = vadd.f32 %v2092, %v2214
        %v2249 = vadd.f32 %v2093, %v2216
        %v2251 = vrot.slane %v801, 5
        %v2252 = vrot.slane %v2251, 4
        %v2253 = vrot.slane %v802, 5
        %v2254 = vsel %vm1625, %v2252, %v2253
        %v2255 = vrot.slane %v2253, 4
        %v2256 = vrot.slane %v803, 5
        %v2257 = vsel %vm1625, %v2255, %v2256
        %s2258 = scalar_lea.vmem %s1, 10
        %v2259 = vld [vmem:[%s2258] sm:$0x3]
        %v2260 = vunpack.c.l.b16 %v2254
        %v2261 = vunpack.c.l.b16 %v2257
        %v2262 = vpack.c.b16 %v2261, %v2260
        %v2264 = vsel %vm1245, %v2262, 0
        %v2267 = vsel %vm1294, %v2259, 0
        %2269 = vmatpush.bf16.msra.mxu0 0
        %2270 = vmatpush.bf16.msra.mxu0 0
        %2271 = vmatpush.bf16.msra.mxu0 0
        %2272 = vmatpush.bf16.msra.mxu0 0
        %2273 = vmatpush.bf16.msra.mxu0 0
        %2274 = vmatpush.bf16.msra.mxu0 0
        %2275 = vmatpush.bf16.msra.mxu0 0
        %2276 = vmatpush.bf16.msra.mxu0 %v2267
        %2277 = vmatmul.bf16.gmra.mxu0 %v1792
        %v2278 = vpop.f32.mrf.mxu0
        %v2279 = vadd.f32 0.0, %v2278
        %v2280 = vpop.f32.mrf.mxu0
        %v2281 = vadd.f32 0.0, %v2280
        %2282 = vmatmul.bf16.gmra.mxu0 %v1795
        %v2283 = vpop.f32.mrf.mxu0
        %v2284 = vadd.f32 0.0, %v2283
        %v2285 = vpop.f32.mrf.mxu0
        %v2286 = vadd.f32 0.0, %v2285
        %2287 = vmatmul.bf16.gmra.mxu0 %v1798
        %v2288 = vpop.f32.mrf.mxu0
        %v2289 = vadd.f32 0.0, %v2288
        %v2290 = vpop.f32.mrf.mxu0
        %v2291 = vadd.f32 0.0, %v2290
        %2292 = vmatmul.bf16.gmra.mxu0 %v1801
        %v2293 = vpop.f32.mrf.mxu0
        %v2294 = vadd.f32 0.0, %v2293
        %v2295 = vpop.f32.mrf.mxu0
        %v2296 = vadd.f32 0.0, %v2295
        %2297 = vmatmul.bf16.gmra.mxu0 %v1804
        %v2298 = vpop.f32.mrf.mxu0
        %v2299 = vadd.f32 0.0, %v2298
        %v2300 = vpop.f32.mrf.mxu0
        %v2301 = vadd.f32 0.0, %v2300
        %2302 = vmatmul.bf16.gmra.mxu0 %v1807
        %v2303 = vpop.f32.mrf.mxu0
        %v2304 = vadd.f32 0.0, %v2303
        %v2305 = vpop.f32.mrf.mxu0
        %v2306 = vadd.f32 0.0, %v2305
        %2307 = vmatmul.bf16.gmra.mxu0 %v1810
        %v2308 = vpop.f32.mrf.mxu0
        %v2309 = vadd.f32 0.0, %v2308
        %v2310 = vpop.f32.mrf.mxu0
        %v2311 = vadd.f32 0.0, %v2310
        %2312 = vmatmul.bf16.gmra.mxu0 %v1813
        %v2313 = vpop.f32.mrf.mxu0
        %v2314 = vadd.f32 0.0, %v2313
        %v2315 = vpop.f32.mrf.mxu0
        %v2316 = vadd.f32 0.0, %v2315
        %2317 = vmatmul.bf16.gmra.mxu0 %v1816
        %v2318 = vpop.f32.mrf.mxu0
        %v2319 = vadd.f32 0.0, %v2318
        %v2320 = vpop.f32.mrf.mxu0
        %v2321 = vadd.f32 0.0, %v2320
        %2322 = vmatmul.bf16.gmra.mxu0 %v1819
        %v2323 = vpop.f32.mrf.mxu0
        %v2324 = vadd.f32 0.0, %v2323
        %v2325 = vpop.f32.mrf.mxu0
        %v2326 = vadd.f32 0.0, %v2325
        %2327 = vmatmul.bf16.gmra.mxu0 %v1822
        %v2328 = vpop.f32.mrf.mxu0
        %v2329 = vadd.f32 0.0, %v2328
        %v2330 = vpop.f32.mrf.mxu0
        %v2331 = vadd.f32 0.0, %v2330
        %2332 = vmatmul.bf16.gmra.mxu0 %v1825
        %v2333 = vpop.f32.mrf.mxu0
        %v2334 = vadd.f32 0.0, %v2333
        %v2335 = vpop.f32.mrf.mxu0
        %v2336 = vadd.f32 0.0, %v2335
        %2337 = vmatmul.bf16.gmra.mxu0 %v1828
        %v2338 = vpop.f32.mrf.mxu0
        %v2339 = vadd.f32 0.0, %v2338
        %v2340 = vpop.f32.mrf.mxu0
        %v2341 = vadd.f32 0.0, %v2340
        %2342 = vmatmul.bf16.gmra.mxu0 %v1831
        %v2343 = vpop.f32.mrf.mxu0
        %v2344 = vadd.f32 0.0, %v2343
        %v2345 = vpop.f32.mrf.mxu0
        %v2346 = vadd.f32 0.0, %v2345
        %2347 = vmatmul.bf16.gmra.mxu0 %v1834
        %v2348 = vpop.f32.mrf.mxu0
        %v2349 = vadd.f32 0.0, %v2348
        %v2350 = vpop.f32.mrf.mxu0
        %v2351 = vadd.f32 0.0, %v2350
        %2352 = vmatmul.bf16.gmra.mxu0 %v2264
        %v2353 = vpop.f32.mrf.mxu0
        %v2354 = vadd.f32 0.0, %v2353
        %v2355 = vpop.f32.mrf.mxu0
        %v2356 = vadd.f32 0.0, %v2355
        %2357 = vdwg.mxu0
        %v2358 = vadd.f32 %v2218, %v2279
        %v2359 = vadd.f32 %v2219, %v2281
        %v2360 = vadd.f32 %v2220, %v2284
        %v2361 = vadd.f32 %v2221, %v2286
        %v2362 = vadd.f32 %v2222, %v2289
        %v2363 = vadd.f32 %v2223, %v2291
        %v2364 = vadd.f32 %v2224, %v2294
        %v2365 = vadd.f32 %v2225, %v2296
        %v2366 = vadd.f32 %v2226, %v2299
        %v2367 = vadd.f32 %v2227, %v2301
        %v2368 = vadd.f32 %v2228, %v2304
        %v2369 = vadd.f32 %v2229, %v2306
        %v2370 = vadd.f32 %v2230, %v2309
        %v2371 = vadd.f32 %v2231, %v2311
        %v2372 = vadd.f32 %v2232, %v2314
        %v2373 = vadd.f32 %v2233, %v2316
        %v2374 = vadd.f32 %v2234, %v2319
        %v2375 = vadd.f32 %v2235, %v2321
        %v2376 = vadd.f32 %v2236, %v2324
        %v2377 = vadd.f32 %v2237, %v2326
        %v2378 = vadd.f32 %v2238, %v2329
        %v2379 = vadd.f32 %v2239, %v2331
        %v2380 = vadd.f32 %v2240, %v2334
        %v2381 = vadd.f32 %v2241, %v2336
        %v2382 = vadd.f32 %v2242, %v2339
        %v2383 = vadd.f32 %v2243, %v2341
        %v2384 = vadd.f32 %v2244, %v2344
        %v2385 = vadd.f32 %v2245, %v2346
        %v2386 = vadd.f32 %v2246, %v2349
        %v2387 = vadd.f32 %v2247, %v2351
        %v2388 = vadd.f32 %v2248, %v2354
        %v2389 = vadd.f32 %v2249, %v2356
        %s2390 = scalar_lea.vmem %s1, 12
        %v2391 = vld [vmem:[%s2390] sm:$0x3]
        %v2394 = vunpack.c.l.b16 %v804
        %v2395 = vunpack.c.l.b16 %v805
        %v2396 = vpack.c.b16 %v2395, %v2394
        %v2398 = vsel %vm1245, %v2396, 0
        %v2401 = vsel %vm1294, %v2391, 0
        %2403 = vmatpush.bf16.msra.mxu0 0
        %2404 = vmatpush.bf16.msra.mxu0 0
        %2405 = vmatpush.bf16.msra.mxu0 0
        %2406 = vmatpush.bf16.msra.mxu0 0
        %2407 = vmatpush.bf16.msra.mxu0 0
        %2408 = vmatpush.bf16.msra.mxu0 0
        %2409 = vmatpush.bf16.msra.mxu0 0
        %2410 = vmatpush.bf16.msra.mxu0 %v2401
        %2411 = vmatmul.bf16.gmra.mxu0 %v1474
        %v2412 = vpop.f32.mrf.mxu0
        %v2413 = vadd.f32 0.0, %v2412
        %v2414 = vpop.f32.mrf.mxu0
        %v2415 = vadd.f32 0.0, %v2414
        %2416 = vmatmul.bf16.gmra.mxu0 %v1477
        %v2417 = vpop.f32.mrf.mxu0
        %v2418 = vadd.f32 0.0, %v2417
        %v2419 = vpop.f32.mrf.mxu0
        %v2420 = vadd.f32 0.0, %v2419
        %2421 = vmatmul.bf16.gmra.mxu0 %v1480
        %v2422 = vpop.f32.mrf.mxu0
        %v2423 = vadd.f32 0.0, %v2422
        %v2424 = vpop.f32.mrf.mxu0
        %v2425 = vadd.f32 0.0, %v2424
        %2426 = vmatmul.bf16.gmra.mxu0 %v1483
        %v2427 = vpop.f32.mrf.mxu0
        %v2428 = vadd.f32 0.0, %v2427
        %v2429 = vpop.f32.mrf.mxu0
        %v2430 = vadd.f32 0.0, %v2429
        %2431 = vmatmul.bf16.gmra.mxu0 %v1486
        %v2432 = vpop.f32.mrf.mxu0
        %v2433 = vadd.f32 0.0, %v2432
        %v2434 = vpop.f32.mrf.mxu0
        %v2435 = vadd.f32 0.0, %v2434
        %2436 = vmatmul.bf16.gmra.mxu0 %v1489
        %v2437 = vpop.f32.mrf.mxu0
        %v2438 = vadd.f32 0.0, %v2437
        %v2439 = vpop.f32.mrf.mxu0
        %v2440 = vadd.f32 0.0, %v2439
        %2441 = vmatmul.bf16.gmra.mxu0 %v1492
        %v2442 = vpop.f32.mrf.mxu0
        %v2443 = vadd.f32 0.0, %v2442
        %v2444 = vpop.f32.mrf.mxu0
        %v2445 = vadd.f32 0.0, %v2444
        %2446 = vmatmul.bf16.gmra.mxu0 %v1495
        %v2447 = vpop.f32.mrf.mxu0
        %v2448 = vadd.f32 0.0, %v2447
        %v2449 = vpop.f32.mrf.mxu0
        %v2450 = vadd.f32 0.0, %v2449
        %2451 = vmatmul.bf16.gmra.mxu0 %v1498
        %v2452 = vpop.f32.mrf.mxu0
        %v2453 = vadd.f32 0.0, %v2452
        %v2454 = vpop.f32.mrf.mxu0
        %v2455 = vadd.f32 0.0, %v2454
        %2456 = vmatmul.bf16.gmra.mxu0 %v1501
        %v2457 = vpop.f32.mrf.mxu0
        %v2458 = vadd.f32 0.0, %v2457
        %v2459 = vpop.f32.mrf.mxu0
        %v2460 = vadd.f32 0.0, %v2459
        %2461 = vmatmul.bf16.gmra.mxu0 %v1504
        %v2462 = vpop.f32.mrf.mxu0
        %v2463 = vadd.f32 0.0, %v2462
        %v2464 = vpop.f32.mrf.mxu0
        %v2465 = vadd.f32 0.0, %v2464
        %2466 = vmatmul.bf16.gmra.mxu0 %v1507
        %v2467 = vpop.f32.mrf.mxu0
        %v2468 = vadd.f32 0.0, %v2467
        %v2469 = vpop.f32.mrf.mxu0
        %v2470 = vadd.f32 0.0, %v2469
        %2471 = vmatmul.bf16.gmra.mxu0 %v1510
        %v2472 = vpop.f32.mrf.mxu0
        %v2473 = vadd.f32 0.0, %v2472
        %v2474 = vpop.f32.mrf.mxu0
        %v2475 = vadd.f32 0.0, %v2474
        %2476 = vmatmul.bf16.gmra.mxu0 %v1513
        %v2477 = vpop.f32.mrf.mxu0
        %v2478 = vadd.f32 0.0, %v2477
        %v2479 = vpop.f32.mrf.mxu0
        %v2480 = vadd.f32 0.0, %v2479
        %2481 = vmatmul.bf16.gmra.mxu0 %v1968
        %v2482 = vpop.f32.mrf.mxu0
        %v2483 = vadd.f32 0.0, %v2482
        %v2484 = vpop.f32.mrf.mxu0
        %v2485 = vadd.f32 0.0, %v2484
        %2486 = vmatmul.bf16.gmra.mxu0 %v2398
        %v2487 = vpop.f32.mrf.mxu0
        %v2488 = vadd.f32 0.0, %v2487
        %v2489 = vpop.f32.mrf.mxu0
        %v2490 = vadd.f32 0.0, %v2489
        %2491 = vdwg.mxu0
        %v2492 = vadd.f32 %v2358, %v2413
        %v2493 = vadd.f32 %v2359, %v2415
        %v2494 = vadd.f32 %v2360, %v2418
        %v2495 = vadd.f32 %v2361, %v2420
        %v2496 = vadd.f32 %v2362, %v2423
        %v2497 = vadd.f32 %v2363, %v2425
        %v2498 = vadd.f32 %v2364, %v2428
        %v2499 = vadd.f32 %v2365, %v2430
        %v2500 = vadd.f32 %v2366, %v2433
        %v2501 = vadd.f32 %v2367, %v2435
        %v2502 = vadd.f32 %v2368, %v2438
        %v2503 = vadd.f32 %v2369, %v2440
        %v2504 = vadd.f32 %v2370, %v2443
        %v2505 = vadd.f32 %v2371, %v2445
        %v2506 = vadd.f32 %v2372, %v2448
        %v2507 = vadd.f32 %v2373, %v2450
        %v2508 = vadd.f32 %v2374, %v2453
        %v2509 = vadd.f32 %v2375, %v2455
        %v2510 = vadd.f32 %v2376, %v2458
        %v2511 = vadd.f32 %v2377, %v2460
        %v2512 = vadd.f32 %v2378, %v2463
        %v2513 = vadd.f32 %v2379, %v2465
        %v2514 = vadd.f32 %v2380, %v2468
        %v2515 = vadd.f32 %v2381, %v2470
        %v2516 = vadd.f32 %v2382, %v2473
        %v2517 = vadd.f32 %v2383, %v2475
        %v2518 = vadd.f32 %v2384, %v2478
        %v2519 = vadd.f32 %v2385, %v2480
        %v2520 = vadd.f32 %v2386, %v2483
        %v2521 = vadd.f32 %v2387, %v2485
        %v2522 = vadd.f32 %v2388, %v2488
        %v2523 = vadd.f32 %v2389, %v2490
        %v2525 = vshrl.u32 %v804, 16
        %v2527 = vrot.slane %v2525, 4
        %v2528 = vshll.u32 %v804, 16
        %v2530 = vrot.slane %v2528, 5
        %v2531 = vor.u32 %v2527, %v2530
        %v2532 = vrot.slane %v2531, 4
        %v2534 = vshll.u32 %v805, 16
        %v2536 = vrot.slane %v2534, 5
        %v2537 = vsel %vm810, %v2532, %v2536
        %v2538 = vshrl.u32 %v805, 16
        %v2540 = vrot.slane %v2538, 4
        %v2541 = vor.u32 %v2540, %v2536
        %v2542 = vrot.slane %v2541, 4
        %v2544 = vshll.u32 %v806, 16
        %v2546 = vrot.slane %v2544, 5
        %v2547 = vsel %vm810, %v2542, %v2546
        %s2548 = scalar_lea.vmem %s1, 14
        %v2549 = vld [vmem:[%s2548] sm:$0x3]
        %v2550 = vunpack.c.l.b16 %v2537
        %v2551 = vunpack.c.l.b16 %v2547
        %v2552 = vpack.c.b16 %v2551, %v2550
        %v2554 = vsel %vm1245, %v2552, 0
        %v2557 = vsel %vm1294, %v2549, 0
        %2559 = vmatpush.bf16.msra.mxu0 0
        %2560 = vmatpush.bf16.msra.mxu0 0
        %2561 = vmatpush.bf16.msra.mxu0 0
        %2562 = vmatpush.bf16.msra.mxu0 0
        %2563 = vmatpush.bf16.msra.mxu0 0
        %2564 = vmatpush.bf16.msra.mxu0 0
        %2565 = vmatpush.bf16.msra.mxu0 0
        %2566 = vmatpush.bf16.msra.mxu0 %v2557
        %2567 = vmatmul.bf16.gmra.mxu0 %v1253
        %v2568 = vpop.f32.mrf.mxu0
        %v2569 = vadd.f32 0.0, %v2568
        %v2570 = vpop.f32.mrf.mxu0
        %v2571 = vadd.f32 0.0, %v2570
        %2572 = vmatmul.bf16.gmra.mxu0 %v1256
        %v2573 = vpop.f32.mrf.mxu0
        %v2574 = vadd.f32 0.0, %v2573
        %v2575 = vpop.f32.mrf.mxu0
        %v2576 = vadd.f32 0.0, %v2575
        %2577 = vmatmul.bf16.gmra.mxu0 %v1259
        %v2578 = vpop.f32.mrf.mxu0
        %v2579 = vadd.f32 0.0, %v2578
        %v2580 = vpop.f32.mrf.mxu0
        %v2581 = vadd.f32 0.0, %v2580
        %2582 = vmatmul.bf16.gmra.mxu0 %v1262
        %v2583 = vpop.f32.mrf.mxu0
        %v2584 = vadd.f32 0.0, %v2583
        %v2585 = vpop.f32.mrf.mxu0
        %v2586 = vadd.f32 0.0, %v2585
        %2587 = vmatmul.bf16.gmra.mxu0 %v1265
        %v2588 = vpop.f32.mrf.mxu0
        %v2589 = vadd.f32 0.0, %v2588
        %v2590 = vpop.f32.mrf.mxu0
        %v2591 = vadd.f32 0.0, %v2590
        %2592 = vmatmul.bf16.gmra.mxu0 %v1268
        %v2593 = vpop.f32.mrf.mxu0
        %v2594 = vadd.f32 0.0, %v2593
        %v2595 = vpop.f32.mrf.mxu0
        %v2596 = vadd.f32 0.0, %v2595
        %2597 = vmatmul.bf16.gmra.mxu0 %v1271
        %v2598 = vpop.f32.mrf.mxu0
        %v2599 = vadd.f32 0.0, %v2598
        %v2600 = vpop.f32.mrf.mxu0
        %v2601 = vadd.f32 0.0, %v2600
        %2602 = vmatmul.bf16.gmra.mxu0 %v1274
        %v2603 = vpop.f32.mrf.mxu0
        %v2604 = vadd.f32 0.0, %v2603
        %v2605 = vpop.f32.mrf.mxu0
        %v2606 = vadd.f32 0.0, %v2605
        %2607 = vmatmul.bf16.gmra.mxu0 %v1277
        %v2608 = vpop.f32.mrf.mxu0
        %v2609 = vadd.f32 0.0, %v2608
        %v2610 = vpop.f32.mrf.mxu0
        %v2611 = vadd.f32 0.0, %v2610
        %2612 = vmatmul.bf16.gmra.mxu0 %v1280
        %v2613 = vpop.f32.mrf.mxu0
        %v2614 = vadd.f32 0.0, %v2613
        %v2615 = vpop.f32.mrf.mxu0
        %v2616 = vadd.f32 0.0, %v2615
        %2617 = vmatmul.bf16.gmra.mxu0 %v1283
        %v2618 = vpop.f32.mrf.mxu0
        %v2619 = vadd.f32 0.0, %v2618
        %v2620 = vpop.f32.mrf.mxu0
        %v2621 = vadd.f32 0.0, %v2620
        %2622 = vmatmul.bf16.gmra.mxu0 %v1286
        %v2623 = vpop.f32.mrf.mxu0
        %v2624 = vadd.f32 0.0, %v2623
        %v2625 = vpop.f32.mrf.mxu0
        %v2626 = vadd.f32 0.0, %v2625
        %2627 = vmatmul.bf16.gmra.mxu0 %v1289
        %v2628 = vpop.f32.mrf.mxu0
        %v2629 = vadd.f32 0.0, %v2628
        %v2630 = vpop.f32.mrf.mxu0
        %v2631 = vadd.f32 0.0, %v2630
        %2632 = vmatmul.bf16.gmra.mxu0 %v1292
        %v2633 = vpop.f32.mrf.mxu0
        %v2634 = vadd.f32 0.0, %v2633
        %v2635 = vpop.f32.mrf.mxu0
        %v2636 = vadd.f32 0.0, %v2635
        %2637 = vmatmul.bf16.gmra.mxu0 %v2124
        %v2638 = vpop.f32.mrf.mxu0
        %v2639 = vadd.f32 0.0, %v2638
        %v2640 = vpop.f32.mrf.mxu0
        %v2641 = vadd.f32 0.0, %v2640
        %2642 = vmatmul.bf16.gmra.mxu0 %v2554
        %v2643 = vpop.f32.mrf.mxu0
        %v2644 = vadd.f32 0.0, %v2643
        %v2645 = vpop.f32.mrf.mxu0
        %v2646 = vadd.f32 0.0, %v2645
        %2647 = vdwg.mxu0
        %v2648 = vadd.f32 %v2492, %v2569
        %v2649 = vadd.f32 %v2493, %v2571
        %v2650 = vadd.f32 %v2494, %v2574
        %v2651 = vadd.f32 %v2495, %v2576
        %v2652 = vadd.f32 %v2496, %v2579
        %v2653 = vadd.f32 %v2497, %v2581
        %v2654 = vadd.f32 %v2498, %v2584
        %v2655 = vadd.f32 %v2499, %v2586
        %v2656 = vadd.f32 %v2500, %v2589
        %v2657 = vadd.f32 %v2501, %v2591
        %v2658 = vadd.f32 %v2502, %v2594
        %v2659 = vadd.f32 %v2503, %v2596
        %v2660 = vadd.f32 %v2504, %v2599
        %v2661 = vadd.f32 %v2505, %v2601
        %v2662 = vadd.f32 %v2506, %v2604
        %v2663 = vadd.f32 %v2507, %v2606
        %v2664 = vadd.f32 %v2508, %v2609
        %v2665 = vadd.f32 %v2509, %v2611
        %v2666 = vadd.f32 %v2510, %v2614
        %v2667 = vadd.f32 %v2511, %v2616
        %v2668 = vadd.f32 %v2512, %v2619
        %v2669 = vadd.f32 %v2513, %v2621
        %v2670 = vadd.f32 %v2514, %v2624
        %v2671 = vadd.f32 %v2515, %v2626
        %v2672 = vadd.f32 %v2516, %v2629
        %v2673 = vadd.f32 %v2517, %v2631
        %v2674 = vadd.f32 %v2518, %v2634
        %v2675 = vadd.f32 %v2519, %v2636
        %v2676 = vadd.f32 %v2520, %v2639
        %v2677 = vadd.f32 %v2521, %v2641
        %v2678 = vadd.f32 %v2522, %v2644
        %v2679 = vadd.f32 %v2523, %v2646
        %v2681 = vrot.slane %v804, 5
        %v2682 = vrot.slane %v2681, 4
        %v2683 = vrot.slane %v805, 5
        %v2684 = vsel %vm1625, %v2682, %v2683
        %v2685 = vrot.slane %v2683, 4
        %v2686 = vrot.slane %v806, 5
        %v2687 = vsel %vm1625, %v2685, %v2686
        %s2688 = scalar_lea.vmem %s1, 16
        %v2689 = vld [vmem:[%s2688] sm:$0x3]
        %v2690 = vunpack.c.l.b16 %v2684
        %v2691 = vunpack.c.l.b16 %v2687
        %v2692 = vpack.c.b16 %v2691, %v2690
        %v2694 = vsel %vm1245, %v2692, 0
        %v2697 = vsel %vm1294, %v2689, 0
        %2699 = vmatpush.bf16.msra.mxu0 0
        %2700 = vmatpush.bf16.msra.mxu0 0
        %2701 = vmatpush.bf16.msra.mxu0 0
        %2702 = vmatpush.bf16.msra.mxu0 0
        %2703 = vmatpush.bf16.msra.mxu0 0
        %2704 = vmatpush.bf16.msra.mxu0 0
        %2705 = vmatpush.bf16.msra.mxu0 0
        %2706 = vmatpush.bf16.msra.mxu0 %v2697
        %2707 = vmatmul.bf16.gmra.mxu0 %v1795
        %v2708 = vpop.f32.mrf.mxu0
        %v2709 = vadd.f32 0.0, %v2708
        %v2710 = vpop.f32.mrf.mxu0
        %v2711 = vadd.f32 0.0, %v2710
        %2712 = vmatmul.bf16.gmra.mxu0 %v1798
        %v2713 = vpop.f32.mrf.mxu0
        %v2714 = vadd.f32 0.0, %v2713
        %v2715 = vpop.f32.mrf.mxu0
        %v2716 = vadd.f32 0.0, %v2715
        %2717 = vmatmul.bf16.gmra.mxu0 %v1801
        %v2718 = vpop.f32.mrf.mxu0
        %v2719 = vadd.f32 0.0, %v2718
        %v2720 = vpop.f32.mrf.mxu0
        %v2721 = vadd.f32 0.0, %v2720
        %2722 = vmatmul.bf16.gmra.mxu0 %v1804
        %v2723 = vpop.f32.mrf.mxu0
        %v2724 = vadd.f32 0.0, %v2723
        %v2725 = vpop.f32.mrf.mxu0
        %v2726 = vadd.f32 0.0, %v2725
        %2727 = vmatmul.bf16.gmra.mxu0 %v1807
        %v2728 = vpop.f32.mrf.mxu0
        %v2729 = vadd.f32 0.0, %v2728
        %v2730 = vpop.f32.mrf.mxu0
        %v2731 = vadd.f32 0.0, %v2730
        %2732 = vmatmul.bf16.gmra.mxu0 %v1810
        %v2733 = vpop.f32.mrf.mxu0
        %v2734 = vadd.f32 0.0, %v2733
        %v2735 = vpop.f32.mrf.mxu0
        %v2736 = vadd.f32 0.0, %v2735
        %2737 = vmatmul.bf16.gmra.mxu0 %v1813
        %v2738 = vpop.f32.mrf.mxu0
        %v2739 = vadd.f32 0.0, %v2738
        %v2740 = vpop.f32.mrf.mxu0
        %v2741 = vadd.f32 0.0, %v2740
        %2742 = vmatmul.bf16.gmra.mxu0 %v1816
        %v2743 = vpop.f32.mrf.mxu0
        %v2744 = vadd.f32 0.0, %v2743
        %v2745 = vpop.f32.mrf.mxu0
        %v2746 = vadd.f32 0.0, %v2745
        %2747 = vmatmul.bf16.gmra.mxu0 %v1819
        %v2748 = vpop.f32.mrf.mxu0
        %v2749 = vadd.f32 0.0, %v2748
        %v2750 = vpop.f32.mrf.mxu0
        %v2751 = vadd.f32 0.0, %v2750
        %2752 = vmatmul.bf16.gmra.mxu0 %v1822
        %v2753 = vpop.f32.mrf.mxu0
        %v2754 = vadd.f32 0.0, %v2753
        %v2755 = vpop.f32.mrf.mxu0
        %v2756 = vadd.f32 0.0, %v2755
        %2757 = vmatmul.bf16.gmra.mxu0 %v1825
        %v2758 = vpop.f32.mrf.mxu0
        %v2759 = vadd.f32 0.0, %v2758
        %v2760 = vpop.f32.mrf.mxu0
        %v2761 = vadd.f32 0.0, %v2760
        %2762 = vmatmul.bf16.gmra.mxu0 %v1828
        %v2763 = vpop.f32.mrf.mxu0
        %v2764 = vadd.f32 0.0, %v2763
        %v2765 = vpop.f32.mrf.mxu0
        %v2766 = vadd.f32 0.0, %v2765
        %2767 = vmatmul.bf16.gmra.mxu0 %v1831
        %v2768 = vpop.f32.mrf.mxu0
        %v2769 = vadd.f32 0.0, %v2768
        %v2770 = vpop.f32.mrf.mxu0
        %v2771 = vadd.f32 0.0, %v2770
        %2772 = vmatmul.bf16.gmra.mxu0 %v1834
        %v2773 = vpop.f32.mrf.mxu0
        %v2774 = vadd.f32 0.0, %v2773
        %v2775 = vpop.f32.mrf.mxu0
        %v2776 = vadd.f32 0.0, %v2775
        %2777 = vmatmul.bf16.gmra.mxu0 %v2264
        %v2778 = vpop.f32.mrf.mxu0
        %v2779 = vadd.f32 0.0, %v2778
        %v2780 = vpop.f32.mrf.mxu0
        %v2781 = vadd.f32 0.0, %v2780
        %2782 = vmatmul.bf16.gmra.mxu0 %v2694
        %v2783 = vpop.f32.mrf.mxu0
        %v2784 = vadd.f32 0.0, %v2783
        %v2785 = vpop.f32.mrf.mxu0
        %v2786 = vadd.f32 0.0, %v2785
        %2787 = vdwg.mxu0
        %v2788 = vadd.f32 %v2648, %v2709
        %v2789 = vadd.f32 %v2649, %v2711
        %v2790 = vadd.f32 %v2650, %v2714
        %v2791 = vadd.f32 %v2651, %v2716
        %v2792 = vadd.f32 %v2652, %v2719
        %v2793 = vadd.f32 %v2653, %v2721
        %v2794 = vadd.f32 %v2654, %v2724
        %v2795 = vadd.f32 %v2655, %v2726
        %v2796 = vadd.f32 %v2656, %v2729
        %v2797 = vadd.f32 %v2657, %v2731
        %v2798 = vadd.f32 %v2658, %v2734
        %v2799 = vadd.f32 %v2659, %v2736
        %v2800 = vadd.f32 %v2660, %v2739
        %v2801 = vadd.f32 %v2661, %v2741
        %v2802 = vadd.f32 %v2662, %v2744
        %v2803 = vadd.f32 %v2663, %v2746
        %v2804 = vadd.f32 %v2664, %v2749
        %v2805 = vadd.f32 %v2665, %v2751
        %v2806 = vadd.f32 %v2666, %v2754
        %v2807 = vadd.f32 %v2667, %v2756
        %v2808 = vadd.f32 %v2668, %v2759
        %v2809 = vadd.f32 %v2669, %v2761
        %v2810 = vadd.f32 %v2670, %v2764
        %v2811 = vadd.f32 %v2671, %v2766
        %v2812 = vadd.f32 %v2672, %v2769
        %v2813 = vadd.f32 %v2673, %v2771
        %v2814 = vadd.f32 %v2674, %v2774
        %v2815 = vadd.f32 %v2675, %v2776
        %v2816 = vadd.f32 %v2676, %v2779
        %v2817 = vadd.f32 %v2677, %v2781
        %v2818 = vadd.f32 %v2678, %v2784
        %v2819 = vadd.f32 %v2679, %v2786
        %v2820 = vld [vmem:[%s2] sm:$0x1]
        %v2822 = vperm.slane %v2820, 0
        %v2824 = vadd.f32 %v2788, %v2822
        %v2825 = vadd.f32 %v2789, %v2822
        %v2826 = vadd.f32 %v2790, %v2822
        %v2827 = vadd.f32 %v2791, %v2822
        %v2828 = vadd.f32 %v2792, %v2822
        %v2829 = vadd.f32 %v2793, %v2822
        %v2830 = vadd.f32 %v2794, %v2822
        %v2831 = vadd.f32 %v2795, %v2822
        %v2832 = vadd.f32 %v2796, %v2822
        %v2833 = vadd.f32 %v2797, %v2822
        %v2834 = vadd.f32 %v2798, %v2822
        %v2835 = vadd.f32 %v2799, %v2822
        %v2836 = vadd.f32 %v2800, %v2822
        %v2837 = vadd.f32 %v2801, %v2822
        %v2838 = vadd.f32 %v2802, %v2822
        %v2839 = vadd.f32 %v2803, %v2822
        %v2840 = vadd.f32 %v2804, %v2822
        %v2841 = vadd.f32 %v2805, %v2822
        %v2842 = vadd.f32 %v2806, %v2822
        %v2843 = vadd.f32 %v2807, %v2822
        %v2844 = vadd.f32 %v2808, %v2822
        %v2845 = vadd.f32 %v2809, %v2822
        %v2846 = vadd.f32 %v2810, %v2822
        %v2847 = vadd.f32 %v2811, %v2822
        %v2848 = vadd.f32 %v2812, %v2822
        %v2849 = vadd.f32 %v2813, %v2822
        %v2850 = vadd.f32 %v2814, %v2822
        %v2851 = vadd.f32 %v2815, %v2822
        %v2852 = vadd.f32 %v2816, %v2822
        %v2853 = vadd.f32 %v2817, %v2822
        %v2854 = vadd.f32 %v2818, %v2822
        %v2855 = vadd.f32 %v2819, %v2822
        %vm2856 = vcmp.ge.f32.partialorder %v2824, 0.0
        %vm2857 = vcmp.ge.f32.partialorder %v2825, 0.0
        %vm2858 = vcmp.ge.f32.partialorder %v2826, 0.0
        %vm2859 = vcmp.ge.f32.partialorder %v2827, 0.0
        %vm2860 = vcmp.ge.f32.partialorder %v2828, 0.0
        %vm2861 = vcmp.ge.f32.partialorder %v2829, 0.0
        %vm2862 = vcmp.ge.f32.partialorder %v2830, 0.0
        %vm2863 = vcmp.ge.f32.partialorder %v2831, 0.0
        %vm2864 = vcmp.ge.f32.partialorder %v2832, 0.0
        %vm2865 = vcmp.ge.f32.partialorder %v2833, 0.0
        %vm2866 = vcmp.ge.f32.partialorder %v2834, 0.0
        %vm2867 = vcmp.ge.f32.partialorder %v2835, 0.0
        %vm2868 = vcmp.ge.f32.partialorder %v2836, 0.0
        %vm2869 = vcmp.ge.f32.partialorder %v2837, 0.0
        %vm2870 = vcmp.ge.f32.partialorder %v2838, 0.0
        %vm2871 = vcmp.ge.f32.partialorder %v2839, 0.0
        %vm2872 = vcmp.ge.f32.partialorder %v2840, 0.0
        %vm2873 = vcmp.ge.f32.partialorder %v2841, 0.0
        %vm2874 = vcmp.ge.f32.partialorder %v2842, 0.0
        %vm2875 = vcmp.ge.f32.partialorder %v2843, 0.0
        %vm2876 = vcmp.ge.f32.partialorder %v2844, 0.0
        %vm2877 = vcmp.ge.f32.partialorder %v2845, 0.0
        %vm2878 = vcmp.ge.f32.partialorder %v2846, 0.0
        %vm2879 = vcmp.ge.f32.partialorder %v2847, 0.0
        %vm2880 = vcmp.ge.f32.partialorder %v2848, 0.0
        %vm2881 = vcmp.ge.f32.partialorder %v2849, 0.0
        %vm2882 = vcmp.ge.f32.partialorder %v2850, 0.0
        %vm2883 = vcmp.ge.f32.partialorder %v2851, 0.0
        %vm2884 = vcmp.ge.f32.partialorder %v2852, 0.0
        %vm2885 = vcmp.ge.f32.partialorder %v2853, 0.0
        %vm2886 = vcmp.ge.f32.partialorder %v2854, 0.0
        %vm2887 = vcmp.ge.f32.partialorder %v2855, 0.0
        %v2888 = vmul.f32 %v2824, 0.01
        %v2889 = vmul.f32 %v2825, 0.01
        %v2890 = vmul.f32 %v2826, 0.01
        %v2891 = vmul.f32 %v2827, 0.01
        %v2892 = vmul.f32 %v2828, 0.01
        %v2893 = vmul.f32 %v2829, 0.01
        %v2894 = vmul.f32 %v2830, 0.01
        %v2895 = vmul.f32 %v2831, 0.01
        %v2896 = vmul.f32 %v2832, 0.01
        %v2897 = vmul.f32 %v2833, 0.01
        %v2898 = vmul.f32 %v2834, 0.01
        %v2899 = vmul.f32 %v2835, 0.01
        %v2900 = vmul.f32 %v2836, 0.01
        %v2901 = vmul.f32 %v2837, 0.01
        %v2902 = vmul.f32 %v2838, 0.01
        %v2903 = vmul.f32 %v2839, 0.01
        %v2904 = vmul.f32 %v2840, 0.01
        %v2905 = vmul.f32 %v2841, 0.01
        %v2906 = vmul.f32 %v2842, 0.01
        %v2907 = vmul.f32 %v2843, 0.01
        %v2908 = vmul.f32 %v2844, 0.01
        %v2909 = vmul.f32 %v2845, 0.01
        %v2910 = vmul.f32 %v2846, 0.01
        %v2911 = vmul.f32 %v2847, 0.01
        %v2912 = vmul.f32 %v2848, 0.01
        %v2913 = vmul.f32 %v2849, 0.01
        %v2914 = vmul.f32 %v2850, 0.01
        %v2915 = vmul.f32 %v2851, 0.01
        %v2916 = vmul.f32 %v2852, 0.01
        %v2917 = vmul.f32 %v2853, 0.01
        %v2918 = vmul.f32 %v2854, 0.01
        %v2919 = vmul.f32 %v2855, 0.01
        %v2920 = vsel %vm2856, %v2824, %v2888
        %v2921 = vsel %vm2857, %v2825, %v2889
        %v2922 = vsel %vm2858, %v2826, %v2890
        %v2923 = vsel %vm2859, %v2827, %v2891
        %v2924 = vsel %vm2860, %v2828, %v2892
        %v2925 = vsel %vm2861, %v2829, %v2893
        %v2926 = vsel %vm2862, %v2830, %v2894
        %v2927 = vsel %vm2863, %v2831, %v2895
        %v2928 = vsel %vm2864, %v2832, %v2896
        %v2929 = vsel %vm2865, %v2833, %v2897
        %v2930 = vsel %vm2866, %v2834, %v2898
        %v2931 = vsel %vm2867, %v2835, %v2899
        %v2932 = vsel %vm2868, %v2836, %v2900
        %v2933 = vsel %vm2869, %v2837, %v2901
        %v2934 = vsel %vm2870, %v2838, %v2902
        %v2935 = vsel %vm2871, %v2839, %v2903
        %v2936 = vsel %vm2872, %v2840, %v2904
        %v2937 = vsel %vm2873, %v2841, %v2905
        %v2938 = vsel %vm2874, %v2842, %v2906
        %v2939 = vsel %vm2875, %v2843, %v2907
        %v2940 = vsel %vm2876, %v2844, %v2908
        %v2941 = vsel %vm2877, %v2845, %v2909
        %v2942 = vsel %vm2878, %v2846, %v2910
        %v2943 = vsel %vm2879, %v2847, %v2911
        %v2944 = vsel %vm2880, %v2848, %v2912
        %v2945 = vsel %vm2881, %v2849, %v2913
        %v2946 = vsel %vm2882, %v2850, %v2914
        %v2947 = vsel %vm2883, %v2851, %v2915
        %v2948 = vsel %vm2884, %v2852, %v2916
        %v2949 = vsel %vm2885, %v2853, %v2917
        %v2950 = vsel %vm2886, %v2854, %v2918
        %v2951 = vsel %vm2887, %v2855, %v2919
        %vm2952 = vcmask 125952
        %2953 = vst.msk [vmem:[#allocation3] sm:$0xf] %vm2952, 0
        %2954 = vst.msk [vmem:[#allocation3 + $0x4] sm:$0xf] %vm2952, 0
        %vm2955 = vcmask 122880
        %2956 = vst.msk [vmem:[#allocation3 + $0x8] sm:$0x1] %vm2955, 0
        %2957 = vst.msk [vmem:[#allocation3 + $0xc] sm:$0xf] %vm2952, 0
        %2958 = vst.msk [vmem:[#allocation3 + $0x10] sm:$0xf] %vm2952, 0
        %2959 = vst.msk [vmem:[#allocation3 + $0x14] sm:$0x1] %vm2955, 0
        %2960 = vst.msk [vmem:[#allocation3 + $0x18] sm:$0xf] %vm2952, 0
        %2961 = vst.msk [vmem:[#allocation3 + $0x1c] sm:$0xf] %vm2952, 0
        %2962 = vst.msk [vmem:[#allocation3 + $0x20] sm:$0x1] %vm2955, 0
        %2963 = vst.msk [vmem:[#allocation3 + $0x24] sm:$0xf] %vm2952, 0
        %2964 = vst.msk [vmem:[#allocation3 + $0x28] sm:$0xf] %vm2952, 0
        %2965 = vst.msk [vmem:[#allocation3 + $0x2c] sm:$0x1] %vm2955, 0
        %2966 = vst.msk [vmem:[#allocation3 + $0x30] sm:$0xf] %vm2952, 0
        %2967 = vst.msk [vmem:[#allocation3 + $0x34] sm:$0xf] %vm2952, 0
        %2968 = vst.msk [vmem:[#allocation3 + $0x38] sm:$0x1] %vm2955, 0
        %2969 = vst.msk [vmem:[#allocation3 + $0x3c] sm:$0xf] %vm2952, 0
        %2970 = vst.msk [vmem:[#allocation3 + $0x40] sm:$0xf] %vm2952, 0
        %2971 = vst.msk [vmem:[#allocation3 + $0x44] sm:$0x1] %vm2955, 0
        %2972 = vst.msk [vmem:[#allocation3 + $0x48] sm:$0xf] %vm2952, 0
        %2973 = vst.msk [vmem:[#allocation3 + $0x4c] sm:$0xf] %vm2952, 0
        %2974 = vst.msk [vmem:[#allocation3 + $0x50] sm:$0x1] %vm2955, 0
        %2975 = vst.msk [vmem:[#allocation3 + $0x54] sm:$0xf] %vm2952, 0
        %2976 = vst.msk [vmem:[#allocation3 + $0x58] sm:$0xf] %vm2952, 0
        %2977 = vst.msk [vmem:[#allocation3 + $0x5c] sm:$0x1] %vm2955, 0
        %2978 = vst.msk [vmem:[#allocation3 + $0x60] sm:$0xf] %vm2952, 0
        %2979 = vst.msk [vmem:[#allocation3 + $0x64] sm:$0xf] %vm2952, 0
        %2980 = vst.msk [vmem:[#allocation3 + $0x68] sm:$0x1] %vm2955, 0
        %2981 = vst.msk [vmem:[#allocation3 + $0x6c] sm:$0xf] %vm2952, 0
        %2982 = vst.msk [vmem:[#allocation3 + $0x70] sm:$0xf] %vm2952, 0
        %2983 = vst.msk [vmem:[#allocation3 + $0x74] sm:$0x1] %vm2955, 0
        %2984 = vst.msk [vmem:[#allocation3 + $0x78] sm:$0xf] %vm2952, 0
        %2985 = vst.msk [vmem:[#allocation3 + $0x7c] sm:$0xf] %vm2952, 0
        %2986 = vst.msk [vmem:[#allocation3 + $0x80] sm:$0x1] %vm2955, 0
        %2987 = vst.msk [vmem:[#allocation3 + $0x84] sm:$0xf] %vm2952, 0
        %2988 = vst.msk [vmem:[#allocation3 + $0x88] sm:$0xf] %vm2952, 0
        %2989 = vst.msk [vmem:[#allocation3 + $0x8c] sm:$0x1] %vm2955, 0
        %2990 = vst.msk [vmem:[#allocation3 + $0x90] sm:$0xf] %vm2952, 0
        %2991 = vst.msk [vmem:[#allocation3 + $0x94] sm:$0xf] %vm2952, 0
        %2992 = vst.msk [vmem:[#allocation3 + $0x98] sm:$0x1] %vm2955, 0
        %2993 = vst.msk [vmem:[#allocation3 + $0x9c] sm:$0xf] %vm2952, 0
        %2994 = vst.msk [vmem:[#allocation3 + $0xa0] sm:$0xf] %vm2952, 0
        %2995 = vst.msk [vmem:[#allocation3 + $0xa4] sm:$0x1] %vm2955, 0
        %2996 = vst.msk [vmem:[#allocation3 + $0xa8] sm:$0xf] %vm2952, 0
        %2997 = vst.msk [vmem:[#allocation3 + $0xac] sm:$0xf] %vm2952, 0
        %2998 = vst.msk [vmem:[#allocation3 + $0xb0] sm:$0x1] %vm2955, 0
        %2999 = vst.msk [vmem:[#allocation3 + $0xb4] sm:$0xf] %vm2952, 0
        %3000 = vst.msk [vmem:[#allocation3 + $0xb8] sm:$0xf] %vm2952, 0
        %3001 = vst.msk [vmem:[#allocation3 + $0xbc] sm:$0x1] %vm2955, 0
        %3002 = vst.msk [vmem:[#allocation3 + $0xc0] sm:$0xf] %vm2952, 0
        %3003 = vst.msk [vmem:[#allocation3 + $0xc4] sm:$0xf] %vm2952, 0
        %3004 = vst.msk [vmem:[#allocation3 + $0xc8] sm:$0x1] %vm2955, 0
        %3005 = vst.msk [vmem:[#allocation3 + $0xcc] sm:$0xf] %vm2952, 0
        %3006 = vst.msk [vmem:[#allocation3 + $0xd0] sm:$0xf] %vm2952, 0
        %3007 = vst.msk [vmem:[#allocation3 + $0xd4] sm:$0x1] %vm2955, 0
        %v3008 = vpack.c.bf16 %v2920, %v2920
        %v3009 = vpack.c.bf16 %v2921, %v2921
        %v3010 = vpack.c.bf16 %v2922, %v2922
        %v3011 = vpack.c.bf16 %v2923, %v2923
        %v3012 = vpack.c.bf16 %v2924, %v2924
        %v3013 = vpack.c.bf16 %v2925, %v2925
        %v3014 = vpack.c.bf16 %v2926, %v2926
        %v3015 = vpack.c.bf16 %v2927, %v2927
        %v3016 = vpack.c.bf16 %v2928, %v2928
        %v3017 = vpack.c.bf16 %v2929, %v2929
        %v3018 = vpack.c.bf16 %v2930, %v2930
        %v3019 = vpack.c.bf16 %v2931, %v2931
        %v3020 = vpack.c.bf16 %v2932, %v2932
        %v3021 = vpack.c.bf16 %v2933, %v2933
        %v3022 = vpack.c.bf16 %v2934, %v2934
        %v3023 = vpack.c.bf16 %v2935, %v2935
        %v3024 = vpack.c.bf16 %v2936, %v2936
        %v3025 = vpack.c.bf16 %v2937, %v2937
        %v3026 = vpack.c.bf16 %v2938, %v2938
        %v3027 = vpack.c.bf16 %v2939, %v2939
        %v3028 = vpack.c.bf16 %v2940, %v2940
        %v3029 = vpack.c.bf16 %v2941, %v2941
        %v3030 = vpack.c.bf16 %v2942, %v2942
        %v3031 = vpack.c.bf16 %v2943, %v2943
        %v3032 = vpack.c.bf16 %v2944, %v2944
        %v3033 = vpack.c.bf16 %v2945, %v2945
        %v3034 = vpack.c.bf16 %v2946, %v2946
        %v3035 = vpack.c.bf16 %v2947, %v2947
        %v3036 = vpack.c.bf16 %v2948, %v2948
        %v3037 = vpack.c.bf16 %v2949, %v2949
        %v3038 = vpack.c.bf16 %v2950, %v2950
        %v3039 = vpack.c.bf16 %v2951, %v2951
        %v3041 = vshrl.u32 %v3008, 16
        %v3043 = vrot.slane %v3041, 7
        %v3044 = vshll.u32 %v3008, 16
        %v3046 = vor.u32 %v3043, %v3044
        %v3047 = vrot.slane %v3043, 4
        %v3049 = vshrl.u32 %v3009, 16
        %v3051 = vrot.slane %v3049, 7
        %v3052 = vshll.u32 %v3009, 16
        %v3054 = vor.u32 %v3051, %v3052
        %v3055 = vsel %vm314, %v3047, %v3054
        %v3056 = vrot.slane %v3051, 4
        %v3058 = vshrl.u32 %v3010, 16
        %v3060 = vrot.slane %v3058, 7
        %v3061 = vshll.u32 %v3010, 16
        %v3063 = vor.u32 %v3060, %v3061
        %v3064 = vrot.slane %v3060, 4
        %v3066 = vshrl.u32 %v3011, 16
        %v3068 = vrot.slane %v3066, 7
        %v3069 = vshll.u32 %v3011, 16
        %v3071 = vor.u32 %v3068, %v3069
        %v3072 = vsel %vm314, %v3064, %v3071
        %v3073 = vrot.slane %v3068, 4
        %v3075 = vshrl.u32 %v3012, 16
        %v3077 = vrot.slane %v3075, 7
        %v3078 = vshll.u32 %v3012, 16
        %v3080 = vor.u32 %v3077, %v3078
        %v3081 = vrot.slane %v3077, 4
        %v3083 = vshrl.u32 %v3013, 16
        %v3085 = vrot.slane %v3083, 7
        %v3086 = vshll.u32 %v3013, 16
        %v3088 = vor.u32 %v3085, %v3086
        %v3089 = vsel %vm314, %v3081, %v3088
        %v3090 = vrot.slane %v3085, 4
        %v3092 = vshrl.u32 %v3014, 16
        %v3094 = vrot.slane %v3092, 7
        %v3095 = vshll.u32 %v3014, 16
        %v3097 = vor.u32 %v3094, %v3095
        %v3098 = vrot.slane %v3094, 4
        %v3100 = vshrl.u32 %v3015, 16
        %v3102 = vrot.slane %v3100, 7
        %v3103 = vshll.u32 %v3015, 16
        %v3105 = vor.u32 %v3102, %v3103
        %v3106 = vsel %vm314, %v3098, %v3105
        %v3107 = vrot.slane %v3102, 4
        %v3109 = vshrl.u32 %v3016, 16
        %v3111 = vrot.slane %v3109, 7
        %v3112 = vshll.u32 %v3016, 16
        %v3114 = vor.u32 %v3111, %v3112
        %v3115 = vrot.slane %v3111, 4
        %v3117 = vshrl.u32 %v3017, 16
        %v3119 = vrot.slane %v3117, 7
        %v3120 = vshll.u32 %v3017, 16
        %v3122 = vor.u32 %v3119, %v3120
        %v3123 = vsel %vm314, %v3115, %v3122
        %v3124 = vrot.slane %v3119, 4
        %v3126 = vshrl.u32 %v3018, 16
        %v3128 = vrot.slane %v3126, 7
        %v3129 = vshll.u32 %v3018, 16
        %v3131 = vor.u32 %v3128, %v3129
        %v3132 = vrot.slane %v3128, 4
        %v3134 = vshrl.u32 %v3019, 16
        %v3136 = vrot.slane %v3134, 7
        %v3137 = vshll.u32 %v3019, 16
        %v3139 = vor.u32 %v3136, %v3137
        %v3140 = vsel %vm314, %v3132, %v3139
        %v3141 = vrot.slane %v3136, 4
        %v3143 = vshrl.u32 %v3020, 16
        %v3145 = vrot.slane %v3143, 7
        %v3146 = vshll.u32 %v3020, 16
        %v3148 = vor.u32 %v3145, %v3146
        %v3149 = vrot.slane %v3145, 4
        %v3151 = vshrl.u32 %v3021, 16
        %v3153 = vrot.slane %v3151, 7
        %v3154 = vshll.u32 %v3021, 16
        %v3156 = vor.u32 %v3153, %v3154
        %v3157 = vsel %vm314, %v3149, %v3156
        %v3158 = vrot.slane %v3153, 4
        %v3160 = vshrl.u32 %v3022, 16
        %v3162 = vrot.slane %v3160, 7
        %v3163 = vshll.u32 %v3022, 16
        %v3165 = vor.u32 %v3162, %v3163
        %v3166 = vrot.slane %v3162, 4
        %v3168 = vshrl.u32 %v3023, 16
        %v3170 = vrot.slane %v3168, 7
        %v3171 = vshll.u32 %v3023, 16
        %v3173 = vor.u32 %v3170, %v3171
        %v3174 = vsel %vm314, %v3166, %v3173
        %v3175 = vrot.slane %v3170, 4
        %v3177 = vshrl.u32 %v3024, 16
        %v3179 = vrot.slane %v3177, 7
        %v3180 = vshll.u32 %v3024, 16
        %v3182 = vor.u32 %v3179, %v3180
        %v3183 = vrot.slane %v3179, 4
        %v3185 = vshrl.u32 %v3025, 16
        %v3187 = vrot.slane %v3185, 7
        %v3188 = vshll.u32 %v3025, 16
        %v3190 = vor.u32 %v3187, %v3188
        %v3191 = vsel %vm314, %v3183, %v3190
        %v3192 = vrot.slane %v3187, 4
        %v3194 = vshrl.u32 %v3026, 16
        %v3196 = vrot.slane %v3194, 7
        %v3197 = vshll.u32 %v3026, 16
        %v3199 = vor.u32 %v3196, %v3197
        %v3200 = vrot.slane %v3196, 4
        %v3202 = vshrl.u32 %v3027, 16
        %v3204 = vrot.slane %v3202, 7
        %v3205 = vshll.u32 %v3027, 16
        %v3207 = vor.u32 %v3204, %v3205
        %v3208 = vsel %vm314, %v3200, %v3207
        %v3209 = vrot.slane %v3204, 4
        %v3211 = vshrl.u32 %v3028, 16
        %v3213 = vrot.slane %v3211, 7
        %v3214 = vshll.u32 %v3028, 16
        %v3216 = vor.u32 %v3213, %v3214
        %v3217 = vrot.slane %v3213, 4
        %v3219 = vshrl.u32 %v3029, 16
        %v3221 = vrot.slane %v3219, 7
        %v3222 = vshll.u32 %v3029, 16
        %v3224 = vor.u32 %v3221, %v3222
        %v3225 = vsel %vm314, %v3217, %v3224
        %v3226 = vrot.slane %v3221, 4
        %v3228 = vshrl.u32 %v3030, 16
        %v3230 = vrot.slane %v3228, 7
        %v3231 = vshll.u32 %v3030, 16
        %v3233 = vor.u32 %v3230, %v3231
        %v3234 = vrot.slane %v3230, 4
        %v3236 = vshrl.u32 %v3031, 16
        %v3238 = vrot.slane %v3236, 7
        %v3239 = vshll.u32 %v3031, 16
        %v3241 = vor.u32 %v3238, %v3239
        %v3242 = vsel %vm314, %v3234, %v3241
        %v3243 = vrot.slane %v3238, 4
        %v3245 = vshrl.u32 %v3032, 16
        %v3247 = vrot.slane %v3245, 7
        %v3248 = vshll.u32 %v3032, 16
        %v3250 = vor.u32 %v3247, %v3248
        %v3251 = vrot.slane %v3247, 4
        %v3253 = vshrl.u32 %v3033, 16
        %v3255 = vrot.slane %v3253, 7
        %v3256 = vshll.u32 %v3033, 16
        %v3258 = vor.u32 %v3255, %v3256
        %v3259 = vsel %vm314, %v3251, %v3258
        %v3260 = vrot.slane %v3255, 4
        %v3262 = vshrl.u32 %v3034, 16
        %v3264 = vrot.slane %v3262, 7
        %v3265 = vshll.u32 %v3034, 16
        %v3267 = vor.u32 %v3264, %v3265
        %v3268 = vrot.slane %v3264, 4
        %v3270 = vshrl.u32 %v3035, 16
        %v3272 = vrot.slane %v3270, 7
        %v3273 = vshll.u32 %v3035, 16
        %v3275 = vor.u32 %v3272, %v3273
        %v3276 = vsel %vm314, %v3268, %v3275
        %v3277 = vrot.slane %v3272, 4
        %v3279 = vshrl.u32 %v3036, 16
        %v3281 = vrot.slane %v3279, 7
        %v3282 = vshll.u32 %v3036, 16
        %v3284 = vor.u32 %v3281, %v3282
        %v3285 = vrot.slane %v3281, 4
        %v3287 = vshrl.u32 %v3037, 16
        %v3289 = vrot.slane %v3287, 7
        %v3290 = vshll.u32 %v3037, 16
        %v3292 = vor.u32 %v3289, %v3290
        %v3293 = vsel %vm314, %v3285, %v3292
        %v3294 = vrot.slane %v3289, 4
        %v3296 = vshrl.u32 %v3038, 16
        %v3298 = vrot.slane %v3296, 7
        %v3299 = vshll.u32 %v3038, 16
        %v3301 = vor.u32 %v3298, %v3299
        %v3302 = vrot.slane %v3298, 4
        %v3304 = vshrl.u32 %v3039, 16
        %v3306 = vrot.slane %v3304, 7
        %v3307 = vshll.u32 %v3039, 16
        %v3309 = vor.u32 %v3306, %v3307
        %v3310 = vsel %vm314, %v3302, %v3309
        %v3311 = vrot.slane %v3306, 4
        %s3360 = scalar_lea.vmem [#allocation3], 12
        %vm3361 = vcmask 125952
        %vm3362 = vmand %vm3361, %vm637
        %v3363 = vld [vmem:[%s3360] sm:$0xf]
        %v3364 = vsel %vm3362, %v3046, %v3363
        %3365 = vst [vmem:[%s3360] sm:$0xf] %v3364
        %3366 = vst.msk [vmem:[%s3360 + $0x4] sm:$0xf] %vm2952, %v3055
        %vm3367 = vcmask 122880
        %vm3368 = vmand %vm3367, %vm312
        %v3369 = vld [vmem:[%s3360 + $0x8] sm:$0x1]
        %v3370 = vsel %vm3368, %v3056, %v3369
        %3371 = vst [vmem:[%s3360 + $0x8] sm:$0x1] %v3370
        %v3372 = vld [vmem:[%s3360 + $0xc] sm:$0xf]
        %v3373 = vsel %vm3362, %v3063, %v3372
        %3374 = vst [vmem:[%s3360 + $0xc] sm:$0xf] %v3373
        %3375 = vst.msk [vmem:[%s3360 + $0x10] sm:$0xf] %vm2952, %v3072
        %v3376 = vld [vmem:[%s3360 + $0x14] sm:$0x1]
        %v3377 = vsel %vm3368, %v3073, %v3376
        %3378 = vst [vmem:[%s3360 + $0x14] sm:$0x1] %v3377
        %v3379 = vld [vmem:[%s3360 + $0x18] sm:$0xf]
        %v3380 = vsel %vm3362, %v3080, %v3379
        %3381 = vst [vmem:[%s3360 + $0x18] sm:$0xf] %v3380
        %3382 = vst.msk [vmem:[%s3360 + $0x1c] sm:$0xf] %vm2952, %v3089
        %v3383 = vld [vmem:[%s3360 + $0x20] sm:$0x1]
        %v3384 = vsel %vm3368, %v3090, %v3383
        %3385 = vst [vmem:[%s3360 + $0x20] sm:$0x1] %v3384
        %v3386 = vld [vmem:[%s3360 + $0x24] sm:$0xf]
        %v3387 = vsel %vm3362, %v3097, %v3386
        %3388 = vst [vmem:[%s3360 + $0x24] sm:$0xf] %v3387
        %3389 = vst.msk [vmem:[%s3360 + $0x28] sm:$0xf] %vm2952, %v3106
        %v3390 = vld [vmem:[%s3360 + $0x2c] sm:$0x1]
        %v3391 = vsel %vm3368, %v3107, %v3390
        %3392 = vst [vmem:[%s3360 + $0x2c] sm:$0x1] %v3391
        %v3393 = vld [vmem:[%s3360 + $0x30] sm:$0xf]
        %v3394 = vsel %vm3362, %v3114, %v3393
        %3395 = vst [vmem:[%s3360 + $0x30] sm:$0xf] %v3394
        %3396 = vst.msk [vmem:[%s3360 + $0x34] sm:$0xf] %vm2952, %v3123
        %v3397 = vld [vmem:[%s3360 + $0x38] sm:$0x1]
        %v3398 = vsel %vm3368, %v3124, %v3397
        %3399 = vst [vmem:[%s3360 + $0x38] sm:$0x1] %v3398
        %v3400 = vld [vmem:[%s3360 + $0x3c] sm:$0xf]
        %v3401 = vsel %vm3362, %v3131, %v3400
        %3402 = vst [vmem:[%s3360 + $0x3c] sm:$0xf] %v3401
        %3403 = vst.msk [vmem:[%s3360 + $0x40] sm:$0xf] %vm2952, %v3140
        %v3404 = vld [vmem:[%s3360 + $0x44] sm:$0x1]
        %v3405 = vsel %vm3368, %v3141, %v3404
        %3406 = vst [vmem:[%s3360 + $0x44] sm:$0x1] %v3405
        %v3407 = vld [vmem:[%s3360 + $0x48] sm:$0xf]
        %v3408 = vsel %vm3362, %v3148, %v3407
        %3409 = vst [vmem:[%s3360 + $0x48] sm:$0xf] %v3408
        %3410 = vst.msk [vmem:[%s3360 + $0x4c] sm:$0xf] %vm2952, %v3157
        %v3411 = vld [vmem:[%s3360 + $0x50] sm:$0x1]
        %v3412 = vsel %vm3368, %v3158, %v3411
        %3413 = vst [vmem:[%s3360 + $0x50] sm:$0x1] %v3412
        %v3414 = vld [vmem:[%s3360 + $0x54] sm:$0xf]
        %v3415 = vsel %vm3362, %v3165, %v3414
        %3416 = vst [vmem:[%s3360 + $0x54] sm:$0xf] %v3415
        %3417 = vst.msk [vmem:[%s3360 + $0x58] sm:$0xf] %vm2952, %v3174
        %v3418 = vld [vmem:[%s3360 + $0x5c] sm:$0x1]
        %v3419 = vsel %vm3368, %v3175, %v3418
        %3420 = vst [vmem:[%s3360 + $0x5c] sm:$0x1] %v3419
        %v3421 = vld [vmem:[%s3360 + $0x60] sm:$0xf]
        %v3422 = vsel %vm3362, %v3182, %v3421
        %3423 = vst [vmem:[%s3360 + $0x60] sm:$0xf] %v3422
        %3424 = vst.msk [vmem:[%s3360 + $0x64] sm:$0xf] %vm2952, %v3191
        %v3425 = vld [vmem:[%s3360 + $0x68] sm:$0x1]
        %v3426 = vsel %vm3368, %v3192, %v3425
        %3427 = vst [vmem:[%s3360 + $0x68] sm:$0x1] %v3426
        %v3428 = vld [vmem:[%s3360 + $0x6c] sm:$0xf]
        %v3429 = vsel %vm3362, %v3199, %v3428
        %3430 = vst [vmem:[%s3360 + $0x6c] sm:$0xf] %v3429
        %3431 = vst.msk [vmem:[%s3360 + $0x70] sm:$0xf] %vm2952, %v3208
        %v3432 = vld [vmem:[%s3360 + $0x74] sm:$0x1]
        %v3433 = vsel %vm3368, %v3209, %v3432
        %3434 = vst [vmem:[%s3360 + $0x74] sm:$0x1] %v3433
        %v3435 = vld [vmem:[%s3360 + $0x78] sm:$0xf]
        %v3436 = vsel %vm3362, %v3216, %v3435
        %3437 = vst [vmem:[%s3360 + $0x78] sm:$0xf] %v3436
        %3438 = vst.msk [vmem:[%s3360 + $0x7c] sm:$0xf] %vm2952, %v3225
        %v3439 = vld [vmem:[%s3360 + $0x80] sm:$0x1]
        %v3440 = vsel %vm3368, %v3226, %v3439
        %3441 = vst [vmem:[%s3360 + $0x80] sm:$0x1] %v3440
        %v3442 = vld [vmem:[%s3360 + $0x84] sm:$0xf]
        %v3443 = vsel %vm3362, %v3233, %v3442
        %3444 = vst [vmem:[%s3360 + $0x84] sm:$0xf] %v3443
        %3445 = vst.msk [vmem:[%s3360 + $0x88] sm:$0xf] %vm2952, %v3242
        %v3446 = vld [vmem:[%s3360 + $0x8c] sm:$0x1]
        %v3447 = vsel %vm3368, %v3243, %v3446
        %3448 = vst [vmem:[%s3360 + $0x8c] sm:$0x1] %v3447
        %v3449 = vld [vmem:[%s3360 + $0x90] sm:$0xf]
        %v3450 = vsel %vm3362, %v3250, %v3449
        %3451 = vst [vmem:[%s3360 + $0x90] sm:$0xf] %v3450
        %3452 = vst.msk [vmem:[%s3360 + $0x94] sm:$0xf] %vm2952, %v3259
        %v3453 = vld [vmem:[%s3360 + $0x98] sm:$0x1]
        %v3454 = vsel %vm3368, %v3260, %v3453
        %3455 = vst [vmem:[%s3360 + $0x98] sm:$0x1] %v3454
        %v3456 = vld [vmem:[%s3360 + $0x9c] sm:$0xf]
        %v3457 = vsel %vm3362, %v3267, %v3456
        %3458 = vst [vmem:[%s3360 + $0x9c] sm:$0xf] %v3457
        %3459 = vst.msk [vmem:[%s3360 + $0xa0] sm:$0xf] %vm2952, %v3276
        %v3460 = vld [vmem:[%s3360 + $0xa4] sm:$0x1]
        %v3461 = vsel %vm3368, %v3277, %v3460
        %3462 = vst [vmem:[%s3360 + $0xa4] sm:$0x1] %v3461
        %v3463 = vld [vmem:[%s3360 + $0xa8] sm:$0xf]
        %v3464 = vsel %vm3362, %v3284, %v3463
        %3465 = vst [vmem:[%s3360 + $0xa8] sm:$0xf] %v3464
        %3466 = vst.msk [vmem:[%s3360 + $0xac] sm:$0xf] %vm2952, %v3293
        %v3467 = vld [vmem:[%s3360 + $0xb0] sm:$0x1]
        %v3468 = vsel %vm3368, %v3294, %v3467
        %3469 = vst [vmem:[%s3360 + $0xb0] sm:$0x1] %v3468
        %v3470 = vld [vmem:[%s3360 + $0xb4] sm:$0xf]
        %v3471 = vsel %vm3362, %v3301, %v3470
        %3472 = vst [vmem:[%s3360 + $0xb4] sm:$0xf] %v3471
        %3473 = vst.msk [vmem:[%s3360 + $0xb8] sm:$0xf] %vm2952, %v3310
        %v3474 = vld [vmem:[%s3360 + $0xbc] sm:$0x1]
        %v3475 = vsel %vm3368, %v3311, %v3474
        %3476 = vst [vmem:[%s3360 + $0xbc] sm:$0x1] %v3475
        %v3477 = vld [vmem:[#allocation3] sm:$0xf]
        %v3478 = vld [vmem:[#allocation3 + $0x4] sm:$0xf]
        %v3479 = vld [vmem:[#allocation3 + $0x8] sm:$0x1]
        %v3480 = vld [vmem:[#allocation3 + $0xc] sm:$0xf]
        %v3481 = vld [vmem:[#allocation3 + $0x10] sm:$0xf]
        %v3482 = vld [vmem:[#allocation3 + $0x14] sm:$0x1]
        %v3483 = vld [vmem:[#allocation3 + $0x18] sm:$0xf]
        %v3484 = vld [vmem:[#allocation3 + $0x1c] sm:$0xf]
        %v3485 = vld [vmem:[#allocation3 + $0x20] sm:$0x1]
        %v3486 = vld [vmem:[#allocation3 + $0x24] sm:$0xf]
        %v3487 = vld [vmem:[#allocation3 + $0x28] sm:$0xf]
        %v3488 = vld [vmem:[#allocation3 + $0x2c] sm:$0x1]
        %v3489 = vld [vmem:[#allocation3 + $0x30] sm:$0xf]
        %v3490 = vld [vmem:[#allocation3 + $0x34] sm:$0xf]
        %v3491 = vld [vmem:[#allocation3 + $0x38] sm:$0x1]
        %v3492 = vld [vmem:[#allocation3 + $0x3c] sm:$0xf]
        %v3493 = vld [vmem:[#allocation3 + $0x40] sm:$0xf]
        %v3494 = vld [vmem:[#allocation3 + $0x44] sm:$0x1]
        %v3495 = vld [vmem:[#allocation3 + $0x48] sm:$0xf]
        %v3496 = vld [vmem:[#allocation3 + $0x4c] sm:$0xf]
        %v3497 = vld [vmem:[#allocation3 + $0x50] sm:$0x1]
        %v3498 = vld [vmem:[#allocation3 + $0x54] sm:$0xf]
        %v3499 = vld [vmem:[#allocation3 + $0x58] sm:$0xf]
        %v3500 = vld [vmem:[#allocation3 + $0x5c] sm:$0x1]
        %v3501 = vld [vmem:[#allocation3 + $0x60] sm:$0xf]
        %v3502 = vld [vmem:[#allocation3 + $0x64] sm:$0xf]
        %v3503 = vld [vmem:[#allocation3 + $0x68] sm:$0x1]
        %v3504 = vld [vmem:[#allocation3 + $0x6c] sm:$0xf]
        %v3505 = vld [vmem:[#allocation3 + $0x70] sm:$0xf]
        %v3506 = vld [vmem:[#allocation3 + $0x74] sm:$0x1]
        %v3507 = vld [vmem:[#allocation3 + $0x78] sm:$0xf]
        %v3508 = vld [vmem:[#allocation3 + $0x7c] sm:$0xf]
        %v3509 = vld [vmem:[#allocation3 + $0x80] sm:$0x1]
        %v3510 = vld [vmem:[#allocation3 + $0x84] sm:$0xf]
        %v3511 = vld [vmem:[#allocation3 + $0x88] sm:$0xf]
        %v3512 = vld [vmem:[#allocation3 + $0x8c] sm:$0x1]
        %v3513 = vld [vmem:[#allocation3 + $0x90] sm:$0xf]
        %v3514 = vld [vmem:[#allocation3 + $0x94] sm:$0xf]
        %v3515 = vld [vmem:[#allocation3 + $0x98] sm:$0x1]
        %v3516 = vld [vmem:[#allocation3 + $0x9c] sm:$0xf]
        %v3517 = vld [vmem:[#allocation3 + $0xa0] sm:$0xf]
        %v3518 = vld [vmem:[#allocation3 + $0xa4] sm:$0x1]
        %v3519 = vld [vmem:[#allocation3 + $0xa8] sm:$0xf]
        %v3520 = vld [vmem:[#allocation3 + $0xac] sm:$0xf]
        %v3521 = vld [vmem:[#allocation3 + $0xb0] sm:$0x1]
        %v3522 = vld [vmem:[#allocation3 + $0xb4] sm:$0xf]
        %v3523 = vld [vmem:[#allocation3 + $0xb8] sm:$0xf]
        %v3524 = vld [vmem:[#allocation3 + $0xbc] sm:$0x1]
        %v3525 = vld [vmem:[#allocation3 + $0xc0] sm:$0xf]
        %v3526 = vld [vmem:[#allocation3 + $0xc4] sm:$0xf]
        %v3527 = vld [vmem:[#allocation3 + $0xc8] sm:$0x1]
        %v3528 = vld [vmem:[#allocation3 + $0xcc] sm:$0xf]
        %v3529 = vld [vmem:[#allocation3 + $0xd0] sm:$0xf]
        %v3530 = vld [vmem:[#allocation3 + $0xd4] sm:$0x1]
        %v3531 = vld [vmem:[%s3] sm:$0xf]
        %v3532 = vld [vmem:[%s3 + $0x4] sm:$0xf]
        %v3565 = vunpack.c.l.b16 %v3477
        %v3566 = vunpack.c.l.b16 %v3478
        %v3567 = vunpack.c.l.b16 %v3480
        %v3568 = vunpack.c.l.b16 %v3481
        %v3569 = vunpack.c.l.b16 %v3483
        %v3570 = vunpack.c.l.b16 %v3484
        %v3571 = vunpack.c.l.b16 %v3486
        %v3572 = vunpack.c.l.b16 %v3487
        %v3573 = vunpack.c.l.b16 %v3489
        %v3574 = vunpack.c.l.b16 %v3490
        %v3575 = vunpack.c.l.b16 %v3492
        %v3576 = vunpack.c.l.b16 %v3493
        %v3577 = vunpack.c.l.b16 %v3495
        %v3578 = vunpack.c.l.b16 %v3496
        %v3579 = vunpack.c.l.b16 %v3498
        %v3580 = vunpack.c.l.b16 %v3499
        %v3581 = vunpack.c.l.b16 %v3501
        %v3582 = vunpack.c.l.b16 %v3502
        %v3583 = vunpack.c.l.b16 %v3504
        %v3584 = vunpack.c.l.b16 %v3505
        %v3585 = vunpack.c.l.b16 %v3507
        %v3586 = vunpack.c.l.b16 %v3508
        %v3587 = vunpack.c.l.b16 %v3510
        %v3588 = vunpack.c.l.b16 %v3511
        %v3589 = vunpack.c.l.b16 %v3513
        %v3590 = vunpack.c.l.b16 %v3514
        %v3591 = vunpack.c.l.b16 %v3516
        %v3592 = vunpack.c.l.b16 %v3517
        %v3593 = vunpack.c.l.b16 %v3519
        %v3594 = vunpack.c.l.b16 %v3520
        %v3595 = vunpack.c.l.b16 %v3522
        %v3596 = vunpack.c.l.b16 %v3523
        %v3597 = vpack.c.b16 %v3566, %v3565
        %v3598 = vpack.c.b16 %v3568, %v3567
        %v3599 = vpack.c.b16 %v3570, %v3569
        %v3600 = vpack.c.b16 %v3572, %v3571
        %v3601 = vpack.c.b16 %v3574, %v3573
        %v3602 = vpack.c.b16 %v3576, %v3575
        %v3603 = vpack.c.b16 %v3578, %v3577
        %v3604 = vpack.c.b16 %v3580, %v3579
        %v3605 = vpack.c.b16 %v3582, %v3581
        %v3606 = vpack.c.b16 %v3584, %v3583
        %v3607 = vpack.c.b16 %v3586, %v3585
        %v3608 = vpack.c.b16 %v3588, %v3587
        %v3609 = vpack.c.b16 %v3590, %v3589
        %v3610 = vpack.c.b16 %v3592, %v3591
        %v3611 = vpack.c.b16 %v3594, %v3593
        %v3612 = vpack.c.b16 %v3596, %v3595
        %v3615 = vunpack.c.l.b16 %v3531
        %v3616 = vunpack.c.l.b16 %v3532
        %v3617 = vpack.c.b16 %v3616, %v3615
        %vm3619 = vcmask 130048
        %v3621 = vsel %vm3619, %v3597, 0
        %v3624 = vsel %vm3619, %v3598, 0
        %v3627 = vsel %vm3619, %v3599, 0
        %v3630 = vsel %vm3619, %v3600, 0
        %v3633 = vsel %vm3619, %v3601, 0
        %v3636 = vsel %vm3619, %v3602, 0
        %v3639 = vsel %vm3619, %v3603, 0
        %v3642 = vsel %vm3619, %v3604, 0
        %v3645 = vsel %vm3619, %v3605, 0
        %v3648 = vsel %vm3619, %v3606, 0
        %v3651 = vsel %vm3619, %v3607, 0
        %v3654 = vsel %vm3619, %v3608, 0
        %v3657 = vsel %vm3619, %v3609, 0
        %v3660 = vsel %vm3619, %v3610, 0
        %v3663 = vsel %vm3619, %v3611, 0
        %v3666 = vsel %vm3619, %v3612, 0
        %3668 = vmatpush.bf16.msra.mxu0 0
        %3669 = vmatpush.bf16.msra.mxu0 0
        %3670 = vmatpush.bf16.msra.mxu0 0
        %3671 = vmatpush.bf16.msra.mxu0 0
        %3672 = vmatpush.bf16.msra.mxu0 0
        %3673 = vmatpush.bf16.msra.mxu0 0
        %3674 = vmatpush.bf16.msra.mxu0 0
        %3675 = vmatpush.bf16.msra.mxu0 %v3617
        %3676 = vmatmul.bf16.gmra.mxu0 %v3621
        %v3677 = vpop.f32.mrf.mxu0
        %v3678 = vadd.f32 0.0, %v3677
        %v3679 = vpop.f32.mrf.mxu0
        %v3680 = vadd.f32 0.0, %v3679
        %3681 = vmatmul.bf16.gmra.mxu0 %v3624
        %v3682 = vpop.f32.mrf.mxu0
        %v3683 = vadd.f32 0.0, %v3682
        %v3684 = vpop.f32.mrf.mxu0
        %v3685 = vadd.f32 0.0, %v3684
        %3686 = vmatmul.bf16.gmra.mxu0 %v3627
        %v3687 = vpop.f32.mrf.mxu0
        %v3688 = vadd.f32 0.0, %v3687
        %v3689 = vpop.f32.mrf.mxu0
        %v3690 = vadd.f32 0.0, %v3689
        %3691 = vmatmul.bf16.gmra.mxu0 %v3630
        %v3692 = vpop.f32.mrf.mxu0
        %v3693 = vadd.f32 0.0, %v3692
        %v3694 = vpop.f32.mrf.mxu0
        %v3695 = vadd.f32 0.0, %v3694
        %3696 = vmatmul.bf16.gmra.mxu0 %v3633
        %v3697 = vpop.f32.mrf.mxu0
        %v3698 = vadd.f32 0.0, %v3697
        %v3699 = vpop.f32.mrf.mxu0
        %v3700 = vadd.f32 0.0, %v3699
        %3701 = vmatmul.bf16.gmra.mxu0 %v3636
        %v3702 = vpop.f32.mrf.mxu0
        %v3703 = vadd.f32 0.0, %v3702
        %v3704 = vpop.f32.mrf.mxu0
        %v3705 = vadd.f32 0.0, %v3704
        %3706 = vmatmul.bf16.gmra.mxu0 %v3639
        %v3707 = vpop.f32.mrf.mxu0
        %v3708 = vadd.f32 0.0, %v3707
        %v3709 = vpop.f32.mrf.mxu0
        %v3710 = vadd.f32 0.0, %v3709
        %3711 = vmatmul.bf16.gmra.mxu0 %v3642
        %v3712 = vpop.f32.mrf.mxu0
        %v3713 = vadd.f32 0.0, %v3712
        %v3714 = vpop.f32.mrf.mxu0
        %v3715 = vadd.f32 0.0, %v3714
        %3716 = vmatmul.bf16.gmra.mxu0 %v3645
        %v3717 = vpop.f32.mrf.mxu0
        %v3718 = vadd.f32 0.0, %v3717
        %v3719 = vpop.f32.mrf.mxu0
        %v3720 = vadd.f32 0.0, %v3719
        %3721 = vmatmul.bf16.gmra.mxu0 %v3648
        %v3722 = vpop.f32.mrf.mxu0
        %v3723 = vadd.f32 0.0, %v3722
        %v3724 = vpop.f32.mrf.mxu0
        %v3725 = vadd.f32 0.0, %v3724
        %3726 = vmatmul.bf16.gmra.mxu0 %v3651
        %v3727 = vpop.f32.mrf.mxu0
        %v3728 = vadd.f32 0.0, %v3727
        %v3729 = vpop.f32.mrf.mxu0
        %v3730 = vadd.f32 0.0, %v3729
        %3731 = vmatmul.bf16.gmra.mxu0 %v3654
        %v3732 = vpop.f32.mrf.mxu0
        %v3733 = vadd.f32 0.0, %v3732
        %v3734 = vpop.f32.mrf.mxu0
        %v3735 = vadd.f32 0.0, %v3734
        %3736 = vmatmul.bf16.gmra.mxu0 %v3657
        %v3737 = vpop.f32.mrf.mxu0
        %v3738 = vadd.f32 0.0, %v3737
        %v3739 = vpop.f32.mrf.mxu0
        %v3740 = vadd.f32 0.0, %v3739
        %3741 = vmatmul.bf16.gmra.mxu0 %v3660
        %v3742 = vpop.f32.mrf.mxu0
        %v3743 = vadd.f32 0.0, %v3742
        %v3744 = vpop.f32.mrf.mxu0
        %v3745 = vadd.f32 0.0, %v3744
        %3746 = vmatmul.bf16.gmra.mxu0 %v3663
        %v3747 = vpop.f32.mrf.mxu0
        %v3748 = vadd.f32 0.0, %v3747
        %v3749 = vpop.f32.mrf.mxu0
        %v3750 = vadd.f32 0.0, %v3749
        %3751 = vmatmul.bf16.gmra.mxu0 %v3666
        %v3752 = vpop.f32.mrf.mxu0
        %v3753 = vadd.f32 0.0, %v3752
        %v3754 = vpop.f32.mrf.mxu0
        %v3755 = vadd.f32 0.0, %v3754
        %3756 = vdwg.mxu0
        %3789 = vrot.lane.b32.xlu0 %v3678, 16
        %v3790 = vpop.permute.xlu0 %3789
        %3791 = vrot.lane.b32.xlu0 %v3680, 16
        %v3792 = vpop.permute.xlu0 %3791
        %3793 = vrot.lane.b32.xlu0 %v3683, 16
        %v3794 = vpop.permute.xlu0 %3793
        %3795 = vrot.lane.b32.xlu0 %v3685, 16
        %v3796 = vpop.permute.xlu0 %3795
        %3797 = vrot.lane.b32.xlu0 %v3688, 16
        %v3798 = vpop.permute.xlu0 %3797
        %3799 = vrot.lane.b32.xlu0 %v3690, 16
        %v3800 = vpop.permute.xlu0 %3799
        %3801 = vrot.lane.b32.xlu0 %v3693, 16
        %v3802 = vpop.permute.xlu0 %3801
        %3803 = vrot.lane.b32.xlu0 %v3695, 16
        %v3804 = vpop.permute.xlu0 %3803
        %3805 = vrot.lane.b32.xlu0 %v3698, 16
        %v3806 = vpop.permute.xlu0 %3805
        %3807 = vrot.lane.b32.xlu0 %v3700, 16
        %v3808 = vpop.permute.xlu0 %3807
        %3809 = vrot.lane.b32.xlu0 %v3703, 16
        %v3810 = vpop.permute.xlu0 %3809
        %3811 = vrot.lane.b32.xlu0 %v3705, 16
        %v3812 = vpop.permute.xlu0 %3811
        %3813 = vrot.lane.b32.xlu0 %v3708, 16
        %v3814 = vpop.permute.xlu0 %3813
        %3815 = vrot.lane.b32.xlu0 %v3710, 16
        %v3816 = vpop.permute.xlu0 %3815
        %3817 = vrot.lane.b32.xlu0 %v3713, 16
        %v3818 = vpop.permute.xlu0 %3817
        %3819 = vrot.lane.b32.xlu0 %v3715, 16
        %v3820 = vpop.permute.xlu0 %3819
        %3821 = vrot.lane.b32.xlu0 %v3718, 16
        %v3822 = vpop.permute.xlu0 %3821
        %3823 = vrot.lane.b32.xlu0 %v3720, 16
        %v3824 = vpop.permute.xlu0 %3823
        %3825 = vrot.lane.b32.xlu0 %v3723, 16
        %v3826 = vpop.permute.xlu0 %3825
        %3827 = vrot.lane.b32.xlu0 %v3725, 16
        %v3828 = vpop.permute.xlu0 %3827
        %3829 = vrot.lane.b32.xlu0 %v3728, 16
        %v3830 = vpop.permute.xlu0 %3829
        %3831 = vrot.lane.b32.xlu0 %v3730, 16
        %v3832 = vpop.permute.xlu0 %3831
        %3833 = vrot.lane.b32.xlu0 %v3733, 16
        %v3834 = vpop.permute.xlu0 %3833
        %3835 = vrot.lane.b32.xlu0 %v3735, 16
        %v3836 = vpop.permute.xlu0 %3835
        %3837 = vrot.lane.b32.xlu0 %v3738, 16
        %v3838 = vpop.permute.xlu0 %3837
        %3839 = vrot.lane.b32.xlu0 %v3740, 16
        %v3840 = vpop.permute.xlu0 %3839
        %3841 = vrot.lane.b32.xlu0 %v3743, 16
        %v3842 = vpop.permute.xlu0 %3841
        %3843 = vrot.lane.b32.xlu0 %v3745, 16
        %v3844 = vpop.permute.xlu0 %3843
        %3845 = vrot.lane.b32.xlu0 %v3748, 16
        %v3846 = vpop.permute.xlu0 %3845
        %3847 = vrot.lane.b32.xlu0 %v3750, 16
        %v3848 = vpop.permute.xlu0 %3847
        %3849 = vrot.lane.b32.xlu0 %v3753, 16
        %v3850 = vpop.permute.xlu0 %3849
        %3851 = vrot.lane.b32.xlu0 %v3755, 16
        %v3852 = vpop.permute.xlu0 %3851
        %v3885 = vadd.f32 %v2788, %v3790
        %v3886 = vadd.f32 %v2789, %v3792
        %v3887 = vadd.f32 %v2790, %v3794
        %v3888 = vadd.f32 %v2791, %v3796
        %v3889 = vadd.f32 %v2792, %v3798
        %v3890 = vadd.f32 %v2793, %v3800
        %v3891 = vadd.f32 %v2794, %v3802
        %v3892 = vadd.f32 %v2795, %v3804
        %v3893 = vadd.f32 %v2796, %v3806
        %v3894 = vadd.f32 %v2797, %v3808
        %v3895 = vadd.f32 %v2798, %v3810
        %v3896 = vadd.f32 %v2799, %v3812
        %v3897 = vadd.f32 %v2800, %v3814
        %v3898 = vadd.f32 %v2801, %v3816
        %v3899 = vadd.f32 %v2802, %v3818
        %v3900 = vadd.f32 %v2803, %v3820
        %v3901 = vadd.f32 %v2804, %v3822
        %v3902 = vadd.f32 %v2805, %v3824
        %v3903 = vadd.f32 %v2806, %v3826
        %v3904 = vadd.f32 %v2807, %v3828
        %v3905 = vadd.f32 %v2808, %v3830
        %v3906 = vadd.f32 %v2809, %v3832
        %v3907 = vadd.f32 %v2810, %v3834
        %v3908 = vadd.f32 %v2811, %v3836
        %v3909 = vadd.f32 %v2812, %v3838
        %v3910 = vadd.f32 %v2813, %v3840
        %v3911 = vadd.f32 %v2814, %v3842
        %v3912 = vadd.f32 %v2815, %v3844
        %v3913 = vadd.f32 %v2816, %v3846
        %v3914 = vadd.f32 %v2817, %v3848
        %v3915 = vadd.f32 %v2818, %v3850
        %v3916 = vadd.f32 %v2819, %v3852
        %v3918 = vshrl.u32 %v3477, 16
        %v3920 = vrot.slane %v3918, 4
        %v3921 = vshll.u32 %v3477, 16
        %v3923 = vrot.slane %v3921, 5
        %v3924 = vor.u32 %v3920, %v3923
        %v3925 = vrot.slane %v3924, 4
        %v3927 = vshll.u32 %v3478, 16
        %v3929 = vrot.slane %v3927, 5
        %v3930 = vsel %vm810, %v3925, %v3929
        %v3931 = vshrl.u32 %v3478, 16
        %v3933 = vrot.slane %v3931, 4
        %v3934 = vor.u32 %v3933, %v3929
        %v3935 = vrot.slane %v3934, 4
        %v3937 = vshll.u32 %v3479, 16
        %v3939 = vrot.slane %v3937, 5
        %v3940 = vsel %vm810, %v3935, %v3939
        %v3942 = vshrl.u32 %v3480, 16
        %v3944 = vrot.slane %v3942, 4
        %v3945 = vshll.u32 %v3480, 16
        %v3947 = vrot.slane %v3945, 5
        %v3948 = vor.u32 %v3944, %v3947
        %v3949 = vrot.slane %v3948, 4
        %v3951 = vshll.u32 %v3481, 16
        %v3953 = vrot.slane %v3951, 5
        %v3954 = vsel %vm810, %v3949, %v3953
        %v3955 = vshrl.u32 %v3481, 16
        %v3957 = vrot.slane %v3955, 4
        %v3958 = vor.u32 %v3957, %v3953
        %v3959 = vrot.slane %v3958, 4
        %v3961 = vshll.u32 %v3482, 16
        %v3963 = vrot.slane %v3961, 5
        %v3964 = vsel %vm810, %v3959, %v3963
        %v3966 = vshrl.u32 %v3483, 16
        %v3968 = vrot.slane %v3966, 4
        %v3969 = vshll.u32 %v3483, 16
        %v3971 = vrot.slane %v3969, 5
        %v3972 = vor.u32 %v3968, %v3971
        %v3973 = vrot.slane %v3972, 4
        %v3975 = vshll.u32 %v3484, 16
        %v3977 = vrot.slane %v3975, 5
        %v3978 = vsel %vm810, %v3973, %v3977
        %v3979 = vshrl.u32 %v3484, 16
        %v3981 = vrot.slane %v3979, 4
        %v3982 = vor.u32 %v3981, %v3977
        %v3983 = vrot.slane %v3982, 4
        %v3985 = vshll.u32 %v3485, 16
        %v3987 = vrot.slane %v3985, 5
        %v3988 = vsel %vm810, %v3983, %v3987
        %v3990 = vshrl.u32 %v3486, 16
        %v3992 = vrot.slane %v3990, 4
        %v3993 = vshll.u32 %v3486, 16
        %v3995 = vrot.slane %v3993, 5
        %v3996 = vor.u32 %v3992, %v3995
        %v3997 = vrot.slane %v3996, 4
        %v3999 = vshll.u32 %v3487, 16
        %v4001 = vrot.slane %v3999, 5
        %v4002 = vsel %vm810, %v3997, %v4001
        %v4003 = vshrl.u32 %v3487, 16
        %v4005 = vrot.slane %v4003, 4
        %v4006 = vor.u32 %v4005, %v4001
        %v4007 = vrot.slane %v4006, 4
        %v4009 = vshll.u32 %v3488, 16
        %v4011 = vrot.slane %v4009, 5
        %v4012 = vsel %vm810, %v4007, %v4011
        %v4014 = vshrl.u32 %v3489, 16
        %v4016 = vrot.slane %v4014, 4
        %v4017 = vshll.u32 %v3489, 16
        %v4019 = vrot.slane %v4017, 5
        %v4020 = vor.u32 %v4016, %v4019
        %v4021 = vrot.slane %v4020, 4
        %v4023 = vshll.u32 %v3490, 16
        %v4025 = vrot.slane %v4023, 5
        %v4026 = vsel %vm810, %v4021, %v4025
        %v4027 = vshrl.u32 %v3490, 16
        %v4029 = vrot.slane %v4027, 4
        %v4030 = vor.u32 %v4029, %v4025
        %v4031 = vrot.slane %v4030, 4
        %v4033 = vshll.u32 %v3491, 16
        %v4035 = vrot.slane %v4033, 5
        %v4036 = vsel %vm810, %v4031, %v4035
        %v4038 = vshrl.u32 %v3492, 16
        %v4040 = vrot.slane %v4038, 4
        %v4041 = vshll.u32 %v3492, 16
        %v4043 = vrot.slane %v4041, 5
        %v4044 = vor.u32 %v4040, %v4043
        %v4045 = vrot.slane %v4044, 4
        %v4047 = vshll.u32 %v3493, 16
        %v4049 = vrot.slane %v4047, 5
        %v4050 = vsel %vm810, %v4045, %v4049
        %v4051 = vshrl.u32 %v3493, 16
        %v4053 = vrot.slane %v4051, 4
        %v4054 = vor.u32 %v4053, %v4049
        %v4055 = vrot.slane %v4054, 4
        %v4057 = vshll.u32 %v3494, 16
        %v4059 = vrot.slane %v4057, 5
        %v4060 = vsel %vm810, %v4055, %v4059
        %v4062 = vshrl.u32 %v3495, 16
        %v4064 = vrot.slane %v4062, 4
        %v4065 = vshll.u32 %v3495, 16
        %v4067 = vrot.slane %v4065, 5
        %v4068 = vor.u32 %v4064, %v4067
        %v4069 = vrot.slane %v4068, 4
        %v4071 = vshll.u32 %v3496, 16
        %v4073 = vrot.slane %v4071, 5
        %v4074 = vsel %vm810, %v4069, %v4073
        %v4075 = vshrl.u32 %v3496, 16
        %v4077 = vrot.slane %v4075, 4
        %v4078 = vor.u32 %v4077, %v4073
        %v4079 = vrot.slane %v4078, 4
        %v4081 = vshll.u32 %v3497, 16
        %v4083 = vrot.slane %v4081, 5
        %v4084 = vsel %vm810, %v4079, %v4083
        %v4086 = vshrl.u32 %v3498, 16
        %v4088 = vrot.slane %v4086, 4
        %v4089 = vshll.u32 %v3498, 16
        %v4091 = vrot.slane %v4089, 5
        %v4092 = vor.u32 %v4088, %v4091
        %v4093 = vrot.slane %v4092, 4
        %v4095 = vshll.u32 %v3499, 16
        %v4097 = vrot.slane %v4095, 5
        %v4098 = vsel %vm810, %v4093, %v4097
        %v4099 = vshrl.u32 %v3499, 16
        %v4101 = vrot.slane %v4099, 4
        %v4102 = vor.u32 %v4101, %v4097
        %v4103 = vrot.slane %v4102, 4
        %v4105 = vshll.u32 %v3500, 16
        %v4107 = vrot.slane %v4105, 5
        %v4108 = vsel %vm810, %v4103, %v4107
        %v4110 = vshrl.u32 %v3501, 16
        %v4112 = vrot.slane %v4110, 4
        %v4113 = vshll.u32 %v3501, 16
        %v4115 = vrot.slane %v4113, 5
        %v4116 = vor.u32 %v4112, %v4115
        %v4117 = vrot.slane %v4116, 4
        %v4119 = vshll.u32 %v3502, 16
        %v4121 = vrot.slane %v4119, 5
        %v4122 = vsel %vm810, %v4117, %v4121
        %v4123 = vshrl.u32 %v3502, 16
        %v4125 = vrot.slane %v4123, 4
        %v4126 = vor.u32 %v4125, %v4121
        %v4127 = vrot.slane %v4126, 4
        %v4129 = vshll.u32 %v3503, 16
        %v4131 = vrot.slane %v4129, 5
        %v4132 = vsel %vm810, %v4127, %v4131
        %v4134 = vshrl.u32 %v3504, 16
        %v4136 = vrot.slane %v4134, 4
        %v4137 = vshll.u32 %v3504, 16
        %v4139 = vrot.slane %v4137, 5
        %v4140 = vor.u32 %v4136, %v4139
        %v4141 = vrot.slane %v4140, 4
        %v4143 = vshll.u32 %v3505, 16
        %v4145 = vrot.slane %v4143, 5
        %v4146 = vsel %vm810, %v4141, %v4145
        %v4147 = vshrl.u32 %v3505, 16
        %v4149 = vrot.slane %v4147, 4
        %v4150 = vor.u32 %v4149, %v4145
        %v4151 = vrot.slane %v4150, 4
        %v4153 = vshll.u32 %v3506, 16
        %v4155 = vrot.slane %v4153, 5
        %v4156 = vsel %vm810, %v4151, %v4155
        %v4158 = vshrl.u32 %v3507, 16
        %v4160 = vrot.slane %v4158, 4
        %v4161 = vshll.u32 %v3507, 16
        %v4163 = vrot.slane %v4161, 5
        %v4164 = vor.u32 %v4160, %v4163
        %v4165 = vrot.slane %v4164, 4
        %v4167 = vshll.u32 %v3508, 16
        %v4169 = vrot.slane %v4167, 5
        %v4170 = vsel %vm810, %v4165, %v4169
        %v4171 = vshrl.u32 %v3508, 16
        %v4173 = vrot.slane %v4171, 4
        %v4174 = vor.u32 %v4173, %v4169
        %v4175 = vrot.slane %v4174, 4
        %v4177 = vshll.u32 %v3509, 16
        %v4179 = vrot.slane %v4177, 5
        %v4180 = vsel %vm810, %v4175, %v4179
        %v4182 = vshrl.u32 %v3510, 16
        %v4184 = vrot.slane %v4182, 4
        %v4185 = vshll.u32 %v3510, 16
        %v4187 = vrot.slane %v4185, 5
        %v4188 = vor.u32 %v4184, %v4187
        %v4189 = vrot.slane %v4188, 4
        %v4191 = vshll.u32 %v3511, 16
        %v4193 = vrot.slane %v4191, 5
        %v4194 = vsel %vm810, %v4189, %v4193
        %v4195 = vshrl.u32 %v3511, 16
        %v4197 = vrot.slane %v4195, 4
        %v4198 = vor.u32 %v4197, %v4193
        %v4199 = vrot.slane %v4198, 4
        %v4201 = vshll.u32 %v3512, 16
        %v4203 = vrot.slane %v4201, 5
        %v4204 = vsel %vm810, %v4199, %v4203
        %v4206 = vshrl.u32 %v3513, 16
        %v4208 = vrot.slane %v4206, 4
        %v4209 = vshll.u32 %v3513, 16
        %v4211 = vrot.slane %v4209, 5
        %v4212 = vor.u32 %v4208, %v4211
        %v4213 = vrot.slane %v4212, 4
        %v4215 = vshll.u32 %v3514, 16
        %v4217 = vrot.slane %v4215, 5
        %v4218 = vsel %vm810, %v4213, %v4217
        %v4219 = vshrl.u32 %v3514, 16
        %v4221 = vrot.slane %v4219, 4
        %v4222 = vor.u32 %v4221, %v4217
        %v4223 = vrot.slane %v4222, 4
        %v4225 = vshll.u32 %v3515, 16
        %v4227 = vrot.slane %v4225, 5
        %v4228 = vsel %vm810, %v4223, %v4227
        %v4230 = vshrl.u32 %v3516, 16
        %v4232 = vrot.slane %v4230, 4
        %v4233 = vshll.u32 %v3516, 16
        %v4235 = vrot.slane %v4233, 5
        %v4236 = vor.u32 %v4232, %v4235
        %v4237 = vrot.slane %v4236, 4
        %v4239 = vshll.u32 %v3517, 16
        %v4241 = vrot.slane %v4239, 5
        %v4242 = vsel %vm810, %v4237, %v4241
        %v4243 = vshrl.u32 %v3517, 16
        %v4245 = vrot.slane %v4243, 4
        %v4246 = vor.u32 %v4245, %v4241
        %v4247 = vrot.slane %v4246, 4
        %v4249 = vshll.u32 %v3518, 16
        %v4251 = vrot.slane %v4249, 5
        %v4252 = vsel %vm810, %v4247, %v4251
        %v4254 = vshrl.u32 %v3519, 16
        %v4256 = vrot.slane %v4254, 4
        %v4257 = vshll.u32 %v3519, 16
        %v4259 = vrot.slane %v4257, 5
        %v4260 = vor.u32 %v4256, %v4259
        %v4261 = vrot.slane %v4260, 4
        %v4263 = vshll.u32 %v3520, 16
        %v4265 = vrot.slane %v4263, 5
        %v4266 = vsel %vm810, %v4261, %v4265
        %v4267 = vshrl.u32 %v3520, 16
        %v4269 = vrot.slane %v4267, 4
        %v4270 = vor.u32 %v4269, %v4265
        %v4271 = vrot.slane %v4270, 4
        %v4273 = vshll.u32 %v3521, 16
        %v4275 = vrot.slane %v4273, 5
        %v4276 = vsel %vm810, %v4271, %v4275
        %v4278 = vshrl.u32 %v3522, 16
        %v4280 = vrot.slane %v4278, 4
        %v4281 = vshll.u32 %v3522, 16
        %v4283 = vrot.slane %v4281, 5
        %v4284 = vor.u32 %v4280, %v4283
        %v4285 = vrot.slane %v4284, 4
        %v4287 = vshll.u32 %v3523, 16
        %v4289 = vrot.slane %v4287, 5
        %v4290 = vsel %vm810, %v4285, %v4289
        %v4291 = vshrl.u32 %v3523, 16
        %v4293 = vrot.slane %v4291, 4
        %v4294 = vor.u32 %v4293, %v4289
        %v4295 = vrot.slane %v4294, 4
        %v4297 = vshll.u32 %v3524, 16
        %v4299 = vrot.slane %v4297, 5
        %v4300 = vsel %vm810, %v4295, %v4299
        %s4301 = scalar_lea.vmem %s3, 8
        %v4302 = vld [vmem:[%s4301] sm:$0xf]
        %v4303 = vld [vmem:[%s4301 + $0x4] sm:$0xf]
        %v4304 = vunpack.c.l.b16 %v3930
        %v4305 = vunpack.c.l.b16 %v3940
        %v4306 = vunpack.c.l.b16 %v3954
        %v4307 = vunpack.c.l.b16 %v3964
        %v4308 = vunpack.c.l.b16 %v3978
        %v4309 = vunpack.c.l.b16 %v3988
        %v4310 = vunpack.c.l.b16 %v4002
        %v4311 = vunpack.c.l.b16 %v4012
        %v4312 = vunpack.c.l.b16 %v4026
        %v4313 = vunpack.c.l.b16 %v4036
        %v4314 = vunpack.c.l.b16 %v4050
        %v4315 = vunpack.c.l.b16 %v4060
        %v4316 = vunpack.c.l.b16 %v4074
        %v4317 = vunpack.c.l.b16 %v4084
        %v4318 = vunpack.c.l.b16 %v4098
        %v4319 = vunpack.c.l.b16 %v4108
        %v4320 = vunpack.c.l.b16 %v4122
        %v4321 = vunpack.c.l.b16 %v4132
        %v4322 = vunpack.c.l.b16 %v4146
        %v4323 = vunpack.c.l.b16 %v4156
        %v4324 = vunpack.c.l.b16 %v4170
        %v4325 = vunpack.c.l.b16 %v4180
        %v4326 = vunpack.c.l.b16 %v4194
        %v4327 = vunpack.c.l.b16 %v4204
        %v4328 = vunpack.c.l.b16 %v4218
        %v4329 = vunpack.c.l.b16 %v4228
        %v4330 = vunpack.c.l.b16 %v4242
        %v4331 = vunpack.c.l.b16 %v4252
        %v4332 = vunpack.c.l.b16 %v4266
        %v4333 = vunpack.c.l.b16 %v4276
        %v4334 = vunpack.c.l.b16 %v4290
        %v4335 = vunpack.c.l.b16 %v4300
        %v4336 = vpack.c.b16 %v4305, %v4304
        %v4337 = vpack.c.b16 %v4307, %v4306
        %v4338 = vpack.c.b16 %v4309, %v4308
        %v4339 = vpack.c.b16 %v4311, %v4310
        %v4340 = vpack.c.b16 %v4313, %v4312
        %v4341 = vpack.c.b16 %v4315, %v4314
        %v4342 = vpack.c.b16 %v4317, %v4316
        %v4343 = vpack.c.b16 %v4319, %v4318
        %v4344 = vpack.c.b16 %v4321, %v4320
        %v4345 = vpack.c.b16 %v4323, %v4322
        %v4346 = vpack.c.b16 %v4325, %v4324
        %v4347 = vpack.c.b16 %v4327, %v4326
        %v4348 = vpack.c.b16 %v4329, %v4328
        %v4349 = vpack.c.b16 %v4331, %v4330
        %v4350 = vpack.c.b16 %v4333, %v4332
        %v4351 = vpack.c.b16 %v4335, %v4334
        %v4354 = vunpack.c.l.b16 %v4302
        %v4355 = vunpack.c.l.b16 %v4303
        %v4356 = vpack.c.b16 %v4355, %v4354
        %v4359 = vsel %vm3619, %v4336, 0
        %v4362 = vsel %vm3619, %v4337, 0
        %v4365 = vsel %vm3619, %v4338, 0
        %v4368 = vsel %vm3619, %v4339, 0
        %v4371 = vsel %vm3619, %v4340, 0
        %v4374 = vsel %vm3619, %v4341, 0
        %v4377 = vsel %vm3619, %v4342, 0
        %v4380 = vsel %vm3619, %v4343, 0
        %v4383 = vsel %vm3619, %v4344, 0
        %v4386 = vsel %vm3619, %v4345, 0
        %v4389 = vsel %vm3619, %v4346, 0
        %v4392 = vsel %vm3619, %v4347, 0
        %v4395 = vsel %vm3619, %v4348, 0
        %v4398 = vsel %vm3619, %v4349, 0
        %v4401 = vsel %vm3619, %v4350, 0
        %v4404 = vsel %vm3619, %v4351, 0
        %4406 = vmatpush.bf16.msra.mxu0 0
        %4407 = vmatpush.bf16.msra.mxu0 0
        %4408 = vmatpush.bf16.msra.mxu0 0
        %4409 = vmatpush.bf16.msra.mxu0 0
        %4410 = vmatpush.bf16.msra.mxu0 0
        %4411 = vmatpush.bf16.msra.mxu0 0
        %4412 = vmatpush.bf16.msra.mxu0 0
        %4413 = vmatpush.bf16.msra.mxu0 %v4356
        %4414 = vmatmul.bf16.gmra.mxu0 %v4359
        %v4415 = vpop.f32.mrf.mxu0
        %v4416 = vadd.f32 0.0, %v4415
        %v4417 = vpop.f32.mrf.mxu0
        %v4418 = vadd.f32 0.0, %v4417
        %4419 = vmatmul.bf16.gmra.mxu0 %v4362
        %v4420 = vpop.f32.mrf.mxu0
        %v4421 = vadd.f32 0.0, %v4420
        %v4422 = vpop.f32.mrf.mxu0
        %v4423 = vadd.f32 0.0, %v4422
        %4424 = vmatmul.bf16.gmra.mxu0 %v4365
        %v4425 = vpop.f32.mrf.mxu0
        %v4426 = vadd.f32 0.0, %v4425
        %v4427 = vpop.f32.mrf.mxu0
        %v4428 = vadd.f32 0.0, %v4427
        %4429 = vmatmul.bf16.gmra.mxu0 %v4368
        %v4430 = vpop.f32.mrf.mxu0
        %v4431 = vadd.f32 0.0, %v4430
        %v4432 = vpop.f32.mrf.mxu0
        %v4433 = vadd.f32 0.0, %v4432
        %4434 = vmatmul.bf16.gmra.mxu0 %v4371
        %v4435 = vpop.f32.mrf.mxu0
        %v4436 = vadd.f32 0.0, %v4435
        %v4437 = vpop.f32.mrf.mxu0
        %v4438 = vadd.f32 0.0, %v4437
        %4439 = vmatmul.bf16.gmra.mxu0 %v4374
        %v4440 = vpop.f32.mrf.mxu0
        %v4441 = vadd.f32 0.0, %v4440
        %v4442 = vpop.f32.mrf.mxu0
        %v4443 = vadd.f32 0.0, %v4442
        %4444 = vmatmul.bf16.gmra.mxu0 %v4377
        %v4445 = vpop.f32.mrf.mxu0
        %v4446 = vadd.f32 0.0, %v4445
        %v4447 = vpop.f32.mrf.mxu0
        %v4448 = vadd.f32 0.0, %v4447
        %4449 = vmatmul.bf16.gmra.mxu0 %v4380
        %v4450 = vpop.f32.mrf.mxu0
        %v4451 = vadd.f32 0.0, %v4450
        %v4452 = vpop.f32.mrf.mxu0
        %v4453 = vadd.f32 0.0, %v4452
        %4454 = vmatmul.bf16.gmra.mxu0 %v4383
        %v4455 = vpop.f32.mrf.mxu0
        %v4456 = vadd.f32 0.0, %v4455
        %v4457 = vpop.f32.mrf.mxu0
        %v4458 = vadd.f32 0.0, %v4457
        %4459 = vmatmul.bf16.gmra.mxu0 %v4386
        %v4460 = vpop.f32.mrf.mxu0
        %v4461 = vadd.f32 0.0, %v4460
        %v4462 = vpop.f32.mrf.mxu0
        %v4463 = vadd.f32 0.0, %v4462
        %4464 = vmatmul.bf16.gmra.mxu0 %v4389
        %v4465 = vpop.f32.mrf.mxu0
        %v4466 = vadd.f32 0.0, %v4465
        %v4467 = vpop.f32.mrf.mxu0
        %v4468 = vadd.f32 0.0, %v4467
        %4469 = vmatmul.bf16.gmra.mxu0 %v4392
        %v4470 = vpop.f32.mrf.mxu0
        %v4471 = vadd.f32 0.0, %v4470
        %v4472 = vpop.f32.mrf.mxu0
        %v4473 = vadd.f32 0.0, %v4472
        %4474 = vmatmul.bf16.gmra.mxu0 %v4395
        %v4475 = vpop.f32.mrf.mxu0
        %v4476 = vadd.f32 0.0, %v4475
        %v4477 = vpop.f32.mrf.mxu0
        %v4478 = vadd.f32 0.0, %v4477
        %4479 = vmatmul.bf16.gmra.mxu0 %v4398
        %v4480 = vpop.f32.mrf.mxu0
        %v4481 = vadd.f32 0.0, %v4480
        %v4482 = vpop.f32.mrf.mxu0
        %v4483 = vadd.f32 0.0, %v4482
        %4484 = vmatmul.bf16.gmra.mxu0 %v4401
        %v4485 = vpop.f32.mrf.mxu0
        %v4486 = vadd.f32 0.0, %v4485
        %v4487 = vpop.f32.mrf.mxu0
        %v4488 = vadd.f32 0.0, %v4487
        %4489 = vmatmul.bf16.gmra.mxu0 %v4404
        %v4490 = vpop.f32.mrf.mxu0
        %v4491 = vadd.f32 0.0, %v4490
        %v4492 = vpop.f32.mrf.mxu0
        %v4493 = vadd.f32 0.0, %v4492
        %4494 = vdwg.mxu0
        %4527 = vrot.lane.b32.xlu0 %v4416, 16
        %v4528 = vpop.permute.xlu0 %4527
        %4529 = vrot.lane.b32.xlu0 %v4418, 16
        %v4530 = vpop.permute.xlu0 %4529
        %4531 = vrot.lane.b32.xlu0 %v4421, 16
        %v4532 = vpop.permute.xlu0 %4531
        %4533 = vrot.lane.b32.xlu0 %v4423, 16
        %v4534 = vpop.permute.xlu0 %4533
        %4535 = vrot.lane.b32.xlu0 %v4426, 16
        %v4536 = vpop.permute.xlu0 %4535
        %4537 = vrot.lane.b32.xlu0 %v4428, 16
        %v4538 = vpop.permute.xlu0 %4537
        %4539 = vrot.lane.b32.xlu0 %v4431, 16
        %v4540 = vpop.permute.xlu0 %4539
        %4541 = vrot.lane.b32.xlu0 %v4433, 16
        %v4542 = vpop.permute.xlu0 %4541
        %4543 = vrot.lane.b32.xlu0 %v4436, 16
        %v4544 = vpop.permute.xlu0 %4543
        %4545 = vrot.lane.b32.xlu0 %v4438, 16
        %v4546 = vpop.permute.xlu0 %4545
        %4547 = vrot.lane.b32.xlu0 %v4441, 16
        %v4548 = vpop.permute.xlu0 %4547
        %4549 = vrot.lane.b32.xlu0 %v4443, 16
        %v4550 = vpop.permute.xlu0 %4549
        %4551 = vrot.lane.b32.xlu0 %v4446, 16
        %v4552 = vpop.permute.xlu0 %4551
        %4553 = vrot.lane.b32.xlu0 %v4448, 16
        %v4554 = vpop.permute.xlu0 %4553
        %4555 = vrot.lane.b32.xlu0 %v4451, 16
        %v4556 = vpop.permute.xlu0 %4555
        %4557 = vrot.lane.b32.xlu0 %v4453, 16
        %v4558 = vpop.permute.xlu0 %4557
        %4559 = vrot.lane.b32.xlu0 %v4456, 16
        %v4560 = vpop.permute.xlu0 %4559
        %4561 = vrot.lane.b32.xlu0 %v4458, 16
        %v4562 = vpop.permute.xlu0 %4561
        %4563 = vrot.lane.b32.xlu0 %v4461, 16
        %v4564 = vpop.permute.xlu0 %4563
        %4565 = vrot.lane.b32.xlu0 %v4463, 16
        %v4566 = vpop.permute.xlu0 %4565
        %4567 = vrot.lane.b32.xlu0 %v4466, 16
        %v4568 = vpop.permute.xlu0 %4567
        %4569 = vrot.lane.b32.xlu0 %v4468, 16
        %v4570 = vpop.permute.xlu0 %4569
        %4571 = vrot.lane.b32.xlu0 %v4471, 16
        %v4572 = vpop.permute.xlu0 %4571
        %4573 = vrot.lane.b32.xlu0 %v4473, 16
        %v4574 = vpop.permute.xlu0 %4573
        %4575 = vrot.lane.b32.xlu0 %v4476, 16
        %v4576 = vpop.permute.xlu0 %4575
        %4577 = vrot.lane.b32.xlu0 %v4478, 16
        %v4578 = vpop.permute.xlu0 %4577
        %4579 = vrot.lane.b32.xlu0 %v4481, 16
        %v4580 = vpop.permute.xlu0 %4579
        %4581 = vrot.lane.b32.xlu0 %v4483, 16
        %v4582 = vpop.permute.xlu0 %4581
        %4583 = vrot.lane.b32.xlu0 %v4486, 16
        %v4584 = vpop.permute.xlu0 %4583
        %4585 = vrot.lane.b32.xlu0 %v4488, 16
        %v4586 = vpop.permute.xlu0 %4585
        %4587 = vrot.lane.b32.xlu0 %v4491, 16
        %v4588 = vpop.permute.xlu0 %4587
        %4589 = vrot.lane.b32.xlu0 %v4493, 16
        %v4590 = vpop.permute.xlu0 %4589
        %v4623 = vadd.f32 %v3885, %v4528
        %v4624 = vadd.f32 %v3886, %v4530
        %v4625 = vadd.f32 %v3887, %v4532
        %v4626 = vadd.f32 %v3888, %v4534
        %v4627 = vadd.f32 %v3889, %v4536
        %v4628 = vadd.f32 %v3890, %v4538
        %v4629 = vadd.f32 %v3891, %v4540
        %v4630 = vadd.f32 %v3892, %v4542
        %v4631 = vadd.f32 %v3893, %v4544
        %v4632 = vadd.f32 %v3894, %v4546
        %v4633 = vadd.f32 %v3895, %v4548
        %v4634 = vadd.f32 %v3896, %v4550
        %v4635 = vadd.f32 %v3897, %v4552
        %v4636 = vadd.f32 %v3898, %v4554
        %v4637 = vadd.f32 %v3899, %v4556
        %v4638 = vadd.f32 %v3900, %v4558
        %v4639 = vadd.f32 %v3901, %v4560
        %v4640 = vadd.f32 %v3902, %v4562
        %v4641 = vadd.f32 %v3903, %v4564
        %v4642 = vadd.f32 %v3904, %v4566
        %v4643 = vadd.f32 %v3905, %v4568
        %v4644 = vadd.f32 %v3906, %v4570
        %v4645 = vadd.f32 %v3907, %v4572
        %v4646 = vadd.f32 %v3908, %v4574
        %v4647 = vadd.f32 %v3909, %v4576
        %v4648 = vadd.f32 %v3910, %v4578
        %v4649 = vadd.f32 %v3911, %v4580
        %v4650 = vadd.f32 %v3912, %v4582
        %v4651 = vadd.f32 %v3913, %v4584
        %v4652 = vadd.f32 %v3914, %v4586
        %v4653 = vadd.f32 %v3915, %v4588
        %v4654 = vadd.f32 %v3916, %v4590
        %v4671 = vrot.slane %v3477, 5
        %v4672 = vrot.slane %v4671, 4
        %v4673 = vrot.slane %v3478, 5
        %v4674 = vsel %vm1625, %v4672, %v4673
        %v4675 = vrot.slane %v4673, 4
        %v4676 = vrot.slane %v3479, 5
        %v4677 = vsel %vm1625, %v4675, %v4676
        %v4678 = vrot.slane %v3480, 5
        %v4679 = vrot.slane %v4678, 4
        %v4680 = vrot.slane %v3481, 5
        %v4681 = vsel %vm1625, %v4679, %v4680
        %v4682 = vrot.slane %v4680, 4
        %v4683 = vrot.slane %v3482, 5
        %v4684 = vsel %vm1625, %v4682, %v4683
        %v4685 = vrot.slane %v3483, 5
        %v4686 = vrot.slane %v4685, 4
        %v4687 = vrot.slane %v3484, 5
        %v4688 = vsel %vm1625, %v4686, %v4687
        %v4689 = vrot.slane %v4687, 4
        %v4690 = vrot.slane %v3485, 5
        %v4691 = vsel %vm1625, %v4689, %v4690
        %v4692 = vrot.slane %v3486, 5
        %v4693 = vrot.slane %v4692, 4
        %v4694 = vrot.slane %v3487, 5
        %v4695 = vsel %vm1625, %v4693, %v4694
        %v4696 = vrot.slane %v4694, 4
        %v4697 = vrot.slane %v3488, 5
        %v4698 = vsel %vm1625, %v4696, %v4697
        %v4699 = vrot.slane %v3489, 5
        %v4700 = vrot.slane %v4699, 4
        %v4701 = vrot.slane %v3490, 5
        %v4702 = vsel %vm1625, %v4700, %v4701
        %v4703 = vrot.slane %v4701, 4
        %v4704 = vrot.slane %v3491, 5
        %v4705 = vsel %vm1625, %v4703, %v4704
        %v4706 = vrot.slane %v3492, 5
        %v4707 = vrot.slane %v4706, 4
        %v4708 = vrot.slane %v3493, 5
        %v4709 = vsel %vm1625, %v4707, %v4708
        %v4710 = vrot.slane %v4708, 4
        %v4711 = vrot.slane %v3494, 5
        %v4712 = vsel %vm1625, %v4710, %v4711
        %v4713 = vrot.slane %v3495, 5
        %v4714 = vrot.slane %v4713, 4
        %v4715 = vrot.slane %v3496, 5
        %v4716 = vsel %vm1625, %v4714, %v4715
        %v4717 = vrot.slane %v4715, 4
        %v4718 = vrot.slane %v3497, 5
        %v4719 = vsel %vm1625, %v4717, %v4718
        %v4720 = vrot.slane %v3498, 5
        %v4721 = vrot.slane %v4720, 4
        %v4722 = vrot.slane %v3499, 5
        %v4723 = vsel %vm1625, %v4721, %v4722
        %v4724 = vrot.slane %v4722, 4
        %v4725 = vrot.slane %v3500, 5
        %v4726 = vsel %vm1625, %v4724, %v4725
        %v4727 = vrot.slane %v3501, 5
        %v4728 = vrot.slane %v4727, 4
        %v4729 = vrot.slane %v3502, 5
        %v4730 = vsel %vm1625, %v4728, %v4729
        %v4731 = vrot.slane %v4729, 4
        %v4732 = vrot.slane %v3503, 5
        %v4733 = vsel %vm1625, %v4731, %v4732
        %v4734 = vrot.slane %v3504, 5
        %v4735 = vrot.slane %v4734, 4
        %v4736 = vrot.slane %v3505, 5
        %v4737 = vsel %vm1625, %v4735, %v4736
        %v4738 = vrot.slane %v4736, 4
        %v4739 = vrot.slane %v3506, 5
        %v4740 = vsel %vm1625, %v4738, %v4739
        %v4741 = vrot.slane %v3507, 5
        %v4742 = vrot.slane %v4741, 4
        %v4743 = vrot.slane %v3508, 5
        %v4744 = vsel %vm1625, %v4742, %v4743
        %v4745 = vrot.slane %v4743, 4
        %v4746 = vrot.slane %v3509, 5
        %v4747 = vsel %vm1625, %v4745, %v4746
        %v4748 = vrot.slane %v3510, 5
        %v4749 = vrot.slane %v4748, 4
        %v4750 = vrot.slane %v3511, 5
        %v4751 = vsel %vm1625, %v4749, %v4750
        %v4752 = vrot.slane %v4750, 4
        %v4753 = vrot.slane %v3512, 5
        %v4754 = vsel %vm1625, %v4752, %v4753
        %v4755 = vrot.slane %v3513, 5
        %v4756 = vrot.slane %v4755, 4
        %v4757 = vrot.slane %v3514, 5
        %v4758 = vsel %vm1625, %v4756, %v4757
        %v4759 = vrot.slane %v4757, 4
        %v4760 = vrot.slane %v3515, 5
        %v4761 = vsel %vm1625, %v4759, %v4760
        %v4762 = vrot.slane %v3516, 5
        %v4763 = vrot.slane %v4762, 4
        %v4764 = vrot.slane %v3517, 5
        %v4765 = vsel %vm1625, %v4763, %v4764
        %v4766 = vrot.slane %v4764, 4
        %v4767 = vrot.slane %v3518, 5
        %v4768 = vsel %vm1625, %v4766, %v4767
        %v4769 = vrot.slane %v3519, 5
        %v4770 = vrot.slane %v4769, 4
        %v4771 = vrot.slane %v3520, 5
        %v4772 = vsel %vm1625, %v4770, %v4771
        %v4773 = vrot.slane %v4771, 4
        %v4774 = vrot.slane %v3521, 5
        %v4775 = vsel %vm1625, %v4773, %v4774
        %v4776 = vrot.slane %v3522, 5
        %v4777 = vrot.slane %v4776, 4
        %v4778 = vrot.slane %v3523, 5
        %v4779 = vsel %vm1625, %v4777, %v4778
        %v4780 = vrot.slane %v4778, 4
        %v4781 = vrot.slane %v3524, 5
        %v4782 = vsel %vm1625, %v4780, %v4781
        %s4783 = scalar_lea.vmem %s3, 16
        %v4784 = vld [vmem:[%s4783] sm:$0xf]
        %v4785 = vld [vmem:[%s4783 + $0x4] sm:$0xf]
        %v4786 = vunpack.c.l.b16 %v4674
        %v4787 = vunpack.c.l.b16 %v4677
        %v4788 = vunpack.c.l.b16 %v4681
        %v4789 = vunpack.c.l.b16 %v4684
        %v4790 = vunpack.c.l.b16 %v4688
        %v4791 = vunpack.c.l.b16 %v4691
        %v4792 = vunpack.c.l.b16 %v4695
        %v4793 = vunpack.c.l.b16 %v4698
        %v4794 = vunpack.c.l.b16 %v4702
        %v4795 = vunpack.c.l.b16 %v4705
        %v4796 = vunpack.c.l.b16 %v4709
        %v4797 = vunpack.c.l.b16 %v4712
        %v4798 = vunpack.c.l.b16 %v4716
        %v4799 = vunpack.c.l.b16 %v4719
        %v4800 = vunpack.c.l.b16 %v4723
        %v4801 = vunpack.c.l.b16 %v4726
        %v4802 = vunpack.c.l.b16 %v4730
        %v4803 = vunpack.c.l.b16 %v4733
        %v4804 = vunpack.c.l.b16 %v4737
        %v4805 = vunpack.c.l.b16 %v4740
        %v4806 = vunpack.c.l.b16 %v4744
        %v4807 = vunpack.c.l.b16 %v4747
        %v4808 = vunpack.c.l.b16 %v4751
        %v4809 = vunpack.c.l.b16 %v4754
        %v4810 = vunpack.c.l.b16 %v4758
        %v4811 = vunpack.c.l.b16 %v4761
        %v4812 = vunpack.c.l.b16 %v4765
        %v4813 = vunpack.c.l.b16 %v4768
        %v4814 = vunpack.c.l.b16 %v4772
        %v4815 = vunpack.c.l.b16 %v4775
        %v4816 = vunpack.c.l.b16 %v4779
        %v4817 = vunpack.c.l.b16 %v4782
        %v4818 = vpack.c.b16 %v4787, %v4786
        %v4819 = vpack.c.b16 %v4789, %v4788
        %v4820 = vpack.c.b16 %v4791, %v4790
        %v4821 = vpack.c.b16 %v4793, %v4792
        %v4822 = vpack.c.b16 %v4795, %v4794
        %v4823 = vpack.c.b16 %v4797, %v4796
        %v4824 = vpack.c.b16 %v4799, %v4798
        %v4825 = vpack.c.b16 %v4801, %v4800
        %v4826 = vpack.c.b16 %v4803, %v4802
        %v4827 = vpack.c.b16 %v4805, %v4804
        %v4828 = vpack.c.b16 %v4807, %v4806
        %v4829 = vpack.c.b16 %v4809, %v4808
        %v4830 = vpack.c.b16 %v4811, %v4810
        %v4831 = vpack.c.b16 %v4813, %v4812
        %v4832 = vpack.c.b16 %v4815, %v4814
        %v4833 = vpack.c.b16 %v4817, %v4816
        %v4836 = vunpack.c.l.b16 %v4784
        %v4837 = vunpack.c.l.b16 %v4785
        %v4838 = vpack.c.b16 %v4837, %v4836
        %v4841 = vsel %vm3619, %v4818, 0
        %v4844 = vsel %vm3619, %v4819, 0
        %v4847 = vsel %vm3619, %v4820, 0
        %v4850 = vsel %vm3619, %v4821, 0
        %v4853 = vsel %vm3619, %v4822, 0
        %v4856 = vsel %vm3619, %v4823, 0
        %v4859 = vsel %vm3619, %v4824, 0
        %v4862 = vsel %vm3619, %v4825, 0
        %v4865 = vsel %vm3619, %v4826, 0
        %v4868 = vsel %vm3619, %v4827, 0
        %v4871 = vsel %vm3619, %v4828, 0
        %v4874 = vsel %vm3619, %v4829, 0
        %v4877 = vsel %vm3619, %v4830, 0
        %v4880 = vsel %vm3619, %v4831, 0
        %v4883 = vsel %vm3619, %v4832, 0
        %v4886 = vsel %vm3619, %v4833, 0
        %4888 = vmatpush.bf16.msra.mxu0 0
        %4889 = vmatpush.bf16.msra.mxu0 0
        %4890 = vmatpush.bf16.msra.mxu0 0
        %4891 = vmatpush.bf16.msra.mxu0 0
        %4892 = vmatpush.bf16.msra.mxu0 0
        %4893 = vmatpush.bf16.msra.mxu0 0
        %4894 = vmatpush.bf16.msra.mxu0 0
        %4895 = vmatpush.bf16.msra.mxu0 %v4838
        %4896 = vmatmul.bf16.gmra.mxu0 %v4841
        %v4897 = vpop.f32.mrf.mxu0
        %v4898 = vadd.f32 0.0, %v4897
        %v4899 = vpop.f32.mrf.mxu0
        %v4900 = vadd.f32 0.0, %v4899
        %4901 = vmatmul.bf16.gmra.mxu0 %v4844
        %v4902 = vpop.f32.mrf.mxu0
        %v4903 = vadd.f32 0.0, %v4902
        %v4904 = vpop.f32.mrf.mxu0
        %v4905 = vadd.f32 0.0, %v4904
        %4906 = vmatmul.bf16.gmra.mxu0 %v4847
        %v4907 = vpop.f32.mrf.mxu0
        %v4908 = vadd.f32 0.0, %v4907
        %v4909 = vpop.f32.mrf.mxu0
        %v4910 = vadd.f32 0.0, %v4909
        %4911 = vmatmul.bf16.gmra.mxu0 %v4850
        %v4912 = vpop.f32.mrf.mxu0
        %v4913 = vadd.f32 0.0, %v4912
        %v4914 = vpop.f32.mrf.mxu0
        %v4915 = vadd.f32 0.0, %v4914
        %4916 = vmatmul.bf16.gmra.mxu0 %v4853
        %v4917 = vpop.f32.mrf.mxu0
        %v4918 = vadd.f32 0.0, %v4917
        %v4919 = vpop.f32.mrf.mxu0
        %v4920 = vadd.f32 0.0, %v4919
        %4921 = vmatmul.bf16.gmra.mxu0 %v4856
        %v4922 = vpop.f32.mrf.mxu0
        %v4923 = vadd.f32 0.0, %v4922
        %v4924 = vpop.f32.mrf.mxu0
        %v4925 = vadd.f32 0.0, %v4924
        %4926 = vmatmul.bf16.gmra.mxu0 %v4859
        %v4927 = vpop.f32.mrf.mxu0
        %v4928 = vadd.f32 0.0, %v4927
        %v4929 = vpop.f32.mrf.mxu0
        %v4930 = vadd.f32 0.0, %v4929
        %4931 = vmatmul.bf16.gmra.mxu0 %v4862
        %v4932 = vpop.f32.mrf.mxu0
        %v4933 = vadd.f32 0.0, %v4932
        %v4934 = vpop.f32.mrf.mxu0
        %v4935 = vadd.f32 0.0, %v4934
        %4936 = vmatmul.bf16.gmra.mxu0 %v4865
        %v4937 = vpop.f32.mrf.mxu0
        %v4938 = vadd.f32 0.0, %v4937
        %v4939 = vpop.f32.mrf.mxu0
        %v4940 = vadd.f32 0.0, %v4939
        %4941 = vmatmul.bf16.gmra.mxu0 %v4868
        %v4942 = vpop.f32.mrf.mxu0
        %v4943 = vadd.f32 0.0, %v4942
        %v4944 = vpop.f32.mrf.mxu0
        %v4945 = vadd.f32 0.0, %v4944
        %4946 = vmatmul.bf16.gmra.mxu0 %v4871
        %v4947 = vpop.f32.mrf.mxu0
        %v4948 = vadd.f32 0.0, %v4947
        %v4949 = vpop.f32.mrf.mxu0
        %v4950 = vadd.f32 0.0, %v4949
        %4951 = vmatmul.bf16.gmra.mxu0 %v4874
        %v4952 = vpop.f32.mrf.mxu0
        %v4953 = vadd.f32 0.0, %v4952
        %v4954 = vpop.f32.mrf.mxu0
        %v4955 = vadd.f32 0.0, %v4954
        %4956 = vmatmul.bf16.gmra.mxu0 %v4877
        %v4957 = vpop.f32.mrf.mxu0
        %v4958 = vadd.f32 0.0, %v4957
        %v4959 = vpop.f32.mrf.mxu0
        %v4960 = vadd.f32 0.0, %v4959
        %4961 = vmatmul.bf16.gmra.mxu0 %v4880
        %v4962 = vpop.f32.mrf.mxu0
        %v4963 = vadd.f32 0.0, %v4962
        %v4964 = vpop.f32.mrf.mxu0
        %v4965 = vadd.f32 0.0, %v4964
        %4966 = vmatmul.bf16.gmra.mxu0 %v4883
        %v4967 = vpop.f32.mrf.mxu0
        %v4968 = vadd.f32 0.0, %v4967
        %v4969 = vpop.f32.mrf.mxu0
        %v4970 = vadd.f32 0.0, %v4969
        %4971 = vmatmul.bf16.gmra.mxu0 %v4886
        %v4972 = vpop.f32.mrf.mxu0
        %v4973 = vadd.f32 0.0, %v4972
        %v4974 = vpop.f32.mrf.mxu0
        %v4975 = vadd.f32 0.0, %v4974
        %4976 = vdwg.mxu0
        %5009 = vrot.lane.b32.xlu0 %v4898, 16
        %v5010 = vpop.permute.xlu0 %5009
        %5011 = vrot.lane.b32.xlu0 %v4900, 16
        %v5012 = vpop.permute.xlu0 %5011
        %5013 = vrot.lane.b32.xlu0 %v4903, 16
        %v5014 = vpop.permute.xlu0 %5013
        %5015 = vrot.lane.b32.xlu0 %v4905, 16
        %v5016 = vpop.permute.xlu0 %5015
        %5017 = vrot.lane.b32.xlu0 %v4908, 16
        %v5018 = vpop.permute.xlu0 %5017
        %5019 = vrot.lane.b32.xlu0 %v4910, 16
        %v5020 = vpop.permute.xlu0 %5019
        %5021 = vrot.lane.b32.xlu0 %v4913, 16
        %v5022 = vpop.permute.xlu0 %5021
        %5023 = vrot.lane.b32.xlu0 %v4915, 16
        %v5024 = vpop.permute.xlu0 %5023
        %5025 = vrot.lane.b32.xlu0 %v4918, 16
        %v5026 = vpop.permute.xlu0 %5025
        %5027 = vrot.lane.b32.xlu0 %v4920, 16
        %v5028 = vpop.permute.xlu0 %5027
        %5029 = vrot.lane.b32.xlu0 %v4923, 16
        %v5030 = vpop.permute.xlu0 %5029
        %5031 = vrot.lane.b32.xlu0 %v4925, 16
        %v5032 = vpop.permute.xlu0 %5031
        %5033 = vrot.lane.b32.xlu0 %v4928, 16
        %v5034 = vpop.permute.xlu0 %5033
        %5035 = vrot.lane.b32.xlu0 %v4930, 16
        %v5036 = vpop.permute.xlu0 %5035
        %5037 = vrot.lane.b32.xlu0 %v4933, 16
        %v5038 = vpop.permute.xlu0 %5037
        %5039 = vrot.lane.b32.xlu0 %v4935, 16
        %v5040 = vpop.permute.xlu0 %5039
        %5041 = vrot.lane.b32.xlu0 %v4938, 16
        %v5042 = vpop.permute.xlu0 %5041
        %5043 = vrot.lane.b32.xlu0 %v4940, 16
        %v5044 = vpop.permute.xlu0 %5043
        %5045 = vrot.lane.b32.xlu0 %v4943, 16
        %v5046 = vpop.permute.xlu0 %5045
        %5047 = vrot.lane.b32.xlu0 %v4945, 16
        %v5048 = vpop.permute.xlu0 %5047
        %5049 = vrot.lane.b32.xlu0 %v4948, 16
        %v5050 = vpop.permute.xlu0 %5049
        %5051 = vrot.lane.b32.xlu0 %v4950, 16
        %v5052 = vpop.permute.xlu0 %5051
        %5053 = vrot.lane.b32.xlu0 %v4953, 16
        %v5054 = vpop.permute.xlu0 %5053
        %5055 = vrot.lane.b32.xlu0 %v4955, 16
        %v5056 = vpop.permute.xlu0 %5055
        %5057 = vrot.lane.b32.xlu0 %v4958, 16
        %v5058 = vpop.permute.xlu0 %5057
        %5059 = vrot.lane.b32.xlu0 %v4960, 16
        %v5060 = vpop.permute.xlu0 %5059
        %5061 = vrot.lane.b32.xlu0 %v4963, 16
        %v5062 = vpop.permute.xlu0 %5061
        %5063 = vrot.lane.b32.xlu0 %v4965, 16
        %v5064 = vpop.permute.xlu0 %5063
        %5065 = vrot.lane.b32.xlu0 %v4968, 16
        %v5066 = vpop.permute.xlu0 %5065
        %5067 = vrot.lane.b32.xlu0 %v4970, 16
        %v5068 = vpop.permute.xlu0 %5067
        %5069 = vrot.lane.b32.xlu0 %v4973, 16
        %v5070 = vpop.permute.xlu0 %5069
        %5071 = vrot.lane.b32.xlu0 %v4975, 16
        %v5072 = vpop.permute.xlu0 %5071
        %v5105 = vadd.f32 %v4623, %v5010
        %v5106 = vadd.f32 %v4624, %v5012
        %v5107 = vadd.f32 %v4625, %v5014
        %v5108 = vadd.f32 %v4626, %v5016
        %v5109 = vadd.f32 %v4627, %v5018
        %v5110 = vadd.f32 %v4628, %v5020
        %v5111 = vadd.f32 %v4629, %v5022
        %v5112 = vadd.f32 %v4630, %v5024
        %v5113 = vadd.f32 %v4631, %v5026
        %v5114 = vadd.f32 %v4632, %v5028
        %v5115 = vadd.f32 %v4633, %v5030
        %v5116 = vadd.f32 %v4634, %v5032
        %v5117 = vadd.f32 %v4635, %v5034
        %v5118 = vadd.f32 %v4636, %v5036
        %v5119 = vadd.f32 %v4637, %v5038
        %v5120 = vadd.f32 %v4638, %v5040
        %v5121 = vadd.f32 %v4639, %v5042
        %v5122 = vadd.f32 %v4640, %v5044
        %v5123 = vadd.f32 %v4641, %v5046
        %v5124 = vadd.f32 %v4642, %v5048
        %v5125 = vadd.f32 %v4643, %v5050
        %v5126 = vadd.f32 %v4644, %v5052
        %v5127 = vadd.f32 %v4645, %v5054
        %v5128 = vadd.f32 %v4646, %v5056
        %v5129 = vadd.f32 %v4647, %v5058
        %v5130 = vadd.f32 %v4648, %v5060
        %v5131 = vadd.f32 %v4649, %v5062
        %v5132 = vadd.f32 %v4650, %v5064
        %v5133 = vadd.f32 %v4651, %v5066
        %v5134 = vadd.f32 %v4652, %v5068
        %v5135 = vadd.f32 %v4653, %v5070
        %v5136 = vadd.f32 %v4654, %v5072
        %s5137 = scalar_lea.vmem %s3, 24
        %v5138 = vld [vmem:[%s5137] sm:$0xf]
        %v5139 = vld [vmem:[%s5137 + $0x4] sm:$0xf]
        %v5142 = vunpack.c.l.b16 %v3525
        %v5143 = vunpack.c.l.b16 %v3526
        %v5144 = vpack.c.b16 %v5143, %v5142
        %v5147 = vunpack.c.l.b16 %v5138
        %v5148 = vunpack.c.l.b16 %v5139
        %v5149 = vpack.c.b16 %v5148, %v5147
        %v5152 = vsel %vm3619, %v5144, 0
        %5154 = vmatpush.bf16.msra.mxu0 0
        %5155 = vmatpush.bf16.msra.mxu0 0
        %5156 = vmatpush.bf16.msra.mxu0 0
        %5157 = vmatpush.bf16.msra.mxu0 0
        %5158 = vmatpush.bf16.msra.mxu0 0
        %5159 = vmatpush.bf16.msra.mxu0 0
        %5160 = vmatpush.bf16.msra.mxu0 0
        %5161 = vmatpush.bf16.msra.mxu0 %v5149
        %5162 = vmatmul.bf16.gmra.mxu0 %v3624
        %v5163 = vpop.f32.mrf.mxu0
        %v5164 = vadd.f32 0.0, %v5163
        %v5165 = vpop.f32.mrf.mxu0
        %v5166 = vadd.f32 0.0, %v5165
        %5167 = vmatmul.bf16.gmra.mxu0 %v3627
        %v5168 = vpop.f32.mrf.mxu0
        %v5169 = vadd.f32 0.0, %v5168
        %v5170 = vpop.f32.mrf.mxu0
        %v5171 = vadd.f32 0.0, %v5170
        %5172 = vmatmul.bf16.gmra.mxu0 %v3630
        %v5173 = vpop.f32.mrf.mxu0
        %v5174 = vadd.f32 0.0, %v5173
        %v5175 = vpop.f32.mrf.mxu0
        %v5176 = vadd.f32 0.0, %v5175
        %5177 = vmatmul.bf16.gmra.mxu0 %v3633
        %v5178 = vpop.f32.mrf.mxu0
        %v5179 = vadd.f32 0.0, %v5178
        %v5180 = vpop.f32.mrf.mxu0
        %v5181 = vadd.f32 0.0, %v5180
        %5182 = vmatmul.bf16.gmra.mxu0 %v3636
        %v5183 = vpop.f32.mrf.mxu0
        %v5184 = vadd.f32 0.0, %v5183
        %v5185 = vpop.f32.mrf.mxu0
        %v5186 = vadd.f32 0.0, %v5185
        %5187 = vmatmul.bf16.gmra.mxu0 %v3639
        %v5188 = vpop.f32.mrf.mxu0
        %v5189 = vadd.f32 0.0, %v5188
        %v5190 = vpop.f32.mrf.mxu0
        %v5191 = vadd.f32 0.0, %v5190
        %5192 = vmatmul.bf16.gmra.mxu0 %v3642
        %v5193 = vpop.f32.mrf.mxu0
        %v5194 = vadd.f32 0.0, %v5193
        %v5195 = vpop.f32.mrf.mxu0
        %v5196 = vadd.f32 0.0, %v5195
        %5197 = vmatmul.bf16.gmra.mxu0 %v3645
        %v5198 = vpop.f32.mrf.mxu0
        %v5199 = vadd.f32 0.0, %v5198
        %v5200 = vpop.f32.mrf.mxu0
        %v5201 = vadd.f32 0.0, %v5200
        %5202 = vmatmul.bf16.gmra.mxu0 %v3648
        %v5203 = vpop.f32.mrf.mxu0
        %v5204 = vadd.f32 0.0, %v5203
        %v5205 = vpop.f32.mrf.mxu0
        %v5206 = vadd.f32 0.0, %v5205
        %5207 = vmatmul.bf16.gmra.mxu0 %v3651
        %v5208 = vpop.f32.mrf.mxu0
        %v5209 = vadd.f32 0.0, %v5208
        %v5210 = vpop.f32.mrf.mxu0
        %v5211 = vadd.f32 0.0, %v5210
        %5212 = vmatmul.bf16.gmra.mxu0 %v3654
        %v5213 = vpop.f32.mrf.mxu0
        %v5214 = vadd.f32 0.0, %v5213
        %v5215 = vpop.f32.mrf.mxu0
        %v5216 = vadd.f32 0.0, %v5215
        %5217 = vmatmul.bf16.gmra.mxu0 %v3657
        %v5218 = vpop.f32.mrf.mxu0
        %v5219 = vadd.f32 0.0, %v5218
        %v5220 = vpop.f32.mrf.mxu0
        %v5221 = vadd.f32 0.0, %v5220
        %5222 = vmatmul.bf16.gmra.mxu0 %v3660
        %v5223 = vpop.f32.mrf.mxu0
        %v5224 = vadd.f32 0.0, %v5223
        %v5225 = vpop.f32.mrf.mxu0
        %v5226 = vadd.f32 0.0, %v5225
        %5227 = vmatmul.bf16.gmra.mxu0 %v3663
        %v5228 = vpop.f32.mrf.mxu0
        %v5229 = vadd.f32 0.0, %v5228
        %v5230 = vpop.f32.mrf.mxu0
        %v5231 = vadd.f32 0.0, %v5230
        %5232 = vmatmul.bf16.gmra.mxu0 %v3666
        %v5233 = vpop.f32.mrf.mxu0
        %v5234 = vadd.f32 0.0, %v5233
        %v5235 = vpop.f32.mrf.mxu0
        %v5236 = vadd.f32 0.0, %v5235
        %5237 = vmatmul.bf16.gmra.mxu0 %v5152
        %v5238 = vpop.f32.mrf.mxu0
        %v5239 = vadd.f32 0.0, %v5238
        %v5240 = vpop.f32.mrf.mxu0
        %v5241 = vadd.f32 0.0, %v5240
        %5242 = vdwg.mxu0
        %5275 = vrot.lane.b32.xlu0 %v5164, 16
        %v5276 = vpop.permute.xlu0 %5275
        %5277 = vrot.lane.b32.xlu0 %v5166, 16
        %v5278 = vpop.permute.xlu0 %5277
        %5279 = vrot.lane.b32.xlu0 %v5169, 16
        %v5280 = vpop.permute.xlu0 %5279
        %5281 = vrot.lane.b32.xlu0 %v5171, 16
        %v5282 = vpop.permute.xlu0 %5281
        %5283 = vrot.lane.b32.xlu0 %v5174, 16
        %v5284 = vpop.permute.xlu0 %5283
        %5285 = vrot.lane.b32.xlu0 %v5176, 16
        %v5286 = vpop.permute.xlu0 %5285
        %5287 = vrot.lane.b32.xlu0 %v5179, 16
        %v5288 = vpop.permute.xlu0 %5287
        %5289 = vrot.lane.b32.xlu0 %v5181, 16
        %v5290 = vpop.permute.xlu0 %5289
        %5291 = vrot.lane.b32.xlu0 %v5184, 16
        %v5292 = vpop.permute.xlu0 %5291
        %5293 = vrot.lane.b32.xlu0 %v5186, 16
        %v5294 = vpop.permute.xlu0 %5293
        %5295 = vrot.lane.b32.xlu0 %v5189, 16
        %v5296 = vpop.permute.xlu0 %5295
        %5297 = vrot.lane.b32.xlu0 %v5191, 16
        %v5298 = vpop.permute.xlu0 %5297
        %5299 = vrot.lane.b32.xlu0 %v5194, 16
        %v5300 = vpop.permute.xlu0 %5299
        %5301 = vrot.lane.b32.xlu0 %v5196, 16
        %v5302 = vpop.permute.xlu0 %5301
        %5303 = vrot.lane.b32.xlu0 %v5199, 16
        %v5304 = vpop.permute.xlu0 %5303
        %5305 = vrot.lane.b32.xlu0 %v5201, 16
        %v5306 = vpop.permute.xlu0 %5305
        %5307 = vrot.lane.b32.xlu0 %v5204, 16
        %v5308 = vpop.permute.xlu0 %5307
        %5309 = vrot.lane.b32.xlu0 %v5206, 16
        %v5310 = vpop.permute.xlu0 %5309
        %5311 = vrot.lane.b32.xlu0 %v5209, 16
        %v5312 = vpop.permute.xlu0 %5311
        %5313 = vrot.lane.b32.xlu0 %v5211, 16
        %v5314 = vpop.permute.xlu0 %5313
        %5315 = vrot.lane.b32.xlu0 %v5214, 16
        %v5316 = vpop.permute.xlu0 %5315
        %5317 = vrot.lane.b32.xlu0 %v5216, 16
        %v5318 = vpop.permute.xlu0 %5317
        %5319 = vrot.lane.b32.xlu0 %v5219, 16
        %v5320 = vpop.permute.xlu0 %5319
        %5321 = vrot.lane.b32.xlu0 %v5221, 16
        %v5322 = vpop.permute.xlu0 %5321
        %5323 = vrot.lane.b32.xlu0 %v5224, 16
        %v5324 = vpop.permute.xlu0 %5323
        %5325 = vrot.lane.b32.xlu0 %v5226, 16
        %v5326 = vpop.permute.xlu0 %5325
        %5327 = vrot.lane.b32.xlu0 %v5229, 16
        %v5328 = vpop.permute.xlu0 %5327
        %5329 = vrot.lane.b32.xlu0 %v5231, 16
        %v5330 = vpop.permute.xlu0 %5329
        %5331 = vrot.lane.b32.xlu0 %v5234, 16
        %v5332 = vpop.permute.xlu0 %5331
        %5333 = vrot.lane.b32.xlu0 %v5236, 16
        %v5334 = vpop.permute.xlu0 %5333
        %5335 = vrot.lane.b32.xlu0 %v5239, 16
        %v5336 = vpop.permute.xlu0 %5335
        %5337 = vrot.lane.b32.xlu0 %v5241, 16
        %v5338 = vpop.permute.xlu0 %5337
        %v5371 = vadd.f32 %v5105, %v5276
        %v5372 = vadd.f32 %v5106, %v5278
        %v5373 = vadd.f32 %v5107, %v5280
        %v5374 = vadd.f32 %v5108, %v5282
        %v5375 = vadd.f32 %v5109, %v5284
        %v5376 = vadd.f32 %v5110, %v5286
        %v5377 = vadd.f32 %v5111, %v5288
        %v5378 = vadd.f32 %v5112, %v5290
        %v5379 = vadd.f32 %v5113, %v5292
        %v5380 = vadd.f32 %v5114, %v5294
        %v5381 = vadd.f32 %v5115, %v5296
        %v5382 = vadd.f32 %v5116, %v5298
        %v5383 = vadd.f32 %v5117, %v5300
        %v5384 = vadd.f32 %v5118, %v5302
        %v5385 = vadd.f32 %v5119, %v5304
        %v5386 = vadd.f32 %v5120, %v5306
        %v5387 = vadd.f32 %v5121, %v5308
        %v5388 = vadd.f32 %v5122, %v5310
        %v5389 = vadd.f32 %v5123, %v5312
        %v5390 = vadd.f32 %v5124, %v5314
        %v5391 = vadd.f32 %v5125, %v5316
        %v5392 = vadd.f32 %v5126, %v5318
        %v5393 = vadd.f32 %v5127, %v5320
        %v5394 = vadd.f32 %v5128, %v5322
        %v5395 = vadd.f32 %v5129, %v5324
        %v5396 = vadd.f32 %v5130, %v5326
        %v5397 = vadd.f32 %v5131, %v5328
        %v5398 = vadd.f32 %v5132, %v5330
        %v5399 = vadd.f32 %v5133, %v5332
        %v5400 = vadd.f32 %v5134, %v5334
        %v5401 = vadd.f32 %v5135, %v5336
        %v5402 = vadd.f32 %v5136, %v5338
        %v5404 = vshrl.u32 %v3525, 16
        %v5406 = vrot.slane %v5404, 4
        %v5407 = vshll.u32 %v3525, 16
        %v5409 = vrot.slane %v5407, 5
        %v5410 = vor.u32 %v5406, %v5409
        %v5411 = vrot.slane %v5410, 4
        %v5413 = vshll.u32 %v3526, 16
        %v5415 = vrot.slane %v5413, 5
        %v5416 = vsel %vm810, %v5411, %v5415
        %v5417 = vshrl.u32 %v3526, 16
        %v5419 = vrot.slane %v5417, 4
        %v5420 = vor.u32 %v5419, %v5415
        %v5421 = vrot.slane %v5420, 4
        %v5423 = vshll.u32 %v3527, 16
        %v5425 = vrot.slane %v5423, 5
        %v5426 = vsel %vm810, %v5421, %v5425
        %s5427 = scalar_lea.vmem %s3, 32
        %v5428 = vld [vmem:[%s5427] sm:$0xf]
        %v5429 = vld [vmem:[%s5427 + $0x4] sm:$0xf]
        %v5430 = vunpack.c.l.b16 %v5416
        %v5431 = vunpack.c.l.b16 %v5426
        %v5432 = vpack.c.b16 %v5431, %v5430
        %v5435 = vunpack.c.l.b16 %v5428
        %v5436 = vunpack.c.l.b16 %v5429
        %v5437 = vpack.c.b16 %v5436, %v5435
        %v5440 = vsel %vm3619, %v5432, 0
        %5442 = vmatpush.bf16.msra.mxu0 0
        %5443 = vmatpush.bf16.msra.mxu0 0
        %5444 = vmatpush.bf16.msra.mxu0 0
        %5445 = vmatpush.bf16.msra.mxu0 0
        %5446 = vmatpush.bf16.msra.mxu0 0
        %5447 = vmatpush.bf16.msra.mxu0 0
        %5448 = vmatpush.bf16.msra.mxu0 0
        %5449 = vmatpush.bf16.msra.mxu0 %v5437
        %5450 = vmatmul.bf16.gmra.mxu0 %v4362
        %v5451 = vpop.f32.mrf.mxu0
        %v5452 = vadd.f32 0.0, %v5451
        %v5453 = vpop.f32.mrf.mxu0
        %v5454 = vadd.f32 0.0, %v5453
        %5455 = vmatmul.bf16.gmra.mxu0 %v4365
        %v5456 = vpop.f32.mrf.mxu0
        %v5457 = vadd.f32 0.0, %v5456
        %v5458 = vpop.f32.mrf.mxu0
        %v5459 = vadd.f32 0.0, %v5458
        %5460 = vmatmul.bf16.gmra.mxu0 %v4368
        %v5461 = vpop.f32.mrf.mxu0
        %v5462 = vadd.f32 0.0, %v5461
        %v5463 = vpop.f32.mrf.mxu0
        %v5464 = vadd.f32 0.0, %v5463
        %5465 = vmatmul.bf16.gmra.mxu0 %v4371
        %v5466 = vpop.f32.mrf.mxu0
        %v5467 = vadd.f32 0.0, %v5466
        %v5468 = vpop.f32.mrf.mxu0
        %v5469 = vadd.f32 0.0, %v5468
        %5470 = vmatmul.bf16.gmra.mxu0 %v4374
        %v5471 = vpop.f32.mrf.mxu0
        %v5472 = vadd.f32 0.0, %v5471
        %v5473 = vpop.f32.mrf.mxu0
        %v5474 = vadd.f32 0.0, %v5473
        %5475 = vmatmul.bf16.gmra.mxu0 %v4377
        %v5476 = vpop.f32.mrf.mxu0
        %v5477 = vadd.f32 0.0, %v5476
        %v5478 = vpop.f32.mrf.mxu0
        %v5479 = vadd.f32 0.0, %v5478
        %5480 = vmatmul.bf16.gmra.mxu0 %v4380
        %v5481 = vpop.f32.mrf.mxu0
        %v5482 = vadd.f32 0.0, %v5481
        %v5483 = vpop.f32.mrf.mxu0
        %v5484 = vadd.f32 0.0, %v5483
        %5485 = vmatmul.bf16.gmra.mxu0 %v4383
        %v5486 = vpop.f32.mrf.mxu0
        %v5487 = vadd.f32 0.0, %v5486
        %v5488 = vpop.f32.mrf.mxu0
        %v5489 = vadd.f32 0.0, %v5488
        %5490 = vmatmul.bf16.gmra.mxu0 %v4386
        %v5491 = vpop.f32.mrf.mxu0
        %v5492 = vadd.f32 0.0, %v5491
        %v5493 = vpop.f32.mrf.mxu0
        %v5494 = vadd.f32 0.0, %v5493
        %5495 = vmatmul.bf16.gmra.mxu0 %v4389
        %v5496 = vpop.f32.mrf.mxu0
        %v5497 = vadd.f32 0.0, %v5496
        %v5498 = vpop.f32.mrf.mxu0
        %v5499 = vadd.f32 0.0, %v5498
        %5500 = vmatmul.bf16.gmra.mxu0 %v4392
        %v5501 = vpop.f32.mrf.mxu0
        %v5502 = vadd.f32 0.0, %v5501
        %v5503 = vpop.f32.mrf.mxu0
        %v5504 = vadd.f32 0.0, %v5503
        %5505 = vmatmul.bf16.gmra.mxu0 %v4395
        %v5506 = vpop.f32.mrf.mxu0
        %v5507 = vadd.f32 0.0, %v5506
        %v5508 = vpop.f32.mrf.mxu0
        %v5509 = vadd.f32 0.0, %v5508
        %5510 = vmatmul.bf16.gmra.mxu0 %v4398
        %v5511 = vpop.f32.mrf.mxu0
        %v5512 = vadd.f32 0.0, %v5511
        %v5513 = vpop.f32.mrf.mxu0
        %v5514 = vadd.f32 0.0, %v5513
        %5515 = vmatmul.bf16.gmra.mxu0 %v4401
        %v5516 = vpop.f32.mrf.mxu0
        %v5517 = vadd.f32 0.0, %v5516
        %v5518 = vpop.f32.mrf.mxu0
        %v5519 = vadd.f32 0.0, %v5518
        %5520 = vmatmul.bf16.gmra.mxu0 %v4404
        %v5521 = vpop.f32.mrf.mxu0
        %v5522 = vadd.f32 0.0, %v5521
        %v5523 = vpop.f32.mrf.mxu0
        %v5524 = vadd.f32 0.0, %v5523
        %5525 = vmatmul.bf16.gmra.mxu0 %v5440
        %v5526 = vpop.f32.mrf.mxu0
        %v5527 = vadd.f32 0.0, %v5526
        %v5528 = vpop.f32.mrf.mxu0
        %v5529 = vadd.f32 0.0, %v5528
        %5530 = vdwg.mxu0
        %5563 = vrot.lane.b32.xlu0 %v5452, 16
        %v5564 = vpop.permute.xlu0 %5563
        %5565 = vrot.lane.b32.xlu0 %v5454, 16
        %v5566 = vpop.permute.xlu0 %5565
        %5567 = vrot.lane.b32.xlu0 %v5457, 16
        %v5568 = vpop.permute.xlu0 %5567
        %5569 = vrot.lane.b32.xlu0 %v5459, 16
        %v5570 = vpop.permute.xlu0 %5569
        %5571 = vrot.lane.b32.xlu0 %v5462, 16
        %v5572 = vpop.permute.xlu0 %5571
        %5573 = vrot.lane.b32.xlu0 %v5464, 16
        %v5574 = vpop.permute.xlu0 %5573
        %5575 = vrot.lane.b32.xlu0 %v5467, 16
        %v5576 = vpop.permute.xlu0 %5575
        %5577 = vrot.lane.b32.xlu0 %v5469, 16
        %v5578 = vpop.permute.xlu0 %5577
        %5579 = vrot.lane.b32.xlu0 %v5472, 16
        %v5580 = vpop.permute.xlu0 %5579
        %5581 = vrot.lane.b32.xlu0 %v5474, 16
        %v5582 = vpop.permute.xlu0 %5581
        %5583 = vrot.lane.b32.xlu0 %v5477, 16
        %v5584 = vpop.permute.xlu0 %5583
        %5585 = vrot.lane.b32.xlu0 %v5479, 16
        %v5586 = vpop.permute.xlu0 %5585
        %5587 = vrot.lane.b32.xlu0 %v5482, 16
        %v5588 = vpop.permute.xlu0 %5587
        %5589 = vrot.lane.b32.xlu0 %v5484, 16
        %v5590 = vpop.permute.xlu0 %5589
        %5591 = vrot.lane.b32.xlu0 %v5487, 16
        %v5592 = vpop.permute.xlu0 %5591
        %5593 = vrot.lane.b32.xlu0 %v5489, 16
        %v5594 = vpop.permute.xlu0 %5593
        %5595 = vrot.lane.b32.xlu0 %v5492, 16
        %v5596 = vpop.permute.xlu0 %5595
        %5597 = vrot.lane.b32.xlu0 %v5494, 16
        %v5598 = vpop.permute.xlu0 %5597
        %5599 = vrot.lane.b32.xlu0 %v5497, 16
        %v5600 = vpop.permute.xlu0 %5599
        %5601 = vrot.lane.b32.xlu0 %v5499, 16
        %v5602 = vpop.permute.xlu0 %5601
        %5603 = vrot.lane.b32.xlu0 %v5502, 16
        %v5604 = vpop.permute.xlu0 %5603
        %5605 = vrot.lane.b32.xlu0 %v5504, 16
        %v5606 = vpop.permute.xlu0 %5605
        %5607 = vrot.lane.b32.xlu0 %v5507, 16
        %v5608 = vpop.permute.xlu0 %5607
        %5609 = vrot.lane.b32.xlu0 %v5509, 16
        %v5610 = vpop.permute.xlu0 %5609
        %5611 = vrot.lane.b32.xlu0 %v5512, 16
        %v5612 = vpop.permute.xlu0 %5611
        %5613 = vrot.lane.b32.xlu0 %v5514, 16
        %v5614 = vpop.permute.xlu0 %5613
        %5615 = vrot.lane.b32.xlu0 %v5517, 16
        %v5616 = vpop.permute.xlu0 %5615
        %5617 = vrot.lane.b32.xlu0 %v5519, 16
        %v5618 = vpop.permute.xlu0 %5617
        %5619 = vrot.lane.b32.xlu0 %v5522, 16
        %v5620 = vpop.permute.xlu0 %5619
        %5621 = vrot.lane.b32.xlu0 %v5524, 16
        %v5622 = vpop.permute.xlu0 %5621
        %5623 = vrot.lane.b32.xlu0 %v5527, 16
        %v5624 = vpop.permute.xlu0 %5623
        %5625 = vrot.lane.b32.xlu0 %v5529, 16
        %v5626 = vpop.permute.xlu0 %5625
        %v5659 = vadd.f32 %v5371, %v5564
        %v5660 = vadd.f32 %v5372, %v5566
        %v5661 = vadd.f32 %v5373, %v5568
        %v5662 = vadd.f32 %v5374, %v5570
        %v5663 = vadd.f32 %v5375, %v5572
        %v5664 = vadd.f32 %v5376, %v5574
        %v5665 = vadd.f32 %v5377, %v5576
        %v5666 = vadd.f32 %v5378, %v5578
        %v5667 = vadd.f32 %v5379, %v5580
        %v5668 = vadd.f32 %v5380, %v5582
        %v5669 = vadd.f32 %v5381, %v5584
        %v5670 = vadd.f32 %v5382, %v5586
        %v5671 = vadd.f32 %v5383, %v5588
        %v5672 = vadd.f32 %v5384, %v5590
        %v5673 = vadd.f32 %v5385, %v5592
        %v5674 = vadd.f32 %v5386, %v5594
        %v5675 = vadd.f32 %v5387, %v5596
        %v5676 = vadd.f32 %v5388, %v5598
        %v5677 = vadd.f32 %v5389, %v5600
        %v5678 = vadd.f32 %v5390, %v5602
        %v5679 = vadd.f32 %v5391, %v5604
        %v5680 = vadd.f32 %v5392, %v5606
        %v5681 = vadd.f32 %v5393, %v5608
        %v5682 = vadd.f32 %v5394, %v5610
        %v5683 = vadd.f32 %v5395, %v5612
        %v5684 = vadd.f32 %v5396, %v5614
        %v5685 = vadd.f32 %v5397, %v5616
        %v5686 = vadd.f32 %v5398, %v5618
        %v5687 = vadd.f32 %v5399, %v5620
        %v5688 = vadd.f32 %v5400, %v5622
        %v5689 = vadd.f32 %v5401, %v5624
        %v5690 = vadd.f32 %v5402, %v5626
        %v5692 = vrot.slane %v3525, 5
        %v5693 = vrot.slane %v5692, 4
        %v5694 = vrot.slane %v3526, 5
        %v5695 = vsel %vm1625, %v5693, %v5694
        %v5696 = vrot.slane %v5694, 4
        %v5697 = vrot.slane %v3527, 5
        %v5698 = vsel %vm1625, %v5696, %v5697
        %s5699 = scalar_lea.vmem %s3, 40
        %v5700 = vld [vmem:[%s5699] sm:$0xf]
        %v5701 = vld [vmem:[%s5699 + $0x4] sm:$0xf]
        %v5702 = vunpack.c.l.b16 %v5695
        %v5703 = vunpack.c.l.b16 %v5698
        %v5704 = vpack.c.b16 %v5703, %v5702
        %v5707 = vunpack.c.l.b16 %v5700
        %v5708 = vunpack.c.l.b16 %v5701
        %v5709 = vpack.c.b16 %v5708, %v5707
        %v5712 = vsel %vm3619, %v5704, 0
        %5714 = vmatpush.bf16.msra.mxu0 0
        %5715 = vmatpush.bf16.msra.mxu0 0
        %5716 = vmatpush.bf16.msra.mxu0 0
        %5717 = vmatpush.bf16.msra.mxu0 0
        %5718 = vmatpush.bf16.msra.mxu0 0
        %5719 = vmatpush.bf16.msra.mxu0 0
        %5720 = vmatpush.bf16.msra.mxu0 0
        %5721 = vmatpush.bf16.msra.mxu0 %v5709
        %5722 = vmatmul.bf16.gmra.mxu0 %v4844
        %v5723 = vpop.f32.mrf.mxu0
        %v5724 = vadd.f32 0.0, %v5723
        %v5725 = vpop.f32.mrf.mxu0
        %v5726 = vadd.f32 0.0, %v5725
        %5727 = vmatmul.bf16.gmra.mxu0 %v4847
        %v5728 = vpop.f32.mrf.mxu0
        %v5729 = vadd.f32 0.0, %v5728
        %v5730 = vpop.f32.mrf.mxu0
        %v5731 = vadd.f32 0.0, %v5730
        %5732 = vmatmul.bf16.gmra.mxu0 %v4850
        %v5733 = vpop.f32.mrf.mxu0
        %v5734 = vadd.f32 0.0, %v5733
        %v5735 = vpop.f32.mrf.mxu0
        %v5736 = vadd.f32 0.0, %v5735
        %5737 = vmatmul.bf16.gmra.mxu0 %v4853
        %v5738 = vpop.f32.mrf.mxu0
        %v5739 = vadd.f32 0.0, %v5738
        %v5740 = vpop.f32.mrf.mxu0
        %v5741 = vadd.f32 0.0, %v5740
        %5742 = vmatmul.bf16.gmra.mxu0 %v4856
        %v5743 = vpop.f32.mrf.mxu0
        %v5744 = vadd.f32 0.0, %v5743
        %v5745 = vpop.f32.mrf.mxu0
        %v5746 = vadd.f32 0.0, %v5745
        %5747 = vmatmul.bf16.gmra.mxu0 %v4859
        %v5748 = vpop.f32.mrf.mxu0
        %v5749 = vadd.f32 0.0, %v5748
        %v5750 = vpop.f32.mrf.mxu0
        %v5751 = vadd.f32 0.0, %v5750
        %5752 = vmatmul.bf16.gmra.mxu0 %v4862
        %v5753 = vpop.f32.mrf.mxu0
        %v5754 = vadd.f32 0.0, %v5753
        %v5755 = vpop.f32.mrf.mxu0
        %v5756 = vadd.f32 0.0, %v5755
        %5757 = vmatmul.bf16.gmra.mxu0 %v4865
        %v5758 = vpop.f32.mrf.mxu0
        %v5759 = vadd.f32 0.0, %v5758
        %v5760 = vpop.f32.mrf.mxu0
        %v5761 = vadd.f32 0.0, %v5760
        %5762 = vmatmul.bf16.gmra.mxu0 %v4868
        %v5763 = vpop.f32.mrf.mxu0
        %v5764 = vadd.f32 0.0, %v5763
        %v5765 = vpop.f32.mrf.mxu0
        %v5766 = vadd.f32 0.0, %v5765
        %5767 = vmatmul.bf16.gmra.mxu0 %v4871
        %v5768 = vpop.f32.mrf.mxu0
        %v5769 = vadd.f32 0.0, %v5768
        %v5770 = vpop.f32.mrf.mxu0
        %v5771 = vadd.f32 0.0, %v5770
        %5772 = vmatmul.bf16.gmra.mxu0 %v4874
        %v5773 = vpop.f32.mrf.mxu0
        %v5774 = vadd.f32 0.0, %v5773
        %v5775 = vpop.f32.mrf.mxu0
        %v5776 = vadd.f32 0.0, %v5775
        %5777 = vmatmul.bf16.gmra.mxu0 %v4877
        %v5778 = vpop.f32.mrf.mxu0
        %v5779 = vadd.f32 0.0, %v5778
        %v5780 = vpop.f32.mrf.mxu0
        %v5781 = vadd.f32 0.0, %v5780
        %5782 = vmatmul.bf16.gmra.mxu0 %v4880
        %v5783 = vpop.f32.mrf.mxu0
        %v5784 = vadd.f32 0.0, %v5783
        %v5785 = vpop.f32.mrf.mxu0
        %v5786 = vadd.f32 0.0, %v5785
        %5787 = vmatmul.bf16.gmra.mxu0 %v4883
        %v5788 = vpop.f32.mrf.mxu0
        %v5789 = vadd.f32 0.0, %v5788
        %v5790 = vpop.f32.mrf.mxu0
        %v5791 = vadd.f32 0.0, %v5790
        %5792 = vmatmul.bf16.gmra.mxu0 %v4886
        %v5793 = vpop.f32.mrf.mxu0
        %v5794 = vadd.f32 0.0, %v5793
        %v5795 = vpop.f32.mrf.mxu0
        %v5796 = vadd.f32 0.0, %v5795
        %5797 = vmatmul.bf16.gmra.mxu0 %v5712
        %v5798 = vpop.f32.mrf.mxu0
        %v5799 = vadd.f32 0.0, %v5798
        %v5800 = vpop.f32.mrf.mxu0
        %v5801 = vadd.f32 0.0, %v5800
        %5802 = vdwg.mxu0
        %5835 = vrot.lane.b32.xlu0 %v5724, 16
        %v5836 = vpop.permute.xlu0 %5835
        %5837 = vrot.lane.b32.xlu0 %v5726, 16
        %v5838 = vpop.permute.xlu0 %5837
        %5839 = vrot.lane.b32.xlu0 %v5729, 16
        %v5840 = vpop.permute.xlu0 %5839
        %5841 = vrot.lane.b32.xlu0 %v5731, 16
        %v5842 = vpop.permute.xlu0 %5841
        %5843 = vrot.lane.b32.xlu0 %v5734, 16
        %v5844 = vpop.permute.xlu0 %5843
        %5845 = vrot.lane.b32.xlu0 %v5736, 16
        %v5846 = vpop.permute.xlu0 %5845
        %5847 = vrot.lane.b32.xlu0 %v5739, 16
        %v5848 = vpop.permute.xlu0 %5847
        %5849 = vrot.lane.b32.xlu0 %v5741, 16
        %v5850 = vpop.permute.xlu0 %5849
        %5851 = vrot.lane.b32.xlu0 %v5744, 16
        %v5852 = vpop.permute.xlu0 %5851
        %5853 = vrot.lane.b32.xlu0 %v5746, 16
        %v5854 = vpop.permute.xlu0 %5853
        %5855 = vrot.lane.b32.xlu0 %v5749, 16
        %v5856 = vpop.permute.xlu0 %5855
        %5857 = vrot.lane.b32.xlu0 %v5751, 16
        %v5858 = vpop.permute.xlu0 %5857
        %5859 = vrot.lane.b32.xlu0 %v5754, 16
        %v5860 = vpop.permute.xlu0 %5859
        %5861 = vrot.lane.b32.xlu0 %v5756, 16
        %v5862 = vpop.permute.xlu0 %5861
        %5863 = vrot.lane.b32.xlu0 %v5759, 16
        %v5864 = vpop.permute.xlu0 %5863
        %5865 = vrot.lane.b32.xlu0 %v5761, 16
        %v5866 = vpop.permute.xlu0 %5865
        %5867 = vrot.lane.b32.xlu0 %v5764, 16
        %v5868 = vpop.permute.xlu0 %5867
        %5869 = vrot.lane.b32.xlu0 %v5766, 16
        %v5870 = vpop.permute.xlu0 %5869
        %5871 = vrot.lane.b32.xlu0 %v5769, 16
        %v5872 = vpop.permute.xlu0 %5871
        %5873 = vrot.lane.b32.xlu0 %v5771, 16
        %v5874 = vpop.permute.xlu0 %5873
        %5875 = vrot.lane.b32.xlu0 %v5774, 16
        %v5876 = vpop.permute.xlu0 %5875
        %5877 = vrot.lane.b32.xlu0 %v5776, 16
        %v5878 = vpop.permute.xlu0 %5877
        %5879 = vrot.lane.b32.xlu0 %v5779, 16
        %v5880 = vpop.permute.xlu0 %5879
        %5881 = vrot.lane.b32.xlu0 %v5781, 16
        %v5882 = vpop.permute.xlu0 %5881
        %5883 = vrot.lane.b32.xlu0 %v5784, 16
        %v5884 = vpop.permute.xlu0 %5883
        %5885 = vrot.lane.b32.xlu0 %v5786, 16
        %v5886 = vpop.permute.xlu0 %5885
        %5887 = vrot.lane.b32.xlu0 %v5789, 16
        %v5888 = vpop.permute.xlu0 %5887
        %5889 = vrot.lane.b32.xlu0 %v5791, 16
        %v5890 = vpop.permute.xlu0 %5889
        %5891 = vrot.lane.b32.xlu0 %v5794, 16
        %v5892 = vpop.permute.xlu0 %5891
        %5893 = vrot.lane.b32.xlu0 %v5796, 16
        %v5894 = vpop.permute.xlu0 %5893
        %5895 = vrot.lane.b32.xlu0 %v5799, 16
        %v5896 = vpop.permute.xlu0 %5895
        %5897 = vrot.lane.b32.xlu0 %v5801, 16
        %v5898 = vpop.permute.xlu0 %5897
        %v5931 = vadd.f32 %v5659, %v5836
        %v5932 = vadd.f32 %v5660, %v5838
        %v5933 = vadd.f32 %v5661, %v5840
        %v5934 = vadd.f32 %v5662, %v5842
        %v5935 = vadd.f32 %v5663, %v5844
        %v5936 = vadd.f32 %v5664, %v5846
        %v5937 = vadd.f32 %v5665, %v5848
        %v5938 = vadd.f32 %v5666, %v5850
        %v5939 = vadd.f32 %v5667, %v5852
        %v5940 = vadd.f32 %v5668, %v5854
        %v5941 = vadd.f32 %v5669, %v5856
        %v5942 = vadd.f32 %v5670, %v5858
        %v5943 = vadd.f32 %v5671, %v5860
        %v5944 = vadd.f32 %v5672, %v5862
        %v5945 = vadd.f32 %v5673, %v5864
        %v5946 = vadd.f32 %v5674, %v5866
        %v5947 = vadd.f32 %v5675, %v5868
        %v5948 = vadd.f32 %v5676, %v5870
        %v5949 = vadd.f32 %v5677, %v5872
        %v5950 = vadd.f32 %v5678, %v5874
        %v5951 = vadd.f32 %v5679, %v5876
        %v5952 = vadd.f32 %v5680, %v5878
        %v5953 = vadd.f32 %v5681, %v5880
        %v5954 = vadd.f32 %v5682, %v5882
        %v5955 = vadd.f32 %v5683, %v5884
        %v5956 = vadd.f32 %v5684, %v5886
        %v5957 = vadd.f32 %v5685, %v5888
        %v5958 = vadd.f32 %v5686, %v5890
        %v5959 = vadd.f32 %v5687, %v5892
        %v5960 = vadd.f32 %v5688, %v5894
        %v5961 = vadd.f32 %v5689, %v5896
        %v5962 = vadd.f32 %v5690, %v5898
        %s5963 = scalar_lea.vmem %s3, 48
        %v5964 = vld [vmem:[%s5963] sm:$0xf]
        %v5965 = vld [vmem:[%s5963 + $0x4] sm:$0xf]
        %v5968 = vunpack.c.l.b16 %v3528
        %v5969 = vunpack.c.l.b16 %v3529
        %v5970 = vpack.c.b16 %v5969, %v5968
        %v5973 = vunpack.c.l.b16 %v5964
        %v5974 = vunpack.c.l.b16 %v5965
        %v5975 = vpack.c.b16 %v5974, %v5973
        %v5978 = vsel %vm3619, %v5970, 0
        %5980 = vmatpush.bf16.msra.mxu0 0
        %5981 = vmatpush.bf16.msra.mxu0 0
        %5982 = vmatpush.bf16.msra.mxu0 0
        %5983 = vmatpush.bf16.msra.mxu0 0
        %5984 = vmatpush.bf16.msra.mxu0 0
        %5985 = vmatpush.bf16.msra.mxu0 0
        %5986 = vmatpush.bf16.msra.mxu0 0
        %5987 = vmatpush.bf16.msra.mxu0 %v5975
        %5988 = vmatmul.bf16.gmra.mxu0 %v3627
        %v5989 = vpop.f32.mrf.mxu0
        %v5990 = vadd.f32 0.0, %v5989
        %v5991 = vpop.f32.mrf.mxu0
        %v5992 = vadd.f32 0.0, %v5991
        %5993 = vmatmul.bf16.gmra.mxu0 %v3630
        %v5994 = vpop.f32.mrf.mxu0
        %v5995 = vadd.f32 0.0, %v5994
        %v5996 = vpop.f32.mrf.mxu0
        %v5997 = vadd.f32 0.0, %v5996
        %5998 = vmatmul.bf16.gmra.mxu0 %v3633
        %v5999 = vpop.f32.mrf.mxu0
        %v6000 = vadd.f32 0.0, %v5999
        %v6001 = vpop.f32.mrf.mxu0
        %v6002 = vadd.f32 0.0, %v6001
        %6003 = vmatmul.bf16.gmra.mxu0 %v3636
        %v6004 = vpop.f32.mrf.mxu0
        %v6005 = vadd.f32 0.0, %v6004
        %v6006 = vpop.f32.mrf.mxu0
        %v6007 = vadd.f32 0.0, %v6006
        %6008 = vmatmul.bf16.gmra.mxu0 %v3639
        %v6009 = vpop.f32.mrf.mxu0
        %v6010 = vadd.f32 0.0, %v6009
        %v6011 = vpop.f32.mrf.mxu0
        %v6012 = vadd.f32 0.0, %v6011
        %6013 = vmatmul.bf16.gmra.mxu0 %v3642
        %v6014 = vpop.f32.mrf.mxu0
        %v6015 = vadd.f32 0.0, %v6014
        %v6016 = vpop.f32.mrf.mxu0
        %v6017 = vadd.f32 0.0, %v6016
        %6018 = vmatmul.bf16.gmra.mxu0 %v3645
        %v6019 = vpop.f32.mrf.mxu0
        %v6020 = vadd.f32 0.0, %v6019
        %v6021 = vpop.f32.mrf.mxu0
        %v6022 = vadd.f32 0.0, %v6021
        %6023 = vmatmul.bf16.gmra.mxu0 %v3648
        %v6024 = vpop.f32.mrf.mxu0
        %v6025 = vadd.f32 0.0, %v6024
        %v6026 = vpop.f32.mrf.mxu0
        %v6027 = vadd.f32 0.0, %v6026
        %6028 = vmatmul.bf16.gmra.mxu0 %v3651
        %v6029 = vpop.f32.mrf.mxu0
        %v6030 = vadd.f32 0.0, %v6029
        %v6031 = vpop.f32.mrf.mxu0
        %v6032 = vadd.f32 0.0, %v6031
        %6033 = vmatmul.bf16.gmra.mxu0 %v3654
        %v6034 = vpop.f32.mrf.mxu0
        %v6035 = vadd.f32 0.0, %v6034
        %v6036 = vpop.f32.mrf.mxu0
        %v6037 = vadd.f32 0.0, %v6036
        %6038 = vmatmul.bf16.gmra.mxu0 %v3657
        %v6039 = vpop.f32.mrf.mxu0
        %v6040 = vadd.f32 0.0, %v6039
        %v6041 = vpop.f32.mrf.mxu0
        %v6042 = vadd.f32 0.0, %v6041
        %6043 = vmatmul.bf16.gmra.mxu0 %v3660
        %v6044 = vpop.f32.mrf.mxu0
        %v6045 = vadd.f32 0.0, %v6044
        %v6046 = vpop.f32.mrf.mxu0
        %v6047 = vadd.f32 0.0, %v6046
        %6048 = vmatmul.bf16.gmra.mxu0 %v3663
        %v6049 = vpop.f32.mrf.mxu0
        %v6050 = vadd.f32 0.0, %v6049
        %v6051 = vpop.f32.mrf.mxu0
        %v6052 = vadd.f32 0.0, %v6051
        %6053 = vmatmul.bf16.gmra.mxu0 %v3666
        %v6054 = vpop.f32.mrf.mxu0
        %v6055 = vadd.f32 0.0, %v6054
        %v6056 = vpop.f32.mrf.mxu0
        %v6057 = vadd.f32 0.0, %v6056
        %6058 = vmatmul.bf16.gmra.mxu0 %v5152
        %v6059 = vpop.f32.mrf.mxu0
        %v6060 = vadd.f32 0.0, %v6059
        %v6061 = vpop.f32.mrf.mxu0
        %v6062 = vadd.f32 0.0, %v6061
        %6063 = vmatmul.bf16.gmra.mxu0 %v5978
        %v6064 = vpop.f32.mrf.mxu0
        %v6065 = vadd.f32 0.0, %v6064
        %v6066 = vpop.f32.mrf.mxu0
        %v6067 = vadd.f32 0.0, %v6066
        %6068 = vdwg.mxu0
        %6101 = vrot.lane.b32.xlu0 %v5990, 16
        %v6102 = vpop.permute.xlu0 %6101
        %6103 = vrot.lane.b32.xlu0 %v5992, 16
        %v6104 = vpop.permute.xlu0 %6103
        %6105 = vrot.lane.b32.xlu0 %v5995, 16
        %v6106 = vpop.permute.xlu0 %6105
        %6107 = vrot.lane.b32.xlu0 %v5997, 16
        %v6108 = vpop.permute.xlu0 %6107
        %6109 = vrot.lane.b32.xlu0 %v6000, 16
        %v6110 = vpop.permute.xlu0 %6109
        %6111 = vrot.lane.b32.xlu0 %v6002, 16
        %v6112 = vpop.permute.xlu0 %6111
        %6113 = vrot.lane.b32.xlu0 %v6005, 16
        %v6114 = vpop.permute.xlu0 %6113
        %6115 = vrot.lane.b32.xlu0 %v6007, 16
        %v6116 = vpop.permute.xlu0 %6115
        %6117 = vrot.lane.b32.xlu0 %v6010, 16
        %v6118 = vpop.permute.xlu0 %6117
        %6119 = vrot.lane.b32.xlu0 %v6012, 16
        %v6120 = vpop.permute.xlu0 %6119
        %6121 = vrot.lane.b32.xlu0 %v6015, 16
        %v6122 = vpop.permute.xlu0 %6121
        %6123 = vrot.lane.b32.xlu0 %v6017, 16
        %v6124 = vpop.permute.xlu0 %6123
        %6125 = vrot.lane.b32.xlu0 %v6020, 16
        %v6126 = vpop.permute.xlu0 %6125
        %6127 = vrot.lane.b32.xlu0 %v6022, 16
        %v6128 = vpop.permute.xlu0 %6127
        %6129 = vrot.lane.b32.xlu0 %v6025, 16
        %v6130 = vpop.permute.xlu0 %6129
        %6131 = vrot.lane.b32.xlu0 %v6027, 16
        %v6132 = vpop.permute.xlu0 %6131
        %6133 = vrot.lane.b32.xlu0 %v6030, 16
        %v6134 = vpop.permute.xlu0 %6133
        %6135 = vrot.lane.b32.xlu0 %v6032, 16
        %v6136 = vpop.permute.xlu0 %6135
        %6137 = vrot.lane.b32.xlu0 %v6035, 16
        %v6138 = vpop.permute.xlu0 %6137
        %6139 = vrot.lane.b32.xlu0 %v6037, 16
        %v6140 = vpop.permute.xlu0 %6139
        %6141 = vrot.lane.b32.xlu0 %v6040, 16
        %v6142 = vpop.permute.xlu0 %6141
        %6143 = vrot.lane.b32.xlu0 %v6042, 16
        %v6144 = vpop.permute.xlu0 %6143
        %6145 = vrot.lane.b32.xlu0 %v6045, 16
        %v6146 = vpop.permute.xlu0 %6145
        %6147 = vrot.lane.b32.xlu0 %v6047, 16
        %v6148 = vpop.permute.xlu0 %6147
        %6149 = vrot.lane.b32.xlu0 %v6050, 16
        %v6150 = vpop.permute.xlu0 %6149
        %6151 = vrot.lane.b32.xlu0 %v6052, 16
        %v6152 = vpop.permute.xlu0 %6151
        %6153 = vrot.lane.b32.xlu0 %v6055, 16
        %v6154 = vpop.permute.xlu0 %6153
        %6155 = vrot.lane.b32.xlu0 %v6057, 16
        %v6156 = vpop.permute.xlu0 %6155
        %6157 = vrot.lane.b32.xlu0 %v6060, 16
        %v6158 = vpop.permute.xlu0 %6157
        %6159 = vrot.lane.b32.xlu0 %v6062, 16
        %v6160 = vpop.permute.xlu0 %6159
        %6161 = vrot.lane.b32.xlu0 %v6065, 16
        %v6162 = vpop.permute.xlu0 %6161
        %6163 = vrot.lane.b32.xlu0 %v6067, 16
        %v6164 = vpop.permute.xlu0 %6163
        %v6197 = vadd.f32 %v5931, %v6102
        %v6198 = vadd.f32 %v5932, %v6104
        %v6199 = vadd.f32 %v5933, %v6106
        %v6200 = vadd.f32 %v5934, %v6108
        %v6201 = vadd.f32 %v5935, %v6110
        %v6202 = vadd.f32 %v5936, %v6112
        %v6203 = vadd.f32 %v5937, %v6114
        %v6204 = vadd.f32 %v5938, %v6116
        %v6205 = vadd.f32 %v5939, %v6118
        %v6206 = vadd.f32 %v5940, %v6120
        %v6207 = vadd.f32 %v5941, %v6122
        %v6208 = vadd.f32 %v5942, %v6124
        %v6209 = vadd.f32 %v5943, %v6126
        %v6210 = vadd.f32 %v5944, %v6128
        %v6211 = vadd.f32 %v5945, %v6130
        %v6212 = vadd.f32 %v5946, %v6132
        %v6213 = vadd.f32 %v5947, %v6134
        %v6214 = vadd.f32 %v5948, %v6136
        %v6215 = vadd.f32 %v5949, %v6138
        %v6216 = vadd.f32 %v5950, %v6140
        %v6217 = vadd.f32 %v5951, %v6142
        %v6218 = vadd.f32 %v5952, %v6144
        %v6219 = vadd.f32 %v5953, %v6146
        %v6220 = vadd.f32 %v5954, %v6148
        %v6221 = vadd.f32 %v5955, %v6150
        %v6222 = vadd.f32 %v5956, %v6152
        %v6223 = vadd.f32 %v5957, %v6154
        %v6224 = vadd.f32 %v5958, %v6156
        %v6225 = vadd.f32 %v5959, %v6158
        %v6226 = vadd.f32 %v5960, %v6160
        %v6227 = vadd.f32 %v5961, %v6162
        %v6228 = vadd.f32 %v5962, %v6164
        %v6230 = vshrl.u32 %v3528, 16
        %v6232 = vrot.slane %v6230, 4
        %v6233 = vshll.u32 %v3528, 16
        %v6235 = vrot.slane %v6233, 5
        %v6236 = vor.u32 %v6232, %v6235
        %v6237 = vrot.slane %v6236, 4
        %v6239 = vshll.u32 %v3529, 16
        %v6241 = vrot.slane %v6239, 5
        %v6242 = vsel %vm810, %v6237, %v6241
        %v6243 = vshrl.u32 %v3529, 16
        %v6245 = vrot.slane %v6243, 4
        %v6246 = vor.u32 %v6245, %v6241
        %v6247 = vrot.slane %v6246, 4
        %v6249 = vshll.u32 %v3530, 16
        %v6251 = vrot.slane %v6249, 5
        %v6252 = vsel %vm810, %v6247, %v6251
        %s6253 = scalar_lea.vmem %s3, 56
        %v6254 = vld [vmem:[%s6253] sm:$0xf]
        %v6255 = vld [vmem:[%s6253 + $0x4] sm:$0xf]
        %v6256 = vunpack.c.l.b16 %v6242
        %v6257 = vunpack.c.l.b16 %v6252
        %v6258 = vpack.c.b16 %v6257, %v6256
        %v6261 = vunpack.c.l.b16 %v6254
        %v6262 = vunpack.c.l.b16 %v6255
        %v6263 = vpack.c.b16 %v6262, %v6261
        %v6266 = vsel %vm3619, %v6258, 0
        %6268 = vmatpush.bf16.msra.mxu0 0
        %6269 = vmatpush.bf16.msra.mxu0 0
        %6270 = vmatpush.bf16.msra.mxu0 0
        %6271 = vmatpush.bf16.msra.mxu0 0
        %6272 = vmatpush.bf16.msra.mxu0 0
        %6273 = vmatpush.bf16.msra.mxu0 0
        %6274 = vmatpush.bf16.msra.mxu0 0
        %6275 = vmatpush.bf16.msra.mxu0 %v6263
        %6276 = vmatmul.bf16.gmra.mxu0 %v4365
        %v6277 = vpop.f32.mrf.mxu0
        %v6278 = vadd.f32 0.0, %v6277
        %v6279 = vpop.f32.mrf.mxu0
        %v6280 = vadd.f32 0.0, %v6279
        %6281 = vmatmul.bf16.gmra.mxu0 %v4368
        %v6282 = vpop.f32.mrf.mxu0
        %v6283 = vadd.f32 0.0, %v6282
        %v6284 = vpop.f32.mrf.mxu0
        %v6285 = vadd.f32 0.0, %v6284
        %6286 = vmatmul.bf16.gmra.mxu0 %v4371
        %v6287 = vpop.f32.mrf.mxu0
        %v6288 = vadd.f32 0.0, %v6287
        %v6289 = vpop.f32.mrf.mxu0
        %v6290 = vadd.f32 0.0, %v6289
        %6291 = vmatmul.bf16.gmra.mxu0 %v4374
        %v6292 = vpop.f32.mrf.mxu0
        %v6293 = vadd.f32 0.0, %v6292
        %v6294 = vpop.f32.mrf.mxu0
        %v6295 = vadd.f32 0.0, %v6294
        %6296 = vmatmul.bf16.gmra.mxu0 %v4377
        %v6297 = vpop.f32.mrf.mxu0
        %v6298 = vadd.f32 0.0, %v6297
        %v6299 = vpop.f32.mrf.mxu0
        %v6300 = vadd.f32 0.0, %v6299
        %6301 = vmatmul.bf16.gmra.mxu0 %v4380
        %v6302 = vpop.f32.mrf.mxu0
        %v6303 = vadd.f32 0.0, %v6302
        %v6304 = vpop.f32.mrf.mxu0
        %v6305 = vadd.f32 0.0, %v6304
        %6306 = vmatmul.bf16.gmra.mxu0 %v4383
        %v6307 = vpop.f32.mrf.mxu0
        %v6308 = vadd.f32 0.0, %v6307
        %v6309 = vpop.f32.mrf.mxu0
        %v6310 = vadd.f32 0.0, %v6309
        %6311 = vmatmul.bf16.gmra.mxu0 %v4386
        %v6312 = vpop.f32.mrf.mxu0
        %v6313 = vadd.f32 0.0, %v6312
        %v6314 = vpop.f32.mrf.mxu0
        %v6315 = vadd.f32 0.0, %v6314
        %6316 = vmatmul.bf16.gmra.mxu0 %v4389
        %v6317 = vpop.f32.mrf.mxu0
        %v6318 = vadd.f32 0.0, %v6317
        %v6319 = vpop.f32.mrf.mxu0
        %v6320 = vadd.f32 0.0, %v6319
        %6321 = vmatmul.bf16.gmra.mxu0 %v4392
        %v6322 = vpop.f32.mrf.mxu0
        %v6323 = vadd.f32 0.0, %v6322
        %v6324 = vpop.f32.mrf.mxu0
        %v6325 = vadd.f32 0.0, %v6324
        %6326 = vmatmul.bf16.gmra.mxu0 %v4395
        %v6327 = vpop.f32.mrf.mxu0
        %v6328 = vadd.f32 0.0, %v6327
        %v6329 = vpop.f32.mrf.mxu0
        %v6330 = vadd.f32 0.0, %v6329
        %6331 = vmatmul.bf16.gmra.mxu0 %v4398
        %v6332 = vpop.f32.mrf.mxu0
        %v6333 = vadd.f32 0.0, %v6332
        %v6334 = vpop.f32.mrf.mxu0
        %v6335 = vadd.f32 0.0, %v6334
        %6336 = vmatmul.bf16.gmra.mxu0 %v4401
        %v6337 = vpop.f32.mrf.mxu0
        %v6338 = vadd.f32 0.0, %v6337
        %v6339 = vpop.f32.mrf.mxu0
        %v6340 = vadd.f32 0.0, %v6339
        %6341 = vmatmul.bf16.gmra.mxu0 %v4404
        %v6342 = vpop.f32.mrf.mxu0
        %v6343 = vadd.f32 0.0, %v6342
        %v6344 = vpop.f32.mrf.mxu0
        %v6345 = vadd.f32 0.0, %v6344
        %6346 = vmatmul.bf16.gmra.mxu0 %v5440
        %v6347 = vpop.f32.mrf.mxu0
        %v6348 = vadd.f32 0.0, %v6347
        %v6349 = vpop.f32.mrf.mxu0
        %v6350 = vadd.f32 0.0, %v6349
        %6351 = vmatmul.bf16.gmra.mxu0 %v6266
        %v6352 = vpop.f32.mrf.mxu0
        %v6353 = vadd.f32 0.0, %v6352
        %v6354 = vpop.f32.mrf.mxu0
        %v6355 = vadd.f32 0.0, %v6354
        %6356 = vdwg.mxu0
        %6389 = vrot.lane.b32.xlu0 %v6278, 16
        %v6390 = vpop.permute.xlu0 %6389
        %6391 = vrot.lane.b32.xlu0 %v6280, 16
        %v6392 = vpop.permute.xlu0 %6391
        %6393 = vrot.lane.b32.xlu0 %v6283, 16
        %v6394 = vpop.permute.xlu0 %6393
        %6395 = vrot.lane.b32.xlu0 %v6285, 16
        %v6396 = vpop.permute.xlu0 %6395
        %6397 = vrot.lane.b32.xlu0 %v6288, 16
        %v6398 = vpop.permute.xlu0 %6397
        %6399 = vrot.lane.b32.xlu0 %v6290, 16
        %v6400 = vpop.permute.xlu0 %6399
        %6401 = vrot.lane.b32.xlu0 %v6293, 16
        %v6402 = vpop.permute.xlu0 %6401
        %6403 = vrot.lane.b32.xlu0 %v6295, 16
        %v6404 = vpop.permute.xlu0 %6403
        %6405 = vrot.lane.b32.xlu0 %v6298, 16
        %v6406 = vpop.permute.xlu0 %6405
        %6407 = vrot.lane.b32.xlu0 %v6300, 16
        %v6408 = vpop.permute.xlu0 %6407
        %6409 = vrot.lane.b32.xlu0 %v6303, 16
        %v6410 = vpop.permute.xlu0 %6409
        %6411 = vrot.lane.b32.xlu0 %v6305, 16
        %v6412 = vpop.permute.xlu0 %6411
        %6413 = vrot.lane.b32.xlu0 %v6308, 16
        %v6414 = vpop.permute.xlu0 %6413
        %6415 = vrot.lane.b32.xlu0 %v6310, 16
        %v6416 = vpop.permute.xlu0 %6415
        %6417 = vrot.lane.b32.xlu0 %v6313, 16
        %v6418 = vpop.permute.xlu0 %6417
        %6419 = vrot.lane.b32.xlu0 %v6315, 16
        %v6420 = vpop.permute.xlu0 %6419
        %6421 = vrot.lane.b32.xlu0 %v6318, 16
        %v6422 = vpop.permute.xlu0 %6421
        %6423 = vrot.lane.b32.xlu0 %v6320, 16
        %v6424 = vpop.permute.xlu0 %6423
        %6425 = vrot.lane.b32.xlu0 %v6323, 16
        %v6426 = vpop.permute.xlu0 %6425
        %6427 = vrot.lane.b32.xlu0 %v6325, 16
        %v6428 = vpop.permute.xlu0 %6427
        %6429 = vrot.lane.b32.xlu0 %v6328, 16
        %v6430 = vpop.permute.xlu0 %6429
        %6431 = vrot.lane.b32.xlu0 %v6330, 16
        %v6432 = vpop.permute.xlu0 %6431
        %6433 = vrot.lane.b32.xlu0 %v6333, 16
        %v6434 = vpop.permute.xlu0 %6433
        %6435 = vrot.lane.b32.xlu0 %v6335, 16
        %v6436 = vpop.permute.xlu0 %6435
        %6437 = vrot.lane.b32.xlu0 %v6338, 16
        %v6438 = vpop.permute.xlu0 %6437
        %6439 = vrot.lane.b32.xlu0 %v6340, 16
        %v6440 = vpop.permute.xlu0 %6439
        %6441 = vrot.lane.b32.xlu0 %v6343, 16
        %v6442 = vpop.permute.xlu0 %6441
        %6443 = vrot.lane.b32.xlu0 %v6345, 16
        %v6444 = vpop.permute.xlu0 %6443
        %6445 = vrot.lane.b32.xlu0 %v6348, 16
        %v6446 = vpop.permute.xlu0 %6445
        %6447 = vrot.lane.b32.xlu0 %v6350, 16
        %v6448 = vpop.permute.xlu0 %6447
        %6449 = vrot.lane.b32.xlu0 %v6353, 16
        %v6450 = vpop.permute.xlu0 %6449
        %6451 = vrot.lane.b32.xlu0 %v6355, 16
        %v6452 = vpop.permute.xlu0 %6451
        %v6485 = vadd.f32 %v6197, %v6390
        %v6486 = vadd.f32 %v6198, %v6392
        %v6487 = vadd.f32 %v6199, %v6394
        %v6488 = vadd.f32 %v6200, %v6396
        %v6489 = vadd.f32 %v6201, %v6398
        %v6490 = vadd.f32 %v6202, %v6400
        %v6491 = vadd.f32 %v6203, %v6402
        %v6492 = vadd.f32 %v6204, %v6404
        %v6493 = vadd.f32 %v6205, %v6406
        %v6494 = vadd.f32 %v6206, %v6408
        %v6495 = vadd.f32 %v6207, %v6410
        %v6496 = vadd.f32 %v6208, %v6412
        %v6497 = vadd.f32 %v6209, %v6414
        %v6498 = vadd.f32 %v6210, %v6416
        %v6499 = vadd.f32 %v6211, %v6418
        %v6500 = vadd.f32 %v6212, %v6420
        %v6501 = vadd.f32 %v6213, %v6422
        %v6502 = vadd.f32 %v6214, %v6424
        %v6503 = vadd.f32 %v6215, %v6426
        %v6504 = vadd.f32 %v6216, %v6428
        %v6505 = vadd.f32 %v6217, %v6430
        %v6506 = vadd.f32 %v6218, %v6432
        %v6507 = vadd.f32 %v6219, %v6434
        %v6508 = vadd.f32 %v6220, %v6436
        %v6509 = vadd.f32 %v6221, %v6438
        %v6510 = vadd.f32 %v6222, %v6440
        %v6511 = vadd.f32 %v6223, %v6442
        %v6512 = vadd.f32 %v6224, %v6444
        %v6513 = vadd.f32 %v6225, %v6446
        %v6514 = vadd.f32 %v6226, %v6448
        %v6515 = vadd.f32 %v6227, %v6450
        %v6516 = vadd.f32 %v6228, %v6452
        %v6518 = vrot.slane %v3528, 5
        %v6519 = vrot.slane %v6518, 4
        %v6520 = vrot.slane %v3529, 5
        %v6521 = vsel %vm1625, %v6519, %v6520
        %v6522 = vrot.slane %v6520, 4
        %v6523 = vrot.slane %v3530, 5
        %v6524 = vsel %vm1625, %v6522, %v6523
        %s6525 = scalar_lea.vmem %s3, 64
        %v6526 = vld [vmem:[%s6525] sm:$0xf]
        %v6527 = vld [vmem:[%s6525 + $0x4] sm:$0xf]
        %v6528 = vunpack.c.l.b16 %v6521
        %v6529 = vunpack.c.l.b16 %v6524
        %v6530 = vpack.c.b16 %v6529, %v6528
        %v6533 = vunpack.c.l.b16 %v6526
        %v6534 = vunpack.c.l.b16 %v6527
        %v6535 = vpack.c.b16 %v6534, %v6533
        %v6538 = vsel %vm3619, %v6530, 0
        %6540 = vmatpush.bf16.msra.mxu0 0
        %6541 = vmatpush.bf16.msra.mxu0 0
        %6542 = vmatpush.bf16.msra.mxu0 0
        %6543 = vmatpush.bf16.msra.mxu0 0
        %6544 = vmatpush.bf16.msra.mxu0 0
        %6545 = vmatpush.bf16.msra.mxu0 0
        %6546 = vmatpush.bf16.msra.mxu0 0
        %6547 = vmatpush.bf16.msra.mxu0 %v6535
        %6548 = vmatmul.bf16.gmra.mxu0 %v4847
        %v6549 = vpop.f32.mrf.mxu0
        %v6550 = vadd.f32 0.0, %v6549
        %v6551 = vpop.f32.mrf.mxu0
        %v6552 = vadd.f32 0.0, %v6551
        %6553 = vmatmul.bf16.gmra.mxu0 %v4850
        %v6554 = vpop.f32.mrf.mxu0
        %v6555 = vadd.f32 0.0, %v6554
        %v6556 = vpop.f32.mrf.mxu0
        %v6557 = vadd.f32 0.0, %v6556
        %6558 = vmatmul.bf16.gmra.mxu0 %v4853
        %v6559 = vpop.f32.mrf.mxu0
        %v6560 = vadd.f32 0.0, %v6559
        %v6561 = vpop.f32.mrf.mxu0
        %v6562 = vadd.f32 0.0, %v6561
        %6563 = vmatmul.bf16.gmra.mxu0 %v4856
        %v6564 = vpop.f32.mrf.mxu0
        %v6565 = vadd.f32 0.0, %v6564
        %v6566 = vpop.f32.mrf.mxu0
        %v6567 = vadd.f32 0.0, %v6566
        %6568 = vmatmul.bf16.gmra.mxu0 %v4859
        %v6569 = vpop.f32.mrf.mxu0
        %v6570 = vadd.f32 0.0, %v6569
        %v6571 = vpop.f32.mrf.mxu0
        %v6572 = vadd.f32 0.0, %v6571
        %6573 = vmatmul.bf16.gmra.mxu0 %v4862
        %v6574 = vpop.f32.mrf.mxu0
        %v6575 = vadd.f32 0.0, %v6574
        %v6576 = vpop.f32.mrf.mxu0
        %v6577 = vadd.f32 0.0, %v6576
        %6578 = vmatmul.bf16.gmra.mxu0 %v4865
        %v6579 = vpop.f32.mrf.mxu0
        %v6580 = vadd.f32 0.0, %v6579
        %v6581 = vpop.f32.mrf.mxu0
        %v6582 = vadd.f32 0.0, %v6581
        %6583 = vmatmul.bf16.gmra.mxu0 %v4868
        %v6584 = vpop.f32.mrf.mxu0
        %v6585 = vadd.f32 0.0, %v6584
        %v6586 = vpop.f32.mrf.mxu0
        %v6587 = vadd.f32 0.0, %v6586
        %6588 = vmatmul.bf16.gmra.mxu0 %v4871
        %v6589 = vpop.f32.mrf.mxu0
        %v6590 = vadd.f32 0.0, %v6589
        %v6591 = vpop.f32.mrf.mxu0
        %v6592 = vadd.f32 0.0, %v6591
        %6593 = vmatmul.bf16.gmra.mxu0 %v4874
        %v6594 = vpop.f32.mrf.mxu0
        %v6595 = vadd.f32 0.0, %v6594
        %v6596 = vpop.f32.mrf.mxu0
        %v6597 = vadd.f32 0.0, %v6596
        %6598 = vmatmul.bf16.gmra.mxu0 %v4877
        %v6599 = vpop.f32.mrf.mxu0
        %v6600 = vadd.f32 0.0, %v6599
        %v6601 = vpop.f32.mrf.mxu0
        %v6602 = vadd.f32 0.0, %v6601
        %6603 = vmatmul.bf16.gmra.mxu0 %v4880
        %v6604 = vpop.f32.mrf.mxu0
        %v6605 = vadd.f32 0.0, %v6604
        %v6606 = vpop.f32.mrf.mxu0
        %v6607 = vadd.f32 0.0, %v6606
        %6608 = vmatmul.bf16.gmra.mxu0 %v4883
        %v6609 = vpop.f32.mrf.mxu0
        %v6610 = vadd.f32 0.0, %v6609
        %v6611 = vpop.f32.mrf.mxu0
        %v6612 = vadd.f32 0.0, %v6611
        %6613 = vmatmul.bf16.gmra.mxu0 %v4886
        %v6614 = vpop.f32.mrf.mxu0
        %v6615 = vadd.f32 0.0, %v6614
        %v6616 = vpop.f32.mrf.mxu0
        %v6617 = vadd.f32 0.0, %v6616
        %6618 = vmatmul.bf16.gmra.mxu0 %v5712
        %v6619 = vpop.f32.mrf.mxu0
        %v6620 = vadd.f32 0.0, %v6619
        %v6621 = vpop.f32.mrf.mxu0
        %v6622 = vadd.f32 0.0, %v6621
        %6623 = vmatmul.bf16.gmra.mxu0 %v6538
        %v6624 = vpop.f32.mrf.mxu0
        %v6625 = vadd.f32 0.0, %v6624
        %v6626 = vpop.f32.mrf.mxu0
        %v6627 = vadd.f32 0.0, %v6626
        %6628 = vdwg.mxu0
        %6661 = vrot.lane.b32.xlu0 %v6550, 16
        %v6662 = vpop.permute.xlu0 %6661
        %6663 = vrot.lane.b32.xlu0 %v6552, 16
        %v6664 = vpop.permute.xlu0 %6663
        %6665 = vrot.lane.b32.xlu0 %v6555, 16
        %v6666 = vpop.permute.xlu0 %6665
        %6667 = vrot.lane.b32.xlu0 %v6557, 16
        %v6668 = vpop.permute.xlu0 %6667
        %6669 = vrot.lane.b32.xlu0 %v6560, 16
        %v6670 = vpop.permute.xlu0 %6669
        %6671 = vrot.lane.b32.xlu0 %v6562, 16
        %v6672 = vpop.permute.xlu0 %6671
        %6673 = vrot.lane.b32.xlu0 %v6565, 16
        %v6674 = vpop.permute.xlu0 %6673
        %6675 = vrot.lane.b32.xlu0 %v6567, 16
        %v6676 = vpop.permute.xlu0 %6675
        %6677 = vrot.lane.b32.xlu0 %v6570, 16
        %v6678 = vpop.permute.xlu0 %6677
        %6679 = vrot.lane.b32.xlu0 %v6572, 16
        %v6680 = vpop.permute.xlu0 %6679
        %6681 = vrot.lane.b32.xlu0 %v6575, 16
        %v6682 = vpop.permute.xlu0 %6681
        %6683 = vrot.lane.b32.xlu0 %v6577, 16
        %v6684 = vpop.permute.xlu0 %6683
        %6685 = vrot.lane.b32.xlu0 %v6580, 16
        %v6686 = vpop.permute.xlu0 %6685
        %6687 = vrot.lane.b32.xlu0 %v6582, 16
        %v6688 = vpop.permute.xlu0 %6687
        %6689 = vrot.lane.b32.xlu0 %v6585, 16
        %v6690 = vpop.permute.xlu0 %6689
        %6691 = vrot.lane.b32.xlu0 %v6587, 16
        %v6692 = vpop.permute.xlu0 %6691
        %6693 = vrot.lane.b32.xlu0 %v6590, 16
        %v6694 = vpop.permute.xlu0 %6693
        %6695 = vrot.lane.b32.xlu0 %v6592, 16
        %v6696 = vpop.permute.xlu0 %6695
        %6697 = vrot.lane.b32.xlu0 %v6595, 16
        %v6698 = vpop.permute.xlu0 %6697
        %6699 = vrot.lane.b32.xlu0 %v6597, 16
        %v6700 = vpop.permute.xlu0 %6699
        %6701 = vrot.lane.b32.xlu0 %v6600, 16
        %v6702 = vpop.permute.xlu0 %6701
        %6703 = vrot.lane.b32.xlu0 %v6602, 16
        %v6704 = vpop.permute.xlu0 %6703
        %6705 = vrot.lane.b32.xlu0 %v6605, 16
        %v6706 = vpop.permute.xlu0 %6705
        %6707 = vrot.lane.b32.xlu0 %v6607, 16
        %v6708 = vpop.permute.xlu0 %6707
        %6709 = vrot.lane.b32.xlu0 %v6610, 16
        %v6710 = vpop.permute.xlu0 %6709
        %6711 = vrot.lane.b32.xlu0 %v6612, 16
        %v6712 = vpop.permute.xlu0 %6711
        %6713 = vrot.lane.b32.xlu0 %v6615, 16
        %v6714 = vpop.permute.xlu0 %6713
        %6715 = vrot.lane.b32.xlu0 %v6617, 16
        %v6716 = vpop.permute.xlu0 %6715
        %6717 = vrot.lane.b32.xlu0 %v6620, 16
        %v6718 = vpop.permute.xlu0 %6717
        %6719 = vrot.lane.b32.xlu0 %v6622, 16
        %v6720 = vpop.permute.xlu0 %6719
        %6721 = vrot.lane.b32.xlu0 %v6625, 16
        %v6722 = vpop.permute.xlu0 %6721
        %6723 = vrot.lane.b32.xlu0 %v6627, 16
        %v6724 = vpop.permute.xlu0 %6723
        %v6757 = vadd.f32 %v6485, %v6662
        %v6758 = vadd.f32 %v6486, %v6664
        %v6759 = vadd.f32 %v6487, %v6666
        %v6760 = vadd.f32 %v6488, %v6668
        %v6761 = vadd.f32 %v6489, %v6670
        %v6762 = vadd.f32 %v6490, %v6672
        %v6763 = vadd.f32 %v6491, %v6674
        %v6764 = vadd.f32 %v6492, %v6676
        %v6765 = vadd.f32 %v6493, %v6678
        %v6766 = vadd.f32 %v6494, %v6680
        %v6767 = vadd.f32 %v6495, %v6682
        %v6768 = vadd.f32 %v6496, %v6684
        %v6769 = vadd.f32 %v6497, %v6686
        %v6770 = vadd.f32 %v6498, %v6688
        %v6771 = vadd.f32 %v6499, %v6690
        %v6772 = vadd.f32 %v6500, %v6692
        %v6773 = vadd.f32 %v6501, %v6694
        %v6774 = vadd.f32 %v6502, %v6696
        %v6775 = vadd.f32 %v6503, %v6698
        %v6776 = vadd.f32 %v6504, %v6700
        %v6777 = vadd.f32 %v6505, %v6702
        %v6778 = vadd.f32 %v6506, %v6704
        %v6779 = vadd.f32 %v6507, %v6706
        %v6780 = vadd.f32 %v6508, %v6708
        %v6781 = vadd.f32 %v6509, %v6710
        %v6782 = vadd.f32 %v6510, %v6712
        %v6783 = vadd.f32 %v6511, %v6714
        %v6784 = vadd.f32 %v6512, %v6716
        %v6785 = vadd.f32 %v6513, %v6718
        %v6786 = vadd.f32 %v6514, %v6720
        %v6787 = vadd.f32 %v6515, %v6722
        %v6788 = vadd.f32 %v6516, %v6724
        %v6789 = vld [vmem:[%s4] sm:$0x1]
        %v6791 = vperm.slane %v6789, 0
        %6792 = vrot.lane.b32.xlu0 %v6791, 16
        %v6793 = vpop.permute.xlu0 %6792
        %v6795 = vadd.f32 %v6757, %v6793
        %v6796 = vadd.f32 %v6758, %v6793
        %v6797 = vadd.f32 %v6759, %v6793
        %v6798 = vadd.f32 %v6760, %v6793
        %v6799 = vadd.f32 %v6761, %v6793
        %v6800 = vadd.f32 %v6762, %v6793
        %v6801 = vadd.f32 %v6763, %v6793
        %v6802 = vadd.f32 %v6764, %v6793
        %v6803 = vadd.f32 %v6765, %v6793
        %v6804 = vadd.f32 %v6766, %v6793
        %v6805 = vadd.f32 %v6767, %v6793
        %v6806 = vadd.f32 %v6768, %v6793
        %v6807 = vadd.f32 %v6769, %v6793
        %v6808 = vadd.f32 %v6770, %v6793
        %v6809 = vadd.f32 %v6771, %v6793
        %v6810 = vadd.f32 %v6772, %v6793
        %v6811 = vadd.f32 %v6773, %v6793
        %v6812 = vadd.f32 %v6774, %v6793
        %v6813 = vadd.f32 %v6775, %v6793
        %v6814 = vadd.f32 %v6776, %v6793
        %v6815 = vadd.f32 %v6777, %v6793
        %v6816 = vadd.f32 %v6778, %v6793
        %v6817 = vadd.f32 %v6779, %v6793
        %v6818 = vadd.f32 %v6780, %v6793
        %v6819 = vadd.f32 %v6781, %v6793
        %v6820 = vadd.f32 %v6782, %v6793
        %v6821 = vadd.f32 %v6783, %v6793
        %v6822 = vadd.f32 %v6784, %v6793
        %v6823 = vadd.f32 %v6785, %v6793
        %v6824 = vadd.f32 %v6786, %v6793
        %v6825 = vadd.f32 %v6787, %v6793
        %v6826 = vadd.f32 %v6788, %v6793
        %6859 = vrot.lane.b32.xlu0 %v6795, 112
        %v6860 = vpop.permute.xlu0 %6859
        %6861 = vrot.lane.b32.xlu0 %v6796, 112
        %v6862 = vpop.permute.xlu0 %6861
        %6863 = vrot.lane.b32.xlu0 %v6797, 112
        %v6864 = vpop.permute.xlu0 %6863
        %6865 = vrot.lane.b32.xlu0 %v6798, 112
        %v6866 = vpop.permute.xlu0 %6865
        %6867 = vrot.lane.b32.xlu0 %v6799, 112
        %v6868 = vpop.permute.xlu0 %6867
        %6869 = vrot.lane.b32.xlu0 %v6800, 112
        %v6870 = vpop.permute.xlu0 %6869
        %6871 = vrot.lane.b32.xlu0 %v6801, 112
        %v6872 = vpop.permute.xlu0 %6871
        %6873 = vrot.lane.b32.xlu0 %v6802, 112
        %v6874 = vpop.permute.xlu0 %6873
        %6875 = vrot.lane.b32.xlu0 %v6803, 112
        %v6876 = vpop.permute.xlu0 %6875
        %6877 = vrot.lane.b32.xlu0 %v6804, 112
        %v6878 = vpop.permute.xlu0 %6877
        %6879 = vrot.lane.b32.xlu0 %v6805, 112
        %v6880 = vpop.permute.xlu0 %6879
        %6881 = vrot.lane.b32.xlu0 %v6806, 112
        %v6882 = vpop.permute.xlu0 %6881
        %6883 = vrot.lane.b32.xlu0 %v6807, 112
        %v6884 = vpop.permute.xlu0 %6883
        %6885 = vrot.lane.b32.xlu0 %v6808, 112
        %v6886 = vpop.permute.xlu0 %6885
        %6887 = vrot.lane.b32.xlu0 %v6809, 112
        %v6888 = vpop.permute.xlu0 %6887
        %6889 = vrot.lane.b32.xlu0 %v6810, 112
        %v6890 = vpop.permute.xlu0 %6889
        %6891 = vrot.lane.b32.xlu0 %v6811, 112
        %v6892 = vpop.permute.xlu0 %6891
        %6893 = vrot.lane.b32.xlu0 %v6812, 112
        %v6894 = vpop.permute.xlu0 %6893
        %6895 = vrot.lane.b32.xlu0 %v6813, 112
        %v6896 = vpop.permute.xlu0 %6895
        %6897 = vrot.lane.b32.xlu0 %v6814, 112
        %v6898 = vpop.permute.xlu0 %6897
        %6899 = vrot.lane.b32.xlu0 %v6815, 112
        %v6900 = vpop.permute.xlu0 %6899
        %6901 = vrot.lane.b32.xlu0 %v6816, 112
        %v6902 = vpop.permute.xlu0 %6901
        %6903 = vrot.lane.b32.xlu0 %v6817, 112
        %v6904 = vpop.permute.xlu0 %6903
        %6905 = vrot.lane.b32.xlu0 %v6818, 112
        %v6906 = vpop.permute.xlu0 %6905
        %6907 = vrot.lane.b32.xlu0 %v6819, 112
        %v6908 = vpop.permute.xlu0 %6907
        %6909 = vrot.lane.b32.xlu0 %v6820, 112
        %v6910 = vpop.permute.xlu0 %6909
        %6911 = vrot.lane.b32.xlu0 %v6821, 112
        %v6912 = vpop.permute.xlu0 %6911
        %6913 = vrot.lane.b32.xlu0 %v6822, 112
        %v6914 = vpop.permute.xlu0 %6913
        %6915 = vrot.lane.b32.xlu0 %v6823, 112
        %v6916 = vpop.permute.xlu0 %6915
        %6917 = vrot.lane.b32.xlu0 %v6824, 112
        %v6918 = vpop.permute.xlu0 %6917
        %6919 = vrot.lane.b32.xlu0 %v6825, 112
        %v6920 = vpop.permute.xlu0 %6919
        %6921 = vrot.lane.b32.xlu0 %v6826, 112
        %v6922 = vpop.permute.xlu0 %6921
        %vm6955 = vcmask 261120
        %6956 = vst.msk [vmem:[%s217] sm:$0xff] %vm6955, %v6860
        %6957 = vst.msk [vmem:[%s217 + $0x8] sm:$0xff] %vm6955, %v6862
        %6958 = vst.msk [vmem:[%s217 + $0x10] sm:$0xff] %vm6955, %v6864
        %6959 = vst.msk [vmem:[%s217 + $0x18] sm:$0xff] %vm6955, %v6866
        %6960 = vst.msk [vmem:[%s217 + $0x20] sm:$0xff] %vm6955, %v6868
        %6961 = vst.msk [vmem:[%s217 + $0x28] sm:$0xff] %vm6955, %v6870
        %6962 = vst.msk [vmem:[%s217 + $0x30] sm:$0xff] %vm6955, %v6872
        %6963 = vst.msk [vmem:[%s217 + $0x38] sm:$0xff] %vm6955, %v6874
        %6964 = vst.msk [vmem:[%s217 + $0x40] sm:$0xff] %vm6955, %v6876
        %6965 = vst.msk [vmem:[%s217 + $0x48] sm:$0xff] %vm6955, %v6878
        %6966 = vst.msk [vmem:[%s217 + $0x50] sm:$0xff] %vm6955, %v6880
        %6967 = vst.msk [vmem:[%s217 + $0x58] sm:$0xff] %vm6955, %v6882
        %6968 = vst.msk [vmem:[%s217 + $0x60] sm:$0xff] %vm6955, %v6884
        %6969 = vst.msk [vmem:[%s217 + $0x68] sm:$0xff] %vm6955, %v6886
        %6970 = vst.msk [vmem:[%s217 + $0x70] sm:$0xff] %vm6955, %v6888
        %6971 = vst.msk [vmem:[%s217 + $0x78] sm:$0xff] %vm6955, %v6890
        %6972 = vst.msk [vmem:[%s217 + $0x80] sm:$0xff] %vm6955, %v6892
        %6973 = vst.msk [vmem:[%s217 + $0x88] sm:$0xff] %vm6955, %v6894
        %6974 = vst.msk [vmem:[%s217 + $0x90] sm:$0xff] %vm6955, %v6896
        %6975 = vst.msk [vmem:[%s217 + $0x98] sm:$0xff] %vm6955, %v6898
        %6976 = vst.msk [vmem:[%s217 + $0xa0] sm:$0xff] %vm6955, %v6900
        %6977 = vst.msk [vmem:[%s217 + $0xa8] sm:$0xff] %vm6955, %v6902
        %6978 = vst.msk [vmem:[%s217 + $0xb0] sm:$0xff] %vm6955, %v6904
        %6979 = vst.msk [vmem:[%s217 + $0xb8] sm:$0xff] %vm6955, %v6906
        %6980 = vst.msk [vmem:[%s217 + $0xc0] sm:$0xff] %vm6955, %v6908
        %6981 = vst.msk [vmem:[%s217 + $0xc8] sm:$0xff] %vm6955, %v6910
        %6982 = vst.msk [vmem:[%s217 + $0xd0] sm:$0xff] %vm6955, %v6912
        %6983 = vst.msk [vmem:[%s217 + $0xd8] sm:$0xff] %vm6955, %v6914
        %6984 = vst.msk [vmem:[%s217 + $0xe0] sm:$0xff] %vm6955, %v6916
        %6985 = vst.msk [vmem:[%s217 + $0xe8] sm:$0xff] %vm6955, %v6918
        %6986 = vst.msk [vmem:[%s217 + $0xf0] sm:$0xff] %vm6955, %v6920
        %6987 = vst.msk [vmem:[%s217 + $0xf8] sm:$0xff] %vm6955, %v6922
        %s6988 = sand.u32 %s137, 1
        %s6989 = scalar_lea.sflag [#allocation5], %s6988
        %s6990 = sand.u32 %s137, 1
        %s6991 = smul.addr %s6990, 256
        %s6992 = scalar_lea.vmem [#allocation4], %s6991
        // Predicated region
        $region41: #{residual_block_forward.1} parent=39 // pred_check
          %p6993 = pneg %p147
        $region42: #{residual_block_forward.1} parent=39 // pred_check_branch
          %6995 = sbr.rel (%p6993) target = $region44
        $region43: #{residual_block_forward.1} parent=39 // pred_region
          %6997 = vsyncadd %s6989, 0
          %s6998 = smul.addr %s19, 32
          %s6999 = smul.addr %s6998, 8
          %s7000 = scalar_lea.hbm %s5, %s6999
          %s7001 = sshll.u32 %s6992, 4
          %s7002 = int_to_ptr.vmem [resolvable:$true] %s7001
          %s7003 = sshll.u32 %s7000, 4
          %s7004 = int_to_ptr.hbm [resolvable:$true] %s7003
          %7009 = dma.vmem_to_hbm [thread:$0]  %s7002, 4096, %s7004, %s6989, 128, 128, 8
        $region44: #{residual_block_forward.1} parent=39 // pred_fallthru
          _
      $region40: #{residual_block_forward.1} parent=5 // pred_fallthru
        _
      %p7010 = scmp.le.s32.totalorder 2, %s14
      // Predicated region
      $region45: #{residual_block_forward.1} parent=5 // pred_check
        %p7011 = pneg %p7010
      $region46: #{residual_block_forward.1} parent=5 // pred_check_branch
        %7013 = sbr.rel (%p7011) target = $region48
      $region47: #{residual_block_forward.1} parent=5 // pred_region
        %s7014 = ssub.s32 %s14, 2
        // Predicated region
        $region49: #{residual_block_forward.1} parent=47 // pred_check
          %p7015 = pneg %p153
        $region50: #{residual_block_forward.1} parent=47 // pred_check_branch
          %7017 = sbr.rel (%p7015) target = $region52
        $region51: #{residual_block_forward.1} parent=47 // pred_region
          %s7018 = sand.u32 %s138, 1
          %s7019 = scalar_lea.sflag [#allocation5], %s7018
          %s7020 = sand.u32 %s138, 1
          %s7021 = smul.addr %s7020, 256
          %s7022 = scalar_lea.vmem [#allocation4], %s7021
          %7024 = dma.done %s7019, 4096
        $region52: #{residual_block_forward.1} parent=47 // pred_fallthru
          _
      $region48: #{residual_block_forward.1} parent=5 // pred_fallthru
        _
    $region6: #{residual_block_forward.1} parent=1 // loop_footer
      %s18 = sadd.s32 1, %s14
    $region7: #{residual_block_forward.1} parent=1 // loop_footer_branch
      %13 = sbr.rel target = $region3
    $region8: #{residual_block_forward.1} parent=1 // loop_exit
      _
    %7025 = vsyncpa [#allocation5], 1
    %s7026 = scalar_lea.sflag [#allocation5], 1
    %7027 = vsyncpa %s7026, 1

</llo_original>
